<compile_context>
chip_gen: v7x
topology: tpu7x:2x2x1
jax: 0.10.0
libtpu: 0.0.40
codegen_flags: <defaults>
</compile_context>

<pallas_src>
import jax
import jax.numpy as jnp
from jax import lax
from jax.experimental import pallas as pl
from jax.experimental.pallas import tpu as pltpu


# --------------------------------------------------------------------------- quant helpers

def quant_scale(bits: int) -> float:
    # Brevitas QuantReLU: INT, CONST scaling, max_val=2.0, narrow_range=False
    return 2.0 / (2 ** bits - 1)


# --------------------------------------------------------------------------- fused kernel

def make_fused_kernel(n_conv, L0, Lf, inv_in_scale, qmax_in, qmax_hid, qmax_out,
                      out_scale, post_bias):
    def kernel(*refs):
        idx = 0
        x_ref = refs[idx]; idx += 1                       # (1, Cin_pad, L0)
        conv_w, conv_a, conv_b = [], [], []
        for _ in range(n_conv):
            conv_w.append(refs[idx])                      # (Cout, 3*Cin_pad)
            conv_a.append(refs[idx + 1])                  # (Cout, 1) folded scale
            conv_b.append(refs[idx + 2])                  # (Cout, 1) folded shift
            idx += 3
        sel_refs = refs[idx:idx + n_conv]; idx += n_conv  # (L, L//2) 0/1 even selectors
        (w0_ref, a0_ref, b0_ref,
         w1_ref, a1_ref, b1_ref,
         w2_ref, b2_ref) = refs[idx:idx + 8]
        o_ref = refs[idx + 8]                             # (1, 1, Fout)

        # ---- input quantizer (QuantReLU, CONST scale): carry integer codes.
        x = x_ref[0]                                      # (Cin_pad, L0)
        h = jnp.round(jnp.clip(x * inv_in_scale, 0.0, qmax_in))

        # ---- conv stack, (C, L) layout: channels on sublanes, length on lanes.
        L = L0
        for li in range(n_conv):
            cin = h.shape[0]
            lane = lax.broadcasted_iota(jnp.int32, (cin, L), 1)
            # x[t-1] / x[t+1] taps: lane rolls (XLU) + zero edge masks (pad=1).
            xm1 = jnp.where(lane > 0, pltpu.roll(h, shift=1, axis=1), 0.0)
            xp1 = jnp.where(lane < L - 1, pltpu.roll(h, shift=L - 1, axis=1), 0.0)
            # Stack the 3 taps along the contraction dim -> one matmul per layer.
            hs = jnp.concatenate([xm1, h, xp1], axis=0)   # (3*cin, L)
            y = jnp.dot(conv_w[li][...], hs,
                        preferred_element_type=jnp.float32)          # (Cout, L)
            # folded conv-bias + eval BN + 1/q_scale, then snap to the int grid
            y = jnp.round(jnp.clip(y * conv_a[li][...] + conv_b[li][...],
                                   0.0, qmax_hid))
            # MaxPool1d(2): pair-max via lane roll, even-column compaction via
            # a small per-layer 0/1 selection matmul (MXU idle -> free).
            m = jnp.maximum(y, pltpu.roll(y, shift=L - 1, axis=1))
            h = jnp.dot(m, sel_refs[li][...],
                        preferred_element_type=jnp.float32)          # (Cout, L//2)
            L //= 2

        # ---- flatten + linear 0
        # torch.flatten index = c*Lf + l; weight pre-arranged to (Lf, Cf, F1)
        # so each term is an independent broadcast-mul + sublane reduce
        # (no serial M=1 matmul chain, no in-kernel reshape/transpose).
        parts = []
        for l in range(Lf):
            parts.append(jnp.sum(h[:, l:l + 1] * w0_ref[l],
                                 axis=0, keepdims=True))             # (1, F1)
        while len(parts) > 1:
            nxt = []
            for i in range(0, len(parts), 2):
                nxt.append(parts[i] + parts[i + 1] if i + 1 < len(parts) else parts[i])
            parts = nxt
        acc = parts[0]
        y = jnp.round(jnp.clip(acc * a0_ref[...] + b0_ref[...], 0.0, qmax_hid))

        # ---- linear 1
        y = jnp.dot(y, w1_ref[...], preferred_element_type=jnp.float32)
        y = jnp.round(jnp.clip(y * a1_ref[...] + b1_ref[...], 0.0, qmax_hid))

        # ---- linear 2 (output): quant grid folded into w2/b2, then de-quant
        #      + ScalarBiasScale(bias_init=0.33, scale=1.0)
        y = jnp.dot(y, w2_ref[...], preferred_element_type=jnp.float32) + b2_ref[...]
        q = jnp.round(jnp.clip(y, 0.0, qmax_out))
        o_ref[0] = q * out_scale + post_bias

    return kernel


# --------------------------------------------------------------------------- params

def sparsity_mask_2d(key, out_f, in_f, fan_in):
    # RandomFixedSparsityMask2D: exactly `fan_in` active inputs per output unit
    scores = jax.random.uniform(key, (out_f, in_f))
    idx = jnp.argsort(scores, axis=1)[:, :fan_in]
    m = jnp.zeros((out_f, in_f), jnp.float32)
    m = m.at[jnp.arange(out_f)[:, None], idx].set(1.0)
    return m


def make_bn(key, c):
    # eval-mode BatchNorm1d folded to per-channel scale/shift
    k1, k2, k3, k4 = jax.random.split(key, 4)
    gamma = jax.random.uniform(k1, (1, c), minval=0.8, maxval=1.2)
    beta = jax.random.uniform(k2, (1, c), minval=-0.1, maxval=0.1)
    mean = jax.random.uniform(k3, (1, c), minval=-0.1, maxval=0.1)
    var = jax.random.uniform(k4, (1, c), minval=0.9, maxval=1.1)
    s = gamma / jnp.sqrt(var + 1e-5)
    return s.astype(jnp.float32), (beta - mean * s).astype(jnp.float32)


def build_params(key, cfg):
    neurons = [cfg['input_length']] + cfg['hidden_layers'] + [cfg['output_length']]
    n = len(neurons)
    n_conv = n - 4
    L0 = cfg['sequence_length']

    s_in = quant_scale(cfg['input_bitwidth'])
    s_hid = quant_scale(cfg['hidden_bitwidth'])
    s_out = quant_scale(cfg['output_bitwidth'])

    keys = jax.random.split(key, 128)
    k = iter(range(128))

    convs = []
    L = L0
    cin_pad0 = None
    for i in range(1, n - 3):
        assert L % 2 == 0, "MaxPool1d(2) requires even length at every stage"
        cin, cout = neurons[i - 1], neurons[i]
        fan = cfg['input_fanin'] if i == 1 else cfg['conv_fanin']
        m2d = sparsity_mask_2d(keys[next(k)], cout, cin, fan)        # (cout, cin)
        bound = 1.0 / (cin * 3) ** 0.5
        w = jax.random.uniform(keys[next(k)], (3, cin, cout), minval=-bound, maxval=bound)
        w = w * jnp.transpose(m2d)[None]                             # mask all 3 taps
        b = jax.random.uniform(keys[next(k)], (1, cout), minval=-bound, maxval=bound)
        bns, bnb = make_bn(keys[next(k)], cout)

        # pad in-channels to a multiple of 8 (sublane-aligned contraction dim)
        cin_pad = ((cin + 7) // 8) * 8
        if i == 1:
            cin_pad0 = cin_pad
        w_pad = jnp.zeros((3, cin_pad, cout), jnp.float32).at[:, :cin, :].set(w)

        # (Cout, 3*Cin_pad), tap-major / channel-minor, pre-scaled by the
        # previous activation's quant scale (input codes -> real values).
        s_prev = s_in if i == 1 else s_hid
        w2d = jnp.transpose(w_pad, (2, 0, 1)).reshape(cout, 3 * cin_pad) * s_prev

        # conv-bias + eval BN + 1/s_hid folded into one per-channel FMA (columns)
        scale_col = jnp.transpose(bns) / s_hid                       # (cout, 1)
        shift_col = jnp.transpose(b * bns + bnb) / s_hid             # (cout, 1)

        # 0/1 even-column selector for MaxPool1d(2) at this layer's length
        sel = (jnp.arange(L)[:, None] == 2 * jnp.arange(L // 2)[None, :]).astype(jnp.float32)

        convs.append(dict(w=w2d.astype(jnp.float32),
                          scale=scale_col.astype(jnp.float32),
                          shift=shift_col.astype(jnp.float32),
                          sel=sel))
        L //= 2

    Lf = L
    Cf = neurons[n - 4]
    flat_in = Cf * Lf
    assert flat_in == 512, "model hardcodes 512 flatten features"

    lin_specs = [
        (flat_in, neurons[n - 3], cfg['hidden_fanin'], True),
        (neurons[n - 3], neurons[n - 2], cfg['hidden_fanin'], True),
        (neurons[n - 2], neurons[n - 1], cfg['output_fanin'], False),
    ]
    linears = []
    for fin, fout, fan, use_bn in lin_specs:
        mask = sparsity_mask_2d(keys[next(k)], fout, fin, fan)       # (fout, fin)
        bound = 1.0 / fin ** 0.5
        w = jax.random.uniform(keys[next(k)], (fin, fout), minval=-bound, maxval=bound)
        w = w * jnp.transpose(mask)
        b = jax.random.uniform(keys[next(k)], (1, fout), minval=-bound, maxval=bound)
        if use_bn:
            bns, bnb = make_bn(keys[next(k)], fout)
            linears.append(dict(w=(w * s_hid).astype(jnp.float32),        # input codes
                                scale=(bns / s_hid).astype(jnp.float32),   # BN * 1/s
                                shift=((b * bns + bnb) / s_hid).astype(jnp.float32)))
        else:
            # last layer: no BN; fold 1/s_out into weight & bias
            linears.append(dict(w=(w * (s_hid / s_out)).astype(jnp.float32),
                                shift=(b / s_out).astype(jnp.float32)))

    # first-linear weight rearranged so the kernel consumes h (Cf, Lf) directly:
    # torch flatten index = c*Lf + l  ->  (Lf, Cf, F1)
    F1 = linears[0]['w'].shape[1]
    linears[0]['w'] = jnp.transpose(linears[0]['w'].reshape(Cf, Lf, F1), (1, 0, 2))

    return dict(convs=convs, linears=linears, cin_pad=int(cin_pad0), Lf=int(Lf))


# --------------------------------------------------------------------------- forward

def radioml_neq_forward(params, x_ncw, cfg):
    """x_ncw: (B, C=input_length, L) float32, PyTorch NCW layout (kept as-is)."""
    convs, linears = params['convs'], params['linears']
    n_conv = len(convs)
    B, Cin0, L0 = x_ncw.shape
    assert L0 == cfg['sequence_length']

    cin_pad = params['cin_pad']
    x = x_ncw if Cin0 == cin_pad else jnp.pad(x_ncw, ((0, 0), (0, cin_pad - Cin0), (0, 0)))

    Lf = params['Lf']
    Fout = linears[2]['w'].shape[-1]

    inv_in = 1.0 / quant_scale(cfg['input_bitwidth'])
    qmax_in = float(2 ** cfg['input_bitwidth'] - 1)
    qmax_hid = float(2 ** cfg['hidden_bitwidth'] - 1)
    qmax_out = float(2 ** cfg['output_bitwidth'] - 1)
    s_out = quant_scale(cfg['output_bitwidth'])

    def cmap(nd):                                 # constant index maps (no late binding)
        return lambda b, _n=nd: (0,) * _n

    inputs = [x]
    in_specs = [pl.BlockSpec((1, cin_pad, L0), lambda b: (b, 0, 0))]
    for c in convs:
        for a in (c['w'], c['scale'], c['shift']):
            inputs.append(a)
            in_specs.append(pl.BlockSpec(a.shape, cmap(a.ndim)))
    for c in convs:
        inputs.append(c['sel'])
        in_specs.append(pl.BlockSpec(c['sel'].shape, cmap(2)))
    l0, l1, l2 = linears
    for a in (l0['w'], l0['scale'], l0['shift'],
              l1['w'], l1['scale'], l1['shift'],
              l2['w'], l2['shift']):
        inputs.append(a)
        in_specs.append(pl.BlockSpec(a.shape, cmap(a.ndim)))

    kernel = make_fused_kernel(n_conv, L0, Lf, inv_in, qmax_in, qmax_hid, qmax_out,
                               s_out, post_bias=0.33)

    out = pl.pallas_call(
        kernel,
        out_shape=jax.ShapeDtypeStruct((B, 1, Fout), jnp.float32),
        grid=(B,),
        in_specs=in_specs,
        out_specs=pl.BlockSpec((1, 1, Fout), lambda b: (b, 0, 0)),
        compiler_params=pltpu.CompilerParams(
            dimension_semantics=("parallel",)),   # even grid keeps both v7x TCs busy
    )(*inputs)
    return out.reshape(B, Fout)


# --------------------------------------------------------------------------- main

if __name__ == "__main__":
    # 7 conv layers + 3 linear layers; last conv has 128 channels so that after
    # 7 MaxPool1d(2) steps (L=512 -> 4) the hardcoded 512-wide flatten matches.
    model_config = dict(
        input_length=2,
        hidden_layers=[16, 16, 16, 16, 16, 16, 128, 64, 32],
        output_length=24,
        input_bitwidth=4,
        hidden_bitwidth=4,
        output_bitwidth=4,
        input_fanin=2,
        conv_fanin=4,
        hidden_fanin=16,
        output_fanin=8,
        sequence_length=512,
    )

    params = build_params(jax.random.PRNGKey(42), model_config)

    x = jax.random.normal(
        jax.random.PRNGKey(0),
        (2, model_config['input_length'], model_config['sequence_length']),
        dtype=jnp.float32,
    )  # PyTorch NCW input: (batch=2, channels=2, length=512)

    y = radioml_neq_forward(params, x, model_config)
    y = jax.block_until_ready(y)
    assert y.shape == (2, model_config['output_length']), y.shape
    assert bool(jnp.all(jnp.isfinite(y)))
    print("KERNEL_OK")
</pallas_src>

<mosaic_0001>
module attributes {stable_mosaic.version = 11 : i64} {
  func.func @kernel(%arg0: i32, %arg1: memref<1x8x512xf32, #tpu.memory_space<vmem>>, %arg2: memref<16x24xf32, #tpu.memory_space<vmem>>, %arg3: memref<16x1xf32, #tpu.memory_space<vmem>>, %arg4: memref<16x1xf32, #tpu.memory_space<vmem>>, %arg5: memref<16x48xf32, #tpu.memory_space<vmem>>, %arg6: memref<16x1xf32, #tpu.memory_space<vmem>>, %arg7: memref<16x1xf32, #tpu.memory_space<vmem>>, %arg8: memref<16x48xf32, #tpu.memory_space<vmem>>, %arg9: memref<16x1xf32, #tpu.memory_space<vmem>>, %arg10: memref<16x1xf32, #tpu.memory_space<vmem>>, %arg11: memref<16x48xf32, #tpu.memory_space<vmem>>, %arg12: memref<16x1xf32, #tpu.memory_space<vmem>>, %arg13: memref<16x1xf32, #tpu.memory_space<vmem>>, %arg14: memref<16x48xf32, #tpu.memory_space<vmem>>, %arg15: memref<16x1xf32, #tpu.memory_space<vmem>>, %arg16: memref<16x1xf32, #tpu.memory_space<vmem>>, %arg17: memref<16x48xf32, #tpu.memory_space<vmem>>, %arg18: memref<16x1xf32, #tpu.memory_space<vmem>>, %arg19: memref<16x1xf32, #tpu.memory_space<vmem>>, %arg20: memref<128x48xf32, #tpu.memory_space<vmem>>, %arg21: memref<128x1xf32, #tpu.memory_space<vmem>>, %arg22: memref<128x1xf32, #tpu.memory_space<vmem>>, %arg23: memref<512x256xf32, #tpu.memory_space<vmem>>, %arg24: memref<256x128xf32, #tpu.memory_space<vmem>>, %arg25: memref<128x64xf32, #tpu.memory_space<vmem>>, %arg26: memref<64x32xf32, #tpu.memory_space<vmem>>, %arg27: memref<32x16xf32, #tpu.memory_space<vmem>>, %arg28: memref<16x8xf32, #tpu.memory_space<vmem>>, %arg29: memref<8x4xf32, #tpu.memory_space<vmem>>, %arg30: memref<4x128x64xf32, #tpu.memory_space<vmem>>, %arg31: memref<1x64xf32, #tpu.memory_space<vmem>>, %arg32: memref<1x64xf32, #tpu.memory_space<vmem>>, %arg33: memref<64x32xf32, #tpu.memory_space<vmem>>, %arg34: memref<1x32xf32, #tpu.memory_space<vmem>>, %arg35: memref<1x32xf32, #tpu.memory_space<vmem>>, %arg36: memref<32x24xf32, #tpu.memory_space<vmem>>, %arg37: memref<1x24xf32, #tpu.memory_space<vmem>>, %arg38: memref<1x1x24xf32, #tpu.memory_space<vmem>>) attributes {dimension_semantics = [#tpu.dimension_semantics<parallel>], iteration_bounds = array<i64: 2>, scalar_prefetch = 0 : i64, scratch_operands = 0 : i64, tpu.core_type = #tpu.core_type<tc>, window_params = [{transform_indices = @transform_0, window_bounds = array<i64: 1, 8, 512>}, {pipeline_mode = #tpu.pipeline_mode<synchronous>, transform_indices = @transform_1, window_bounds = array<i64: 16, 24>}, {pipeline_mode = #tpu.pipeline_mode<synchronous>, transform_indices = @transform_2, window_bounds = array<i64: 16, 1>}, {pipeline_mode = #tpu.pipeline_mode<synchronous>, transform_indices = @transform_3, window_bounds = array<i64: 16, 1>}, {pipeline_mode = #tpu.pipeline_mode<synchronous>, transform_indices = @transform_4, window_bounds = array<i64: 16, 48>}, {pipeline_mode = #tpu.pipeline_mode<synchronous>, transform_indices = @transform_5, window_bounds = array<i64: 16, 1>}, {pipeline_mode = #tpu.pipeline_mode<synchronous>, transform_indices = @transform_6, window_bounds = array<i64: 16, 1>}, {pipeline_mode = #tpu.pipeline_mode<synchronous>, transform_indices = @transform_7, window_bounds = array<i64: 16, 48>}, {pipeline_mode = #tpu.pipeline_mode<synchronous>, transform_indices = @transform_8, window_bounds = array<i64: 16, 1>}, {pipeline_mode = #tpu.pipeline_mode<synchronous>, transform_indices = @transform_9, window_bounds = array<i64: 16, 1>}, {pipeline_mode = #tpu.pipeline_mode<synchronous>, transform_indices = @transform_10, window_bounds = array<i64: 16, 48>}, {pipeline_mode = #tpu.pipeline_mode<synchronous>, transform_indices = @transform_11, window_bounds = array<i64: 16, 1>}, {pipeline_mode = #tpu.pipeline_mode<synchronous>, transform_indices = @transform_12, window_bounds = array<i64: 16, 1>}, {pipeline_mode = #tpu.pipeline_mode<synchronous>, transform_indices = @transform_13, window_bounds = array<i64: 16, 48>}, {pipeline_mode = #tpu.pipeline_mode<synchronous>, transform_indices = @transform_14, window_bounds = array<i64: 16, 1>}, {pipeline_mode = #tpu.pipeline_mode<synchronous>, transform_indices = @transform_15, window_bounds = array<i64: 16, 1>}, {pipeline_mode = #tpu.pipeline_mode<synchronous>, transform_indices = @transform_16, window_bounds = array<i64: 16, 48>}, {pipeline_mode = #tpu.pipeline_mode<synchronous>, transform_indices = @transform_17, window_bounds = array<i64: 16, 1>}, {pipeline_mode = #tpu.pipeline_mode<synchronous>, transform_indices = @transform_18, window_bounds = array<i64: 16, 1>}, {pipeline_mode = #tpu.pipeline_mode<synchronous>, transform_indices = @transform_19, window_bounds = array<i64: 128, 48>}, {pipeline_mode = #tpu.pipeline_mode<synchronous>, transform_indices = @transform_20, window_bounds = array<i64: 128, 1>}, {pipeline_mode = #tpu.pipeline_mode<synchronous>, transform_indices = @transform_21, window_bounds = array<i64: 128, 1>}, {pipeline_mode = #tpu.pipeline_mode<synchronous>, transform_indices = @transform_22, window_bounds = array<i64: 512, 256>}, {pipeline_mode = #tpu.pipeline_mode<synchronous>, transform_indices = @transform_23, window_bounds = array<i64: 256, 128>}, {pipeline_mode = #tpu.pipeline_mode<synchronous>, transform_indices = @transform_24, window_bounds = array<i64: 128, 64>}, {pipeline_mode = #tpu.pipeline_mode<synchronous>, transform_indices = @transform_25, window_bounds = array<i64: 64, 32>}, {pipeline_mode = #tpu.pipeline_mode<synchronous>, transform_indices = @transform_26, window_bounds = array<i64: 32, 16>}, {pipeline_mode = #tpu.pipeline_mode<synchronous>, transform_indices = @transform_27, window_bounds = array<i64: 16, 8>}, {pipeline_mode = #tpu.pipeline_mode<synchronous>, transform_indices = @transform_28, window_bounds = array<i64: 8, 4>}, {pipeline_mode = #tpu.pipeline_mode<synchronous>, transform_indices = @transform_29, window_bounds = array<i64: 4, 128, 64>}, {pipeline_mode = #tpu.pipeline_mode<synchronous>, transform_indices = @transform_30, window_bounds = array<i64: 1, 64>}, {pipeline_mode = #tpu.pipeline_mode<synchronous>, transform_indices = @transform_31, window_bounds = array<i64: 1, 64>}, {pipeline_mode = #tpu.pipeline_mode<synchronous>, transform_indices = @transform_32, window_bounds = array<i64: 64, 32>}, {pipeline_mode = #tpu.pipeline_mode<synchronous>, transform_indices = @transform_33, window_bounds = array<i64: 1, 32>}, {pipeline_mode = #tpu.pipeline_mode<synchronous>, transform_indices = @transform_34, window_bounds = array<i64: 1, 32>}, {pipeline_mode = #tpu.pipeline_mode<synchronous>, transform_indices = @transform_35, window_bounds = array<i64: 32, 24>}, {pipeline_mode = #tpu.pipeline_mode<synchronous>, transform_indices = @transform_36, window_bounds = array<i64: 1, 24>}, {transform_indices = @transform_37, window_bounds = array<i64: 1, 1, 24>}]} {
    %c0 = arith.constant 0 : index
    %c0_0 = arith.constant 0 : index
    %c0_1 = arith.constant 0 : index
    %0 = vector.load %arg1[%c0, %c0_0, %c0_1] : memref<1x8x512xf32, #tpu.memory_space<vmem>>, vector<1x8x512xf32>
    %1 = vector.shape_cast %0 : vector<1x8x512xf32> to vector<8x512xf32>
    %cst = arith.constant 7.500000e+00 : f32
    %2 = vector.broadcast %cst : f32 to vector<8x512xf32>
    %3 = arith.mulf %1, %2 : vector<8x512xf32>
    %cst_2 = arith.constant 0.000000e+00 : f32
    %cst_3 = arith.constant 1.500000e+01 : f32
    %4 = vector.broadcast %cst_2 : f32 to vector<8x512xf32>
    %5 = arith.maximumf %4, %3 : vector<8x512xf32>
    %6 = vector.broadcast %cst_3 : f32 to vector<8x512xf32>
    %7 = arith.minimumf %6, %5 : vector<8x512xf32>
    %8 = math.roundeven %7 : vector<8x512xf32>
    %9 = tpu.iota {dimensions = array<i32: 1>} : vector<8x512xi32>
    %c0_i32 = arith.constant 0 : i32
    %10 = vector.broadcast %c0_i32 : i32 to vector<8x512xi32>
    %11 = arith.cmpi sgt, %9, %10 : vector<8x512xi32>
    %c1_i32 = arith.constant 1 : i32
    %12 = tpu.dynamic_rotate %8 by %c1_i32 dim 1 : vector<8x512xf32>, i32 -> vector<8x512xf32>
    %cst_4 = arith.constant 0.000000e+00 : f32
    %13 = vector.broadcast %cst_4 : f32 to vector<8x512xf32>
    %14 = arith.select %11, %12, %13 : vector<8x512xi1>, vector<8x512xf32>
    %c511_i32 = arith.constant 511 : i32
    %15 = vector.broadcast %c511_i32 : i32 to vector<8x512xi32>
    %16 = arith.cmpi slt, %9, %15 : vector<8x512xi32>
    %c511_i32_5 = arith.constant 511 : i32
    %17 = tpu.dynamic_rotate %8 by %c511_i32_5 dim 1 : vector<8x512xf32>, i32 -> vector<8x512xf32>
    %cst_6 = arith.constant 0.000000e+00 : f32
    %18 = vector.broadcast %cst_6 : f32 to vector<8x512xf32>
    %19 = arith.select %16, %17, %18 : vector<8x512xi1>, vector<8x512xf32>
    %20 = tpu.concatenate %14, %8, %19 in 0 : vector<8x512xf32>, vector<8x512xf32>, vector<8x512xf32> -> vector<24x512xf32>
    %c0_7 = arith.constant 0 : index
    %c0_8 = arith.constant 0 : index
    %21 = vector.load %arg2[%c0_7, %c0_8] : memref<16x24xf32, #tpu.memory_space<vmem>>, vector<16x24xf32>
    %cst_9 = arith.constant dense<0.000000e+00> : vector<16x512xf32>
    %22 = tpu.matmul %21, %20, %cst_9 {dimension_numbers = #tpu.dot_dimension_numbers<[1], [0], [0], [1], [0, 0, 1, 1], [], []>} : vector<16x24xf32>, vector<24x512xf32>, vector<16x512xf32> -> vector<16x512xf32>
    %c0_10 = arith.constant 0 : index
    %c0_11 = arith.constant 0 : index
    %23 = vector.load %arg3[%c0_10, %c0_11] : memref<16x1xf32, #tpu.memory_space<vmem>>, vector<16x1xf32>
    %24 = vector.broadcast %23 : vector<16x1xf32> to vector<16x512xf32>
    %25 = arith.mulf %22, %24 : vector<16x512xf32>
    %c0_12 = arith.constant 0 : index
    %c0_13 = arith.constant 0 : index
    %26 = vector.load %arg4[%c0_12, %c0_13] : memref<16x1xf32, #tpu.memory_space<vmem>>, vector<16x1xf32>
    %27 = vector.broadcast %26 : vector<16x1xf32> to vector<16x512xf32>
    %28 = arith.addf %25, %27 : vector<16x512xf32>
    %cst_14 = arith.constant 0.000000e+00 : f32
    %cst_15 = arith.constant 1.500000e+01 : f32
    %29 = vector.broadcast %cst_14 : f32 to vector<16x512xf32>
    %30 = arith.maximumf %29, %28 : vector<16x512xf32>
    %31 = vector.broadcast %cst_15 : f32 to vector<16x512xf32>
    %32 = arith.minimumf %31, %30 : vector<16x512xf32>
    %33 = math.roundeven %32 : vector<16x512xf32>
    %c511_i32_16 = arith.constant 511 : i32
    %34 = tpu.dynamic_rotate %33 by %c511_i32_16 dim 1 : vector<16x512xf32>, i32 -> vector<16x512xf32>
    %35 = arith.maximumf %33, %34 : vector<16x512xf32>
    %c0_17 = arith.constant 0 : index
    %c0_18 = arith.constant 0 : index
    %36 = vector.load %arg23[%c0_17, %c0_18] : memref<512x256xf32, #tpu.memory_space<vmem>>, vector<512x256xf32>
    %cst_19 = arith.constant dense<0.000000e+00> : vector<16x256xf32>
    %37 = tpu.matmul %35, %36, %cst_19 {dimension_numbers = #tpu.dot_dimension_numbers<[1], [0], [0], [1], [0, 0, 1, 1], [], []>} : vector<16x512xf32>, vector<512x256xf32>, vector<16x256xf32> -> vector<16x256xf32>
    %38 = tpu.iota {dimensions = array<i32: 1>} : vector<16x256xi32>
    %c0_i32_20 = arith.constant 0 : i32
    %39 = vector.broadcast %c0_i32_20 : i32 to vector<16x256xi32>
    %40 = arith.cmpi sgt, %38, %39 : vector<16x256xi32>
    %c1_i32_21 = arith.constant 1 : i32
    %41 = tpu.dynamic_rotate %37 by %c1_i32_21 dim 1 : vector<16x256xf32>, i32 -> vector<16x256xf32>
    %cst_22 = arith.constant 0.000000e+00 : f32
    %42 = vector.broadcast %cst_22 : f32 to vector<16x256xf32>
    %43 = arith.select %40, %41, %42 : vector<16x256xi1>, vector<16x256xf32>
    %c255_i32 = arith.constant 255 : i32
    %44 = vector.broadcast %c255_i32 : i32 to vector<16x256xi32>
    %45 = arith.cmpi slt, %38, %44 : vector<16x256xi32>
    %c255_i32_23 = arith.constant 255 : i32
    %46 = tpu.dynamic_rotate %37 by %c255_i32_23 dim 1 : vector<16x256xf32>, i32 -> vector<16x256xf32>
    %cst_24 = arith.constant 0.000000e+00 : f32
    %47 = vector.broadcast %cst_24 : f32 to vector<16x256xf32>
    %48 = arith.select %45, %46, %47 : vector<16x256xi1>, vector<16x256xf32>
    %49 = tpu.concatenate %43, %37, %48 in 0 : vector<16x256xf32>, vector<16x256xf32>, vector<16x256xf32> -> vector<48x256xf32>
    %c0_25 = arith.constant 0 : index
    %c0_26 = arith.constant 0 : index
    %50 = vector.load %arg5[%c0_25, %c0_26] : memref<16x48xf32, #tpu.memory_space<vmem>>, vector<16x48xf32>
    %cst_27 = arith.constant dense<0.000000e+00> : vector<16x256xf32>
    %51 = tpu.matmul %50, %49, %cst_27 {dimension_numbers = #tpu.dot_dimension_numbers<[1], [0], [0], [1], [0, 0, 1, 1], [], []>} : vector<16x48xf32>, vector<48x256xf32>, vector<16x256xf32> -> vector<16x256xf32>
    %c0_28 = arith.constant 0 : index
    %c0_29 = arith.constant 0 : index
    %52 = vector.load %arg6[%c0_28, %c0_29] : memref<16x1xf32, #tpu.memory_space<vmem>>, vector<16x1xf32>
    %53 = vector.broadcast %52 : vector<16x1xf32> to vector<16x256xf32>
    %54 = arith.mulf %51, %53 : vector<16x256xf32>
    %c0_30 = arith.constant 0 : index
    %c0_31 = arith.constant 0 : index
    %55 = vector.load %arg7[%c0_30, %c0_31] : memref<16x1xf32, #tpu.memory_space<vmem>>, vector<16x1xf32>
    %56 = vector.broadcast %55 : vector<16x1xf32> to vector<16x256xf32>
    %57 = arith.addf %54, %56 : vector<16x256xf32>
    %cst_32 = arith.constant 0.000000e+00 : f32
    %cst_33 = arith.constant 1.500000e+01 : f32
    %58 = vector.broadcast %cst_32 : f32 to vector<16x256xf32>
    %59 = arith.maximumf %58, %57 : vector<16x256xf32>
    %60 = vector.broadcast %cst_33 : f32 to vector<16x256xf32>
    %61 = arith.minimumf %60, %59 : vector<16x256xf32>
    %62 = math.roundeven %61 : vector<16x256xf32>
    %c255_i32_34 = arith.constant 255 : i32
    %63 = tpu.dynamic_rotate %62 by %c255_i32_34 dim 1 : vector<16x256xf32>, i32 -> vector<16x256xf32>
    %64 = arith.maximumf %62, %63 : vector<16x256xf32>
    %c0_35 = arith.constant 0 : index
    %c0_36 = arith.constant 0 : index
    %65 = vector.load %arg24[%c0_35, %c0_36] : memref<256x128xf32, #tpu.memory_space<vmem>>, vector<256x128xf32>
    %cst_37 = arith.constant dense<0.000000e+00> : vector<16x128xf32>
    %66 = tpu.matmul %64, %65, %cst_37 {dimension_numbers = #tpu.dot_dimension_numbers<[1], [0], [0], [1], [0, 0, 1, 1], [], []>} : vector<16x256xf32>, vector<256x128xf32>, vector<16x128xf32> -> vector<16x128xf32>
    %67 = tpu.iota {dimensions = array<i32: 1>} : vector<16x128xi32>
    %c0_i32_38 = arith.constant 0 : i32
    %68 = vector.broadcast %c0_i32_38 : i32 to vector<16x128xi32>
    %69 = arith.cmpi sgt, %67, %68 : vector<16x128xi32>
    %c1_i32_39 = arith.constant 1 : i32
    %70 = tpu.dynamic_rotate %66 by %c1_i32_39 dim 1 : vector<16x128xf32>, i32 -> vector<16x128xf32>
    %cst_40 = arith.constant 0.000000e+00 : f32
    %71 = vector.broadcast %cst_40 : f32 to vector<16x128xf32>
    %72 = arith.select %69, %70, %71 : vector<16x128xi1>, vector<16x128xf32>
    %c127_i32 = arith.constant 127 : i32
    %73 = vector.broadcast %c127_i32 : i32 to vector<16x128xi32>
    %74 = arith.cmpi slt, %67, %73 : vector<16x128xi32>
    %c127_i32_41 = arith.constant 127 : i32
    %75 = tpu.dynamic_rotate %66 by %c127_i32_41 dim 1 : vector<16x128xf32>, i32 -> vector<16x128xf32>
    %cst_42 = arith.constant 0.000000e+00 : f32
    %76 = vector.broadcast %cst_42 : f32 to vector<16x128xf32>
    %77 = arith.select %74, %75, %76 : vector<16x128xi1>, vector<16x128xf32>
    %78 = tpu.concatenate %72, %66, %77 in 0 : vector<16x128xf32>, vector<16x128xf32>, vector<16x128xf32> -> vector<48x128xf32>
    %c0_43 = arith.constant 0 : index
    %c0_44 = arith.constant 0 : index
    %79 = vector.load %arg8[%c0_43, %c0_44] : memref<16x48xf32, #tpu.memory_space<vmem>>, vector<16x48xf32>
    %cst_45 = arith.constant dense<0.000000e+00> : vector<16x128xf32>
    %80 = tpu.matmul %79, %78, %cst_45 {dimension_numbers = #tpu.dot_dimension_numbers<[1], [0], [0], [1], [0, 0, 1, 1], [], []>} : vector<16x48xf32>, vector<48x128xf32>, vector<16x128xf32> -> vector<16x128xf32>
    %c0_46 = arith.constant 0 : index
    %c0_47 = arith.constant 0 : index
    %81 = vector.load %arg9[%c0_46, %c0_47] : memref<16x1xf32, #tpu.memory_space<vmem>>, vector<16x1xf32>
    %82 = vector.broadcast %81 : vector<16x1xf32> to vector<16x128xf32>
    %83 = arith.mulf %80, %82 : vector<16x128xf32>
    %c0_48 = arith.constant 0 : index
    %c0_49 = arith.constant 0 : index
    %84 = vector.load %arg10[%c0_48, %c0_49] : memref<16x1xf32, #tpu.memory_space<vmem>>, vector<16x1xf32>
    %85 = vector.broadcast %84 : vector<16x1xf32> to vector<16x128xf32>
    %86 = arith.addf %83, %85 : vector<16x128xf32>
    %cst_50 = arith.constant 0.000000e+00 : f32
    %cst_51 = arith.constant 1.500000e+01 : f32
    %87 = vector.broadcast %cst_50 : f32 to vector<16x128xf32>
    %88 = arith.maximumf %87, %86 : vector<16x128xf32>
    %89 = vector.broadcast %cst_51 : f32 to vector<16x128xf32>
    %90 = arith.minimumf %89, %88 : vector<16x128xf32>
    %91 = math.roundeven %90 : vector<16x128xf32>
    %c127_i32_52 = arith.constant 127 : i32
    %92 = tpu.dynamic_rotate %91 by %c127_i32_52 dim 1 : vector<16x128xf32>, i32 -> vector<16x128xf32>
    %93 = arith.maximumf %91, %92 : vector<16x128xf32>
    %c0_53 = arith.constant 0 : index
    %c0_54 = arith.constant 0 : index
    %94 = vector.load %arg25[%c0_53, %c0_54] : memref<128x64xf32, #tpu.memory_space<vmem>>, vector<128x64xf32>
    %cst_55 = arith.constant dense<0.000000e+00> : vector<16x64xf32>
    %95 = tpu.matmul %93, %94, %cst_55 {dimension_numbers = #tpu.dot_dimension_numbers<[1], [0], [0], [1], [0, 0, 1, 1], [], []>} : vector<16x128xf32>, vector<128x64xf32>, vector<16x64xf32> -> vector<16x64xf32>
    %96 = tpu.iota {dimensions = array<i32: 1>} : vector<16x64xi32>
    %c0_i32_56 = arith.constant 0 : i32
    %97 = vector.broadcast %c0_i32_56 : i32 to vector<16x64xi32>
    %98 = arith.cmpi sgt, %96, %97 : vector<16x64xi32>
    %c1_i32_57 = arith.constant 1 : i32
    %99 = tpu.dynamic_rotate %95 by %c1_i32_57 dim 1 : vector<16x64xf32>, i32 -> vector<16x64xf32>
    %cst_58 = arith.constant 0.000000e+00 : f32
    %100 = vector.broadcast %cst_58 : f32 to vector<16x64xf32>
    %101 = arith.select %98, %99, %100 : vector<16x64xi1>, vector<16x64xf32>
    %c63_i32 = arith.constant 63 : i32
    %102 = vector.broadcast %c63_i32 : i32 to vector<16x64xi32>
    %103 = arith.cmpi slt, %96, %102 : vector<16x64xi32>
    %c63_i32_59 = arith.constant 63 : i32
    %104 = tpu.dynamic_rotate %95 by %c63_i32_59 dim 1 : vector<16x64xf32>, i32 -> vector<16x64xf32>
    %cst_60 = arith.constant 0.000000e+00 : f32
    %105 = vector.broadcast %cst_60 : f32 to vector<16x64xf32>
    %106 = arith.select %103, %104, %105 : vector<16x64xi1>, vector<16x64xf32>
    %107 = tpu.concatenate %101, %95, %106 in 0 : vector<16x64xf32>, vector<16x64xf32>, vector<16x64xf32> -> vector<48x64xf32>
    %c0_61 = arith.constant 0 : index
    %c0_62 = arith.constant 0 : index
    %108 = vector.load %arg11[%c0_61, %c0_62] : memref<16x48xf32, #tpu.memory_space<vmem>>, vector<16x48xf32>
    %cst_63 = arith.constant dense<0.000000e+00> : vector<16x64xf32>
    %109 = tpu.matmul %108, %107, %cst_63 {dimension_numbers = #tpu.dot_dimension_numbers<[1], [0], [0], [1], [0, 0, 1, 1], [], []>} : vector<16x48xf32>, vector<48x64xf32>, vector<16x64xf32> -> vector<16x64xf32>
    %c0_64 = arith.constant 0 : index
    %c0_65 = arith.constant 0 : index
    %110 = vector.load %arg12[%c0_64, %c0_65] : memref<16x1xf32, #tpu.memory_space<vmem>>, vector<16x1xf32>
    %111 = vector.broadcast %110 : vector<16x1xf32> to vector<16x64xf32>
    %112 = arith.mulf %109, %111 : vector<16x64xf32>
    %c0_66 = arith.constant 0 : index
    %c0_67 = arith.constant 0 : index
    %113 = vector.load %arg13[%c0_66, %c0_67] : memref<16x1xf32, #tpu.memory_space<vmem>>, vector<16x1xf32>
    %114 = vector.broadcast %113 : vector<16x1xf32> to vector<16x64xf32>
    %115 = arith.addf %112, %114 : vector<16x64xf32>
    %cst_68 = arith.constant 0.000000e+00 : f32
    %cst_69 = arith.constant 1.500000e+01 : f32
    %116 = vector.broadcast %cst_68 : f32 to vector<16x64xf32>
    %117 = arith.maximumf %116, %115 : vector<16x64xf32>
    %118 = vector.broadcast %cst_69 : f32 to vector<16x64xf32>
    %119 = arith.minimumf %118, %117 : vector<16x64xf32>
    %120 = math.roundeven %119 : vector<16x64xf32>
    %c63_i32_70 = arith.constant 63 : i32
    %121 = tpu.dynamic_rotate %120 by %c63_i32_70 dim 1 : vector<16x64xf32>, i32 -> vector<16x64xf32>
    %122 = arith.maximumf %120, %121 : vector<16x64xf32>
    %c0_71 = arith.constant 0 : index
    %c0_72 = arith.constant 0 : index
    %123 = vector.load %arg26[%c0_71, %c0_72] : memref<64x32xf32, #tpu.memory_space<vmem>>, vector<64x32xf32>
    %cst_73 = arith.constant dense<0.000000e+00> : vector<16x32xf32>
    %124 = tpu.matmul %122, %123, %cst_73 {dimension_numbers = #tpu.dot_dimension_numbers<[1], [0], [0], [1], [0, 0, 1, 1], [], []>} : vector<16x64xf32>, vector<64x32xf32>, vector<16x32xf32> -> vector<16x32xf32>
    %125 = tpu.iota {dimensions = array<i32: 1>} : vector<16x32xi32>
    %c0_i32_74 = arith.constant 0 : i32
    %126 = vector.broadcast %c0_i32_74 : i32 to vector<16x32xi32>
    %127 = arith.cmpi sgt, %125, %126 : vector<16x32xi32>
    %c1_i32_75 = arith.constant 1 : i32
    %128 = tpu.dynamic_rotate %124 by %c1_i32_75 dim 1 : vector<16x32xf32>, i32 -> vector<16x32xf32>
    %cst_76 = arith.constant 0.000000e+00 : f32
    %129 = vector.broadcast %cst_76 : f32 to vector<16x32xf32>
    %130 = arith.select %127, %128, %129 : vector<16x32xi1>, vector<16x32xf32>
    %c31_i32 = arith.constant 31 : i32
    %131 = vector.broadcast %c31_i32 : i32 to vector<16x32xi32>
    %132 = arith.cmpi slt, %125, %131 : vector<16x32xi32>
    %c31_i32_77 = arith.constant 31 : i32
    %133 = tpu.dynamic_rotate %124 by %c31_i32_77 dim 1 : vector<16x32xf32>, i32 -> vector<16x32xf32>
    %cst_78 = arith.constant 0.000000e+00 : f32
    %134 = vector.broadcast %cst_78 : f32 to vector<16x32xf32>
    %135 = arith.select %132, %133, %134 : vector<16x32xi1>, vector<16x32xf32>
    %136 = tpu.concatenate %130, %124, %135 in 0 : vector<16x32xf32>, vector<16x32xf32>, vector<16x32xf32> -> vector<48x32xf32>
    %c0_79 = arith.constant 0 : index
    %c0_80 = arith.constant 0 : index
    %137 = vector.load %arg14[%c0_79, %c0_80] : memref<16x48xf32, #tpu.memory_space<vmem>>, vector<16x48xf32>
    %cst_81 = arith.constant dense<0.000000e+00> : vector<16x32xf32>
    %138 = tpu.matmul %137, %136, %cst_81 {dimension_numbers = #tpu.dot_dimension_numbers<[1], [0], [0], [1], [0, 0, 1, 1], [], []>} : vector<16x48xf32>, vector<48x32xf32>, vector<16x32xf32> -> vector<16x32xf32>
    %c0_82 = arith.constant 0 : index
    %c0_83 = arith.constant 0 : index
    %139 = vector.load %arg15[%c0_82, %c0_83] : memref<16x1xf32, #tpu.memory_space<vmem>>, vector<16x1xf32>
    %140 = vector.broadcast %139 : vector<16x1xf32> to vector<16x32xf32>
    %141 = arith.mulf %138, %140 : vector<16x32xf32>
    %c0_84 = arith.constant 0 : index
    %c0_85 = arith.constant 0 : index
    %142 = vector.load %arg16[%c0_84, %c0_85] : memref<16x1xf32, #tpu.memory_space<vmem>>, vector<16x1xf32>
    %143 = vector.broadcast %142 : vector<16x1xf32> to vector<16x32xf32>
    %144 = arith.addf %141, %143 : vector<16x32xf32>
    %cst_86 = arith.constant 0.000000e+00 : f32
    %cst_87 = arith.constant 1.500000e+01 : f32
    %145 = vector.broadcast %cst_86 : f32 to vector<16x32xf32>
    %146 = arith.maximumf %145, %144 : vector<16x32xf32>
    %147 = vector.broadcast %cst_87 : f32 to vector<16x32xf32>
    %148 = arith.minimumf %147, %146 : vector<16x32xf32>
    %149 = math.roundeven %148 : vector<16x32xf32>
    %c31_i32_88 = arith.constant 31 : i32
    %150 = tpu.dynamic_rotate %149 by %c31_i32_88 dim 1 : vector<16x32xf32>, i32 -> vector<16x32xf32>
    %151 = arith.maximumf %149, %150 : vector<16x32xf32>
    %c0_89 = arith.constant 0 : index
    %c0_90 = arith.constant 0 : index
    %152 = vector.load %arg27[%c0_89, %c0_90] : memref<32x16xf32, #tpu.memory_space<vmem>>, vector<32x16xf32>
    %cst_91 = arith.constant dense<0.000000e+00> : vector<16x16xf32>
    %153 = tpu.matmul %151, %152, %cst_91 {dimension_numbers = #tpu.dot_dimension_numbers<[1], [0], [0], [1], [0, 0, 1, 1], [], []>} : vector<16x32xf32>, vector<32x16xf32>, vector<16x16xf32> -> vector<16x16xf32>
    %154 = tpu.iota {dimensions = array<i32: 1>} : vector<16x16xi32>
    %c0_i32_92 = arith.constant 0 : i32
    %155 = vector.broadcast %c0_i32_92 : i32 to vector<16x16xi32>
    %156 = arith.cmpi sgt, %154, %155 : vector<16x16xi32>
    %c1_i32_93 = arith.constant 1 : i32
    %157 = tpu.dynamic_rotate %153 by %c1_i32_93 dim 1 : vector<16x16xf32>, i32 -> vector<16x16xf32>
    %cst_94 = arith.constant 0.000000e+00 : f32
    %158 = vector.broadcast %cst_94 : f32 to vector<16x16xf32>
    %159 = arith.select %156, %157, %158 : vector<16x16xi1>, vector<16x16xf32>
    %c15_i32 = arith.constant 15 : i32
    %160 = vector.broadcast %c15_i32 : i32 to vector<16x16xi32>
    %161 = arith.cmpi slt, %154, %160 : vector<16x16xi32>
    %c15_i32_95 = arith.constant 15 : i32
    %162 = tpu.dynamic_rotate %153 by %c15_i32_95 dim 1 : vector<16x16xf32>, i32 -> vector<16x16xf32>
    %cst_96 = arith.constant 0.000000e+00 : f32
    %163 = vector.broadcast %cst_96 : f32 to vector<16x16xf32>
    %164 = arith.select %161, %162, %163 : vector<16x16xi1>, vector<16x16xf32>
    %165 = tpu.concatenate %159, %153, %164 in 0 : vector<16x16xf32>, vector<16x16xf32>, vector<16x16xf32> -> vector<48x16xf32>
    %c0_97 = arith.constant 0 : index
    %c0_98 = arith.constant 0 : index
    %166 = vector.load %arg17[%c0_97, %c0_98] : memref<16x48xf32, #tpu.memory_space<vmem>>, vector<16x48xf32>
    %cst_99 = arith.constant dense<0.000000e+00> : vector<16x16xf32>
    %167 = tpu.matmul %166, %165, %cst_99 {dimension_numbers = #tpu.dot_dimension_numbers<[1], [0], [0], [1], [0, 0, 1, 1], [], []>} : vector<16x48xf32>, vector<48x16xf32>, vector<16x16xf32> -> vector<16x16xf32>
    %c0_100 = arith.constant 0 : index
    %c0_101 = arith.constant 0 : index
    %168 = vector.load %arg18[%c0_100, %c0_101] : memref<16x1xf32, #tpu.memory_space<vmem>>, vector<16x1xf32>
    %169 = vector.broadcast %168 : vector<16x1xf32> to vector<16x16xf32>
    %170 = arith.mulf %167, %169 : vector<16x16xf32>
    %c0_102 = arith.constant 0 : index
    %c0_103 = arith.constant 0 : index
    %171 = vector.load %arg19[%c0_102, %c0_103] : memref<16x1xf32, #tpu.memory_space<vmem>>, vector<16x1xf32>
    %172 = vector.broadcast %171 : vector<16x1xf32> to vector<16x16xf32>
    %173 = arith.addf %170, %172 : vector<16x16xf32>
    %cst_104 = arith.constant 0.000000e+00 : f32
    %cst_105 = arith.constant 1.500000e+01 : f32
    %174 = vector.broadcast %cst_104 : f32 to vector<16x16xf32>
    %175 = arith.maximumf %174, %173 : vector<16x16xf32>
    %176 = vector.broadcast %cst_105 : f32 to vector<16x16xf32>
    %177 = arith.minimumf %176, %175 : vector<16x16xf32>
    %178 = math.roundeven %177 : vector<16x16xf32>
    %c15_i32_106 = arith.constant 15 : i32
    %179 = tpu.dynamic_rotate %178 by %c15_i32_106 dim 1 : vector<16x16xf32>, i32 -> vector<16x16xf32>
    %180 = arith.maximumf %178, %179 : vector<16x16xf32>
    %c0_107 = arith.constant 0 : index
    %c0_108 = arith.constant 0 : index
    %181 = vector.load %arg28[%c0_107, %c0_108] : memref<16x8xf32, #tpu.memory_space<vmem>>, vector<16x8xf32>
    %cst_109 = arith.constant dense<0.000000e+00> : vector<16x8xf32>
    %182 = tpu.matmul %180, %181, %cst_109 {dimension_numbers = #tpu.dot_dimension_numbers<[1], [0], [0], [1], [0, 0, 1, 1], [], []>} : vector<16x16xf32>, vector<16x8xf32>, vector<16x8xf32> -> vector<16x8xf32>
    %183 = tpu.iota {dimensions = array<i32: 1>} : vector<16x8xi32>
    %c0_i32_110 = arith.constant 0 : i32
    %184 = vector.broadcast %c0_i32_110 : i32 to vector<16x8xi32>
    %185 = arith.cmpi sgt, %183, %184 : vector<16x8xi32>
    %c1_i32_111 = arith.constant 1 : i32
    %186 = tpu.dynamic_rotate %182 by %c1_i32_111 dim 1 : vector<16x8xf32>, i32 -> vector<16x8xf32>
    %cst_112 = arith.constant 0.000000e+00 : f32
    %187 = vector.broadcast %cst_112 : f32 to vector<16x8xf32>
    %188 = arith.select %185, %186, %187 : vector<16x8xi1>, vector<16x8xf32>
    %c7_i32 = arith.constant 7 : i32
    %189 = vector.broadcast %c7_i32 : i32 to vector<16x8xi32>
    %190 = arith.cmpi slt, %183, %189 : vector<16x8xi32>
    %c7_i32_113 = arith.constant 7 : i32
    %191 = tpu.dynamic_rotate %182 by %c7_i32_113 dim 1 : vector<16x8xf32>, i32 -> vector<16x8xf32>
    %cst_114 = arith.constant 0.000000e+00 : f32
    %192 = vector.broadcast %cst_114 : f32 to vector<16x8xf32>
    %193 = arith.select %190, %191, %192 : vector<16x8xi1>, vector<16x8xf32>
    %194 = tpu.concatenate %188, %182, %193 in 0 : vector<16x8xf32>, vector<16x8xf32>, vector<16x8xf32> -> vector<48x8xf32>
    %c0_115 = arith.constant 0 : index
    %c0_116 = arith.constant 0 : index
    %195 = vector.load %arg20[%c0_115, %c0_116] : memref<128x48xf32, #tpu.memory_space<vmem>>, vector<128x48xf32>
    %cst_117 = arith.constant dense<0.000000e+00> : vector<128x8xf32>
    %196 = tpu.matmul %195, %194, %cst_117 {dimension_numbers = #tpu.dot_dimension_numbers<[1], [0], [0], [1], [0, 0, 1, 1], [], []>} : vector<128x48xf32>, vector<48x8xf32>, vector<128x8xf32> -> vector<128x8xf32>
    %c0_118 = arith.constant 0 : index
    %c0_119 = arith.constant 0 : index
    %197 = vector.load %arg21[%c0_118, %c0_119] : memref<128x1xf32, #tpu.memory_space<vmem>>, vector<128x1xf32>
    %198 = vector.broadcast %197 : vector<128x1xf32> to vector<128x8xf32>
    %199 = arith.mulf %196, %198 : vector<128x8xf32>
    %c0_120 = arith.constant 0 : index
    %c0_121 = arith.constant 0 : index
    %200 = vector.load %arg22[%c0_120, %c0_121] : memref<128x1xf32, #tpu.memory_space<vmem>>, vector<128x1xf32>
    %201 = vector.broadcast %200 : vector<128x1xf32> to vector<128x8xf32>
    %202 = arith.addf %199, %201 : vector<128x8xf32>
    %cst_122 = arith.constant 0.000000e+00 : f32
    %cst_123 = arith.constant 1.500000e+01 : f32
    %203 = vector.broadcast %cst_122 : f32 to vector<128x8xf32>
    %204 = arith.maximumf %203, %202 : vector<128x8xf32>
    %205 = vector.broadcast %cst_123 : f32 to vector<128x8xf32>
    %206 = arith.minimumf %205, %204 : vector<128x8xf32>
    %207 = math.roundeven %206 : vector<128x8xf32>
    %c7_i32_124 = arith.constant 7 : i32
    %208 = tpu.dynamic_rotate %207 by %c7_i32_124 dim 1 : vector<128x8xf32>, i32 -> vector<128x8xf32>
    %209 = arith.maximumf %207, %208 : vector<128x8xf32>
    %c0_125 = arith.constant 0 : index
    %c0_126 = arith.constant 0 : index
    %210 = vector.load %arg29[%c0_125, %c0_126] : memref<8x4xf32, #tpu.memory_space<vmem>>, vector<8x4xf32>
    %cst_127 = arith.constant dense<0.000000e+00> : vector<128x4xf32>
    %211 = tpu.matmul %209, %210, %cst_127 {dimension_numbers = #tpu.dot_dimension_numbers<[1], [0], [0], [1], [0, 0, 1, 1], [], []>} : vector<128x8xf32>, vector<8x4xf32>, vector<128x4xf32> -> vector<128x4xf32>
    %212 = vector.extract_strided_slice %211 {offsets = [0, 0], sizes = [128, 1], strides = [1, 1]} : vector<128x4xf32> to vector<128x1xf32>
    %c0_128 = arith.constant 0 : index
    %c0_129 = arith.constant 0 : index
    %c0_130 = arith.constant 0 : index
    %213 = vector.load %arg30[%c0_128, %c0_129, %c0_130] : memref<4x128x64xf32, #tpu.memory_space<vmem>>, vector<1x128x64xf32>
    %214 = vector.shape_cast %213 : vector<1x128x64xf32> to vector<128x64xf32>
    %215 = vector.broadcast %212 : vector<128x1xf32> to vector<128x64xf32>
    %216 = arith.mulf %215, %214 : vector<128x64xf32>
    %cst_131 = arith.constant dense<0.000000e+00> : vector<64xf32>
    %217 = vector.multi_reduction <add>, %216, %cst_131 [0] : vector<128x64xf32> to vector<64xf32>
    %218 = vector.shape_cast %217 : vector<64xf32> to vector<1x64xf32>
    %219 = vector.extract_strided_slice %211 {offsets = [0, 1], sizes = [128, 1], strides = [1, 1]} : vector<128x4xf32> to vector<128x1xf32>
    %c1 = arith.constant 1 : index
    %c0_132 = arith.constant 0 : index
    %c0_133 = arith.constant 0 : index
    %220 = vector.load %arg30[%c1, %c0_132, %c0_133] : memref<4x128x64xf32, #tpu.memory_space<vmem>>, vector<1x128x64xf32>
    %221 = vector.shape_cast %220 : vector<1x128x64xf32> to vector<128x64xf32>
    %222 = vector.broadcast %219 : vector<128x1xf32> to vector<128x64xf32>
    %223 = arith.mulf %222, %221 : vector<128x64xf32>
    %cst_134 = arith.constant dense<0.000000e+00> : vector<64xf32>
    %224 = vector.multi_reduction <add>, %223, %cst_134 [0] : vector<128x64xf32> to vector<64xf32>
    %225 = vector.shape_cast %224 : vector<64xf32> to vector<1x64xf32>
    %226 = vector.extract_strided_slice %211 {offsets = [0, 2], sizes = [128, 1], strides = [1, 1]} : vector<128x4xf32> to vector<128x1xf32>
    %c2 = arith.constant 2 : index
    %c0_135 = arith.constant 0 : index
    %c0_136 = arith.constant 0 : index
    %227 = vector.load %arg30[%c2, %c0_135, %c0_136] : memref<4x128x64xf32, #tpu.memory_space<vmem>>, vector<1x128x64xf32>
    %228 = vector.shape_cast %227 : vector<1x128x64xf32> to vector<128x64xf32>
    %229 = vector.broadcast %226 : vector<128x1xf32> to vector<128x64xf32>
    %230 = arith.mulf %229, %228 : vector<128x64xf32>
    %cst_137 = arith.constant dense<0.000000e+00> : vector<64xf32>
    %231 = vector.multi_reduction <add>, %230, %cst_137 [0] : vector<128x64xf32> to vector<64xf32>
    %232 = vector.shape_cast %231 : vector<64xf32> to vector<1x64xf32>
    %233 = vector.extract_strided_slice %211 {offsets = [0, 3], sizes = [128, 1], strides = [1, 1]} : vector<128x4xf32> to vector<128x1xf32>
    %c3 = arith.constant 3 : index
    %c0_138 = arith.constant 0 : index
    %c0_139 = arith.constant 0 : index
    %234 = vector.load %arg30[%c3, %c0_138, %c0_139] : memref<4x128x64xf32, #tpu.memory_space<vmem>>, vector<1x128x64xf32>
    %235 = vector.shape_cast %234 : vector<1x128x64xf32> to vector<128x64xf32>
    %236 = vector.broadcast %233 : vector<128x1xf32> to vector<128x64xf32>
    %237 = arith.mulf %236, %235 : vector<128x64xf32>
    %cst_140 = arith.constant dense<0.000000e+00> : vector<64xf32>
    %238 = vector.multi_reduction <add>, %237, %cst_140 [0] : vector<128x64xf32> to vector<64xf32>
    %239 = vector.shape_cast %238 : vector<64xf32> to vector<1x64xf32>
    %240 = arith.addf %218, %225 : vector<1x64xf32>
    %241 = arith.addf %232, %239 : vector<1x64xf32>
    %242 = arith.addf %240, %241 : vector<1x64xf32>
    %c0_141 = arith.constant 0 : index
    %c0_142 = arith.constant 0 : index
    %243 = vector.load %arg31[%c0_141, %c0_142] : memref<1x64xf32, #tpu.memory_space<vmem>>, vector<1x64xf32>
    %244 = arith.mulf %242, %243 : vector<1x64xf32>
    %c0_143 = arith.constant 0 : index
    %c0_144 = arith.constant 0 : index
    %245 = vector.load %arg32[%c0_143, %c0_144] : memref<1x64xf32, #tpu.memory_space<vmem>>, vector<1x64xf32>
    %246 = arith.addf %244, %245 : vector<1x64xf32>
    %cst_145 = arith.constant 0.000000e+00 : f32
    %cst_146 = arith.constant 1.500000e+01 : f32
    %247 = vector.broadcast %cst_145 : f32 to vector<1x64xf32>
    %248 = arith.maximumf %247, %246 : vector<1x64xf32>
    %249 = vector.broadcast %cst_146 : f32 to vector<1x64xf32>
    %250 = arith.minimumf %249, %248 : vector<1x64xf32>
    %251 = math.roundeven %250 : vector<1x64xf32>
    %c0_147 = arith.constant 0 : index
    %c0_148 = arith.constant 0 : index
    %252 = vector.load %arg33[%c0_147, %c0_148] : memref<64x32xf32, #tpu.memory_space<vmem>>, vector<64x32xf32>
    %cst_149 = arith.constant dense<0.000000e+00> : vector<1x32xf32>
    %253 = tpu.matmul %251, %252, %cst_149 {dimension_numbers = #tpu.dot_dimension_numbers<[1], [0], [0], [1], [0, 0, 1, 1], [], []>} : vector<1x64xf32>, vector<64x32xf32>, vector<1x32xf32> -> vector<1x32xf32>
    %c0_150 = arith.constant 0 : index
    %c0_151 = arith.constant 0 : index
    %254 = vector.load %arg34[%c0_150, %c0_151] : memref<1x32xf32, #tpu.memory_space<vmem>>, vector<1x32xf32>
    %255 = arith.mulf %253, %254 : vector<1x32xf32>
    %c0_152 = arith.constant 0 : index
    %c0_153 = arith.constant 0 : index
    %256 = vector.load %arg35[%c0_152, %c0_153] : memref<1x32xf32, #tpu.memory_space<vmem>>, vector<1x32xf32>
    %257 = arith.addf %255, %256 : vector<1x32xf32>
    %cst_154 = arith.constant 0.000000e+00 : f32
    %cst_155 = arith.constant 1.500000e+01 : f32
    %258 = vector.broadcast %cst_154 : f32 to vector<1x32xf32>
    %259 = arith.maximumf %258, %257 : vector<1x32xf32>
    %260 = vector.broadcast %cst_155 : f32 to vector<1x32xf32>
    %261 = arith.minimumf %260, %259 : vector<1x32xf32>
    %262 = math.roundeven %261 : vector<1x32xf32>
    %c0_156 = arith.constant 0 : index
    %c0_157 = arith.constant 0 : index
    %263 = vector.load %arg36[%c0_156, %c0_157] : memref<32x24xf32, #tpu.memory_space<vmem>>, vector<32x24xf32>
    %cst_158 = arith.constant dense<0.000000e+00> : vector<1x24xf32>
    %264 = tpu.matmul %262, %263, %cst_158 {dimension_numbers = #tpu.dot_dimension_numbers<[1], [0], [0], [1], [0, 0, 1, 1], [], []>} : vector<1x32xf32>, vector<32x24xf32>, vector<1x24xf32> -> vector<1x24xf32>
    %c0_159 = arith.constant 0 : index
    %c0_160 = arith.constant 0 : index
    %265 = vector.load %arg37[%c0_159, %c0_160] : memref<1x24xf32, #tpu.memory_space<vmem>>, vector<1x24xf32>
    %266 = arith.addf %264, %265 : vector<1x24xf32>
    %cst_161 = arith.constant 0.000000e+00 : f32
    %cst_162 = arith.constant 1.500000e+01 : f32
    %267 = vector.broadcast %cst_161 : f32 to vector<1x24xf32>
    %268 = arith.maximumf %267, %266 : vector<1x24xf32>
    %269 = vector.broadcast %cst_162 : f32 to vector<1x24xf32>
    %270 = arith.minimumf %269, %268 : vector<1x24xf32>
    %271 = math.roundeven %270 : vector<1x24xf32>
    %cst_163 = arith.constant 0.13333334 : f32
    %272 = vector.broadcast %cst_163 : f32 to vector<1x24xf32>
    %273 = arith.mulf %271, %272 : vector<1x24xf32>
    %cst_164 = arith.constant 3.300000e-01 : f32
    %274 = vector.broadcast %cst_164 : f32 to vector<1x24xf32>
    %275 = arith.addf %273, %274 : vector<1x24xf32>
    %c0_165 = arith.constant 0 : index
    %c0_166 = arith.constant 0 : index
    %c0_167 = arith.constant 0 : index
    %276 = vector.load %arg38[%c0_165, %c0_166, %c0_167] : memref<1x1x24xf32, #tpu.memory_space<vmem>>, vector<1x1x24xf32>
    %277 = vector.shape_cast %276 : vector<1x1x24xf32> to vector<1x24xf32>
    %278 = vector.shape_cast %275 : vector<1x24xf32> to vector<1x1x24xf32>
    tpu.vector_store %arg38[%c0_165, %c0_166, %c0_167], %278 {strides = array<i32>} : memref<1x1x24xf32, #tpu.memory_space<vmem>>, vector<1x1x24xf32>,
    return
  }
  func.func @transform_0(%arg0: i32) -> (i32, i32, i32) {
    %c0_i32 = arith.constant 0 : i32
    %c0_i32_0 = arith.constant 0 : i32
    %c0_i32_1 = arith.constant 0 : i32
    return %arg0, %c0_i32, %c0_i32_0 : i32, i32, i32
  }
  func.func @transform_1(%arg0: i32) -> (i32, i32) {
    %c0_i32 = arith.constant 0 : i32
    %c0_i32_0 = arith.constant 0 : i32
    %c0_i32_1 = arith.constant 0 : i32
    return %c0_i32, %c0_i32_0 : i32, i32
  }
  func.func @transform_2(%arg0: i32) -> (i32, i32) {
    %c0_i32 = arith.constant 0 : i32
    %c0_i32_0 = arith.constant 0 : i32
    %c0_i32_1 = arith.constant 0 : i32
    return %c0_i32, %c0_i32_0 : i32, i32
  }
  func.func @transform_3(%arg0: i32) -> (i32, i32) {
    %c0_i32 = arith.constant 0 : i32
    %c0_i32_0 = arith.constant 0 : i32
    %c0_i32_1 = arith.constant 0 : i32
    return %c0_i32, %c0_i32_0 : i32, i32
  }
  func.func @transform_4(%arg0: i32) -> (i32, i32) {
    %c0_i32 = arith.constant 0 : i32
    %c0_i32_0 = arith.constant 0 : i32
    %c0_i32_1 = arith.constant 0 : i32
    return %c0_i32, %c0_i32_0 : i32, i32
  }
  func.func @transform_5(%arg0: i32) -> (i32, i32) {
    %c0_i32 = arith.constant 0 : i32
    %c0_i32_0 = arith.constant 0 : i32
    %c0_i32_1 = arith.constant 0 : i32
    return %c0_i32, %c0_i32_0 : i32, i32
  }
  func.func @transform_6(%arg0: i32) -> (i32, i32) {
    %c0_i32 = arith.constant 0 : i32
    %c0_i32_0 = arith.constant 0 : i32
    %c0_i32_1 = arith.constant 0 : i32
    return %c0_i32, %c0_i32_0 : i32, i32
  }
  func.func @transform_7(%arg0: i32) -> (i32, i32) {
    %c0_i32 = arith.constant 0 : i32
    %c0_i32_0 = arith.constant 0 : i32
    %c0_i32_1 = arith.constant 0 : i32
    return %c0_i32, %c0_i32_0 : i32, i32
  }
  func.func @transform_8(%arg0: i32) -> (i32, i32) {
    %c0_i32 = arith.constant 0 : i32
    %c0_i32_0 = arith.constant 0 : i32
    %c0_i32_1 = arith.constant 0 : i32
    return %c0_i32, %c0_i32_0 : i32, i32
  }
  func.func @transform_9(%arg0: i32) -> (i32, i32) {
    %c0_i32 = arith.constant 0 : i32
    %c0_i32_0 = arith.constant 0 : i32
    %c0_i32_1 = arith.constant 0 : i32
    return %c0_i32, %c0_i32_0 : i32, i32
  }
  func.func @transform_10(%arg0: i32) -> (i32, i32) {
    %c0_i32 = arith.constant 0 : i32
    %c0_i32_0 = arith.constant 0 : i32
    %c0_i32_1 = arith.constant 0 : i32
    return %c0_i32, %c0_i32_0 : i32, i32
  }
  func.func @transform_11(%arg0: i32) -> (i32, i32) {
    %c0_i32 = arith.constant 0 : i32
    %c0_i32_0 = arith.constant 0 : i32
    %c0_i32_1 = arith.constant 0 : i32
    return %c0_i32, %c0_i32_0 : i32, i32
  }
  func.func @transform_12(%arg0: i32) -> (i32, i32) {
    %c0_i32 = arith.constant 0 : i32
    %c0_i32_0 = arith.constant 0 : i32
    %c0_i32_1 = arith.constant 0 : i32
    return %c0_i32, %c0_i32_0 : i32, i32
  }
  func.func @transform_13(%arg0: i32) -> (i32, i32) {
    %c0_i32 = arith.constant 0 : i32
    %c0_i32_0 = arith.constant 0 : i32
    %c0_i32_1 = arith.constant 0 : i32
    return %c0_i32, %c0_i32_0 : i32, i32
  }
  func.func @transform_14(%arg0: i32) -> (i32, i32) {
    %c0_i32 = arith.constant 0 : i32
    %c0_i32_0 = arith.constant 0 : i32
    %c0_i32_1 = arith.constant 0 : i32
    return %c0_i32, %c0_i32_0 : i32, i32
  }
  func.func @transform_15(%arg0: i32) -> (i32, i32) {
    %c0_i32 = arith.constant 0 : i32
    %c0_i32_0 = arith.constant 0 : i32
    %c0_i32_1 = arith.constant 0 : i32
    return %c0_i32, %c0_i32_0 : i32, i32
  }
  func.func @transform_16(%arg0: i32) -> (i32, i32) {
    %c0_i32 = arith.constant 0 : i32
    %c0_i32_0 = arith.constant 0 : i32
    %c0_i32_1 = arith.constant 0 : i32
    return %c0_i32, %c0_i32_0 : i32, i32
  }
  func.func @transform_17(%arg0: i32) -> (i32, i32) {
    %c0_i32 = arith.constant 0 : i32
    %c0_i32_0 = arith.constant 0 : i32
    %c0_i32_1 = arith.constant 0 : i32
    return %c0_i32, %c0_i32_0 : i32, i32
  }
  func.func @transform_18(%arg0: i32) -> (i32, i32) {
    %c0_i32 = arith.constant 0 : i32
    %c0_i32_0 = arith.constant 0 : i32
    %c0_i32_1 = arith.constant 0 : i32
    return %c0_i32, %c0_i32_0 : i32, i32
  }
  func.func @transform_19(%arg0: i32) -> (i32, i32) {
    %c0_i32 = arith.constant 0 : i32
    %c0_i32_0 = arith.constant 0 : i32
    %c0_i32_1 = arith.constant 0 : i32
    return %c0_i32, %c0_i32_0 : i32, i32
  }
  func.func @transform_20(%arg0: i32) -> (i32, i32) {
    %c0_i32 = arith.constant 0 : i32
    %c0_i32_0 = arith.constant 0 : i32
    %c0_i32_1 = arith.constant 0 : i32
    return %c0_i32, %c0_i32_0 : i32, i32
  }
  func.func @transform_21(%arg0: i32) -> (i32, i32) {
    %c0_i32 = arith.constant 0 : i32
    %c0_i32_0 = arith.constant 0 : i32
    %c0_i32_1 = arith.constant 0 : i32
    return %c0_i32, %c0_i32_0 : i32, i32
  }
  func.func @transform_22(%arg0: i32) -> (i32, i32) {
    %c0_i32 = arith.constant 0 : i32
    %c0_i32_0 = arith.constant 0 : i32
    %c0_i32_1 = arith.constant 0 : i32
    return %c0_i32, %c0_i32_0 : i32, i32
  }
  func.func @transform_23(%arg0: i32) -> (i32, i32) {
    %c0_i32 = arith.constant 0 : i32
    %c0_i32_0 = arith.constant 0 : i32
    %c0_i32_1 = arith.constant 0 : i32
    return %c0_i32, %c0_i32_0 : i32, i32
  }
  func.func @transform_24(%arg0: i32) -> (i32, i32) {
    %c0_i32 = arith.constant 0 : i32
    %c0_i32_0 = arith.constant 0 : i32
    %c0_i32_1 = arith.constant 0 : i32
    return %c0_i32, %c0_i32_0 : i32, i32
  }
  func.func @transform_25(%arg0: i32) -> (i32, i32) {
    %c0_i32 = arith.constant 0 : i32
    %c0_i32_0 = arith.constant 0 : i32
    %c0_i32_1 = arith.constant 0 : i32
    return %c0_i32, %c0_i32_0 : i32, i32
  }
  func.func @transform_26(%arg0: i32) -> (i32, i32) {
    %c0_i32 = arith.constant 0 : i32
    %c0_i32_0 = arith.constant 0 : i32
    %c0_i32_1 = arith.constant 0 : i32
    return %c0_i32, %c0_i32_0 : i32, i32
  }
  func.func @transform_27(%arg0: i32) -> (i32, i32) {
    %c0_i32 = arith.constant 0 : i32
    %c0_i32_0 = arith.constant 0 : i32
    %c0_i32_1 = arith.constant 0 : i32
    return %c0_i32, %c0_i32_0 : i32, i32
  }
  func.func @transform_28(%arg0: i32) -> (i32, i32) {
    %c0_i32 = arith.constant 0 : i32
    %c0_i32_0 = arith.constant 0 : i32
    %c0_i32_1 = arith.constant 0 : i32
    return %c0_i32, %c0_i32_0 : i32, i32
  }
  func.func @transform_29(%arg0: i32) -> (i32, i32, i32) {
    %c0_i32 = arith.constant 0 : i32
    %c0_i32_0 = arith.constant 0 : i32
    %c0_i32_1 = arith.constant 0 : i32
    %c0_i32_2 = arith.constant 0 : i32
    return %c0_i32, %c0_i32_0, %c0_i32_1 : i32, i32, i32
  }
  func.func @transform_30(%arg0: i32) -> (i32, i32) {
    %c0_i32 = arith.constant 0 : i32
    %c0_i32_0 = arith.constant 0 : i32
    %c0_i32_1 = arith.constant 0 : i32
    return %c0_i32, %c0_i32_0 : i32, i32
  }
  func.func @transform_31(%arg0: i32) -> (i32, i32) {
    %c0_i32 = arith.constant 0 : i32
    %c0_i32_0 = arith.constant 0 : i32
    %c0_i32_1 = arith.constant 0 : i32
    return %c0_i32, %c0_i32_0 : i32, i32
  }
  func.func @transform_32(%arg0: i32) -> (i32, i32) {
    %c0_i32 = arith.constant 0 : i32
    %c0_i32_0 = arith.constant 0 : i32
    %c0_i32_1 = arith.constant 0 : i32
    return %c0_i32, %c0_i32_0 : i32, i32
  }
  func.func @transform_33(%arg0: i32) -> (i32, i32) {
    %c0_i32 = arith.constant 0 : i32
    %c0_i32_0 = arith.constant 0 : i32
    %c0_i32_1 = arith.constant 0 : i32
    return %c0_i32, %c0_i32_0 : i32, i32
  }
  func.func @transform_34(%arg0: i32) -> (i32, i32) {
    %c0_i32 = arith.constant 0 : i32
    %c0_i32_0 = arith.constant 0 : i32
    %c0_i32_1 = arith.constant 0 : i32
    return %c0_i32, %c0_i32_0 : i32, i32
  }
  func.func @transform_35(%arg0: i32) -> (i32, i32) {
    %c0_i32 = arith.constant 0 : i32
    %c0_i32_0 = arith.constant 0 : i32
    %c0_i32_1 = arith.constant 0 : i32
    return %c0_i32, %c0_i32_0 : i32, i32
  }
  func.func @transform_36(%arg0: i32) -> (i32, i32) {
    %c0_i32 = arith.constant 0 : i32
    %c0_i32_0 = arith.constant 0 : i32
    %c0_i32_1 = arith.constant 0 : i32
    return %c0_i32, %c0_i32_0 : i32, i32
  }
  func.func @transform_37(%arg0: i32) -> (i32, i32, i32) {
    %c0_i32 = arith.constant 0 : i32
    %c0_i32_0 = arith.constant 0 : i32
    %c0_i32_1 = arith.constant 0 : i32
    return %arg0, %c0_i32, %c0_i32_0 : i32, i32, i32
  }
}

</mosaic_0001>

<llo_original>
// kernel: tpu_custom_call.1
$region0: #{tpu_custom_call.1}
  #allocation0 [shape = 'u32[]', space=smem, size = 0x4, offset = 0x4, fixed_abs, tag = 'smem constant byte address 0x4 - core index']
  #allocation1 [shape = 'u32[144,128]{1,0:T(1,128)}', space=vmem, size = 0x12000, scoped, tag = 'internal scratch']
  %s0 = inlined_call_operand.smem [shape: u32[38], index: -1, kind: input, shape index: {}]
  %s1 = sld [smem:[%s0]]
  %s2 = scalar_lea.smem %s0, 1
  %s3 = sld [smem:[%s2]]
  %s4 = scalar_lea.smem %s0, 2
  %s5 = sld [smem:[%s4]]
  %s6 = scalar_lea.smem %s0, 3
  %s7 = sld [smem:[%s6]]
  %s8 = scalar_lea.smem %s0, 4
  %s9 = sld [smem:[%s8]]
  %s10 = scalar_lea.smem %s0, 5
  %s11 = sld [smem:[%s10]]
  %s12 = scalar_lea.smem %s0, 6
  %s13 = sld [smem:[%s12]]
  %s14 = scalar_lea.smem %s0, 7
  %s15 = sld [smem:[%s14]]
  %s16 = scalar_lea.smem %s0, 8
  %s17 = sld [smem:[%s16]]
  %s18 = scalar_lea.smem %s0, 9
  %s19 = sld [smem:[%s18]]
  %s20 = scalar_lea.smem %s0, 10
  %s21 = sld [smem:[%s20]]
  %s22 = scalar_lea.smem %s0, 11
  %s23 = sld [smem:[%s22]]
  %s24 = scalar_lea.smem %s0, 12
  %s25 = sld [smem:[%s24]]
  %s26 = scalar_lea.smem %s0, 13
  %s27 = sld [smem:[%s26]]
  %s28 = scalar_lea.smem %s0, 14
  %s29 = sld [smem:[%s28]]
  %s30 = scalar_lea.smem %s0, 15
  %s31 = sld [smem:[%s30]]
  %s32 = scalar_lea.smem %s0, 16
  %s33 = sld [smem:[%s32]]
  %s34 = scalar_lea.smem %s0, 17
  %s35 = sld [smem:[%s34]]
  %s36 = scalar_lea.smem %s0, 18
  %s37 = sld [smem:[%s36]]
  %s38 = scalar_lea.smem %s0, 19
  %s39 = sld [smem:[%s38]]
  %s40 = scalar_lea.smem %s0, 20
  %s41 = sld [smem:[%s40]]
  %s42 = scalar_lea.smem %s0, 21
  %s43 = sld [smem:[%s42]]
  %s44 = scalar_lea.smem %s0, 22
  %s45 = sld [smem:[%s44]]
  %s46 = scalar_lea.smem %s0, 23
  %s47 = sld [smem:[%s46]]
  %s48 = scalar_lea.smem %s0, 24
  %s49 = sld [smem:[%s48]]
  %s50 = scalar_lea.smem %s0, 25
  %s51 = sld [smem:[%s50]]
  %s52 = scalar_lea.smem %s0, 26
  %s53 = sld [smem:[%s52]]
  %s54 = scalar_lea.smem %s0, 27
  %s55 = sld [smem:[%s54]]
  %s56 = scalar_lea.smem %s0, 28
  %s57 = sld [smem:[%s56]]
  %s58 = scalar_lea.smem %s0, 29
  %s59 = sld [smem:[%s58]]
  %s60 = scalar_lea.smem %s0, 30
  %s61 = sld [smem:[%s60]]
  %s62 = scalar_lea.smem %s0, 31
  %s63 = sld [smem:[%s62]]
  %s64 = scalar_lea.smem %s0, 32
  %s65 = sld [smem:[%s64]]
  %s66 = scalar_lea.smem %s0, 33
  %s67 = sld [smem:[%s66]]
  %s68 = scalar_lea.smem %s0, 34
  %s69 = sld [smem:[%s68]]
  %s70 = scalar_lea.smem %s0, 35
  %s71 = sld [smem:[%s70]]
  %s72 = scalar_lea.smem %s0, 36
  %s73 = sld [smem:[%s72]]
  %s74 = scalar_lea.smem %s0, 37
  %s75 = sld [smem:[%s74]]
  %s76 = sld [smem:[#allocation0]]
  $region181: #{tpu_custom_call.1} parent=0
    _
  %s78 = ssub.s32 1, %s76
  %s79 = scalar_select 0, %s78, %s76
  $region1: #{tpu_custom_call.1} parent=0
    #allocation2 [shape = 'u8[1024]{0}', space=vmem, size = 0x400, scoped, tag = 'output window, operand 0']
    #allocation3 [shape = 's32[2]{0}', space=sflag, size = 0x8, scoped, tag = 'scoped memory for tpu_custom_call.1']
    %80 = vsyncpa [#allocation3], 0
    %s81 = scalar_lea.sflag [#allocation3], 1
    %82 = vsyncpa %s81, 0
    loop: start=0, step=1, limit=4
    $region2: #{tpu_custom_call.1} parent=1 // loop_pre_header
      _
    $region3: #{tpu_custom_call.1} parent=1 // loop_header
      %s84 = sphi 0, %s88
      %p85 = scmp.ge.s32.totalorder %s84, 4
      %s94 = sphi 0, %s96
      %s97 = sphi 0, %s94
      %s98 = sphi 0, %s97
      %s114 = sphi 0, %s98
      %s118 = sphi 0, %s118
      %s120 = sphi 0, %s118
      %s121 = sphi 0, %s120
      %s135 = sphi 0, %s121
      %s139 = sphi 0, %s139
      %s141 = sphi 0, %s139
      %s142 = sphi 0, %s141
      %s156 = sphi 0, %s142
      %s160 = sphi 0, %s160
      %s162 = sphi 0, %s160
      %s163 = sphi 0, %s162
      %s177 = sphi 0, %s163
      %s181 = sphi 0, %s181
      %s183 = sphi 0, %s181
      %s184 = sphi 0, %s183
      %s198 = sphi 0, %s184
      %s202 = sphi 0, %s202
      %s204 = sphi 0, %s202
      %s205 = sphi 0, %s204
      %s219 = sphi 0, %s205
      %s223 = sphi 0, %s223
      %s225 = sphi 0, %s223
      %s226 = sphi 0, %s225
      %s240 = sphi 0, %s226
      %s244 = sphi 0, %s244
      %s246 = sphi 0, %s244
      %s247 = sphi 0, %s246
      %s261 = sphi 0, %s247
      %s265 = sphi 0, %s265
      %s267 = sphi 0, %s265
      %s268 = sphi 0, %s267
      %s282 = sphi 0, %s268
      %s286 = sphi 0, %s286
      %s288 = sphi 0, %s286
      %s289 = sphi 0, %s288
      %s303 = sphi 0, %s289
      %s307 = sphi 0, %s307
      %s309 = sphi 0, %s307
      %s310 = sphi 0, %s309
      %s324 = sphi 0, %s310
      %s328 = sphi 0, %s328
      %s330 = sphi 0, %s328
      %s331 = sphi 0, %s330
      %s345 = sphi 0, %s331
      %s349 = sphi 0, %s349
      %s351 = sphi 0, %s349
      %s352 = sphi 0, %s351
      %s366 = sphi 0, %s352
      %s370 = sphi 0, %s370
      %s372 = sphi 0, %s370
      %s373 = sphi 0, %s372
      %s387 = sphi 0, %s373
      %s391 = sphi 0, %s391
      %s393 = sphi 0, %s391
      %s394 = sphi 0, %s393
      %s408 = sphi 0, %s394
      %s412 = sphi 0, %s412
      %s414 = sphi 0, %s412
      %s415 = sphi 0, %s414
      %s429 = sphi 0, %s415
      %s433 = sphi 0, %s433
      %s435 = sphi 0, %s433
      %s436 = sphi 0, %s435
      %s450 = sphi 0, %s436
      %s454 = sphi 0, %s454
      %s456 = sphi 0, %s454
      %s457 = sphi 0, %s456
      %s471 = sphi 0, %s457
      %s475 = sphi 0, %s475
      %s477 = sphi 0, %s475
      %s478 = sphi 0, %s477
      %s492 = sphi 0, %s478
      %s496 = sphi 0, %s496
      %s498 = sphi 0, %s496
      %s499 = sphi 0, %s498
      %s513 = sphi 0, %s499
      %s517 = sphi 0, %s517
      %s519 = sphi 0, %s517
      %s520 = sphi 0, %s519
      %s534 = sphi 0, %s520
      %s538 = sphi 0, %s538
      %s540 = sphi 0, %s538
      %s541 = sphi 0, %s540
      %s555 = sphi 0, %s541
      %s559 = sphi 0, %s559
      %s561 = sphi 0, %s559
      %s562 = sphi 0, %s561
      %s576 = sphi 0, %s562
      %s580 = sphi 0, %s580
      %s582 = sphi 0, %s580
      %s583 = sphi 0, %s582
      %s597 = sphi 0, %s583
      %s601 = sphi 0, %s601
      %s603 = sphi 0, %s601
      %s604 = sphi 0, %s603
      %s618 = sphi 0, %s604
      %s622 = sphi 0, %s622
      %s624 = sphi 0, %s622
      %s625 = sphi 0, %s624
      %s639 = sphi 0, %s625
      %s643 = sphi 0, %s643
      %s645 = sphi 0, %s643
      %s646 = sphi 0, %s645
      %s660 = sphi 0, %s646
      %s664 = sphi 0, %s664
      %s666 = sphi 0, %s664
      %s667 = sphi 0, %s666
      %s681 = sphi 0, %s667
      %s685 = sphi 0, %s685
      %s687 = sphi 0, %s685
      %s688 = sphi 0, %s687
      %s702 = sphi 0, %s688
      %s706 = sphi 0, %s706
      %s708 = sphi 0, %s706
      %s709 = sphi 0, %s708
      %s723 = sphi 0, %s709
      %s727 = sphi 0, %s727
      %s729 = sphi 0, %s727
      %s730 = sphi 0, %s729
      %s744 = sphi 0, %s730
      %s748 = sphi 0, %s748
      %s750 = sphi 0, %s748
      %s751 = sphi 0, %s750
      %s765 = sphi 0, %s751
      %s769 = sphi 0, %s769
      %s771 = sphi 0, %s769
      %s772 = sphi 0, %s771
      %s786 = sphi 0, %s772
      %s790 = sphi 0, %s790
      %s792 = sphi 0, %s790
      %s793 = sphi 0, %s792
      %s807 = sphi 0, %s793
      %s811 = sphi 0, %s811
      %s813 = sphi 0, %s811
      %s814 = sphi 0, %s813
      %s828 = sphi 0, %s814
      %s832 = sphi 0, %s832
      %s834 = sphi 0, %s832
      %s835 = sphi 0, %s834
      %s849 = sphi 0, %s835
      %s853 = sphi 0, %s853
      %s855 = sphi 0, %s853
      %s856 = sphi 0, %s855
      %s870 = sphi 0, %s856
      %s876 = sphi 0, %s878
      %s879 = sphi 0, %s876
      %s880 = sphi 0, %s879
      %s896 = sphi 0, %s880
    $region4: #{tpu_custom_call.1} parent=1 // loop_header_branch
      %87 = sbr.rel (%p85) target = $region8
    $region5: #{tpu_custom_call.1} parent=1 // loop_body
      %s89 = ssub.s32 %s84, 1
      %s90 = ssub.s32 %s84, 2
      %s91 = sadd.s32 %s84, 1
      %s92 = ssub.s32 %s84, %s91
      %p93 = scmp.eq.s32.totalorder %s92, 0
      %s95 = sadd.s32 %s94, 1
      %s96 = scalar_select %p93, %s94, %s95
      %p99 = pneg %p93
      %p100 = scmp.eq.s32.totalorder %s84, 1
      %p101 = por %p99, %p100
      %p102 = scmp.ne.s32.totalorder %s94, %s97
      %p103 = scmp.eq.s32.totalorder %s84, 0
      %p104 = por %p102, %p103
      %p105 = scmp.ne.s32.totalorder %s94, %s97
      %p106 = scmp.eq.s32.totalorder %s89, 1
      %p107 = por %p105, %p106
      %p108 = scmp.ne.s32.totalorder %s97, %s98
      %p109 = scmp.eq.s32.totalorder %s89, 0
      %p110 = por %p108, %p109
      %p111 = scmp.ne.s32.totalorder %s97, %s98
      %p112 = scmp.eq.s32.totalorder %s90, 1
      %p113 = por %p111, %p112
      %p115 = scmp.ne.s32.totalorder %s98, %s114
      %p116 = scmp.eq.s32.totalorder %s90, 0
      %p117 = por %p115, %p116
      %s119 = sadd.s32 %s118, 1
      %p122 = scmp.eq.s32.totalorder %s84, 1
      %p123 = scmp.ne.s32.totalorder %s118, %s120
      %p124 = scmp.eq.s32.totalorder %s84, 0
      %p125 = por %p123, %p124
      %p126 = scmp.ne.s32.totalorder %s118, %s120
      %p127 = scmp.eq.s32.totalorder %s89, 1
      %p128 = por %p126, %p127
      %p129 = scmp.ne.s32.totalorder %s120, %s121
      %p130 = scmp.eq.s32.totalorder %s89, 0
      %p131 = por %p129, %p130
      %p132 = scmp.ne.s32.totalorder %s120, %s121
      %p133 = scmp.eq.s32.totalorder %s90, 1
      %p134 = por %p132, %p133
      %p136 = scmp.ne.s32.totalorder %s121, %s135
      %p137 = scmp.eq.s32.totalorder %s90, 0
      %p138 = por %p136, %p137
      %s140 = sadd.s32 %s139, 1
      %p143 = scmp.eq.s32.totalorder %s84, 1
      %p144 = scmp.ne.s32.totalorder %s139, %s141
      %p145 = scmp.eq.s32.totalorder %s84, 0
      %p146 = por %p144, %p145
      %p147 = scmp.ne.s32.totalorder %s139, %s141
      %p148 = scmp.eq.s32.totalorder %s89, 1
      %p149 = por %p147, %p148
      %p150 = scmp.ne.s32.totalorder %s141, %s142
      %p151 = scmp.eq.s32.totalorder %s89, 0
      %p152 = por %p150, %p151
      %p153 = scmp.ne.s32.totalorder %s141, %s142
      %p154 = scmp.eq.s32.totalorder %s90, 1
      %p155 = por %p153, %p154
      %p157 = scmp.ne.s32.totalorder %s142, %s156
      %p158 = scmp.eq.s32.totalorder %s90, 0
      %p159 = por %p157, %p158
      %s161 = sadd.s32 %s160, 1
      %p164 = scmp.eq.s32.totalorder %s84, 1
      %p165 = scmp.ne.s32.totalorder %s160, %s162
      %p166 = scmp.eq.s32.totalorder %s84, 0
      %p167 = por %p165, %p166
      %p168 = scmp.ne.s32.totalorder %s160, %s162
      %p169 = scmp.eq.s32.totalorder %s89, 1
      %p170 = por %p168, %p169
      %p171 = scmp.ne.s32.totalorder %s162, %s163
      %p172 = scmp.eq.s32.totalorder %s89, 0
      %p173 = por %p171, %p172
      %p174 = scmp.ne.s32.totalorder %s162, %s163
      %p175 = scmp.eq.s32.totalorder %s90, 1
      %p176 = por %p174, %p175
      %p178 = scmp.ne.s32.totalorder %s163, %s177
      %p179 = scmp.eq.s32.totalorder %s90, 0
      %p180 = por %p178, %p179
      %s182 = sadd.s32 %s181, 1
      %p185 = scmp.eq.s32.totalorder %s84, 1
      %p186 = scmp.ne.s32.totalorder %s181, %s183
      %p187 = scmp.eq.s32.totalorder %s84, 0
      %p188 = por %p186, %p187
      %p189 = scmp.ne.s32.totalorder %s181, %s183
      %p190 = scmp.eq.s32.totalorder %s89, 1
      %p191 = por %p189, %p190
      %p192 = scmp.ne.s32.totalorder %s183, %s184
      %p193 = scmp.eq.s32.totalorder %s89, 0
      %p194 = por %p192, %p193
      %p195 = scmp.ne.s32.totalorder %s183, %s184
      %p196 = scmp.eq.s32.totalorder %s90, 1
      %p197 = por %p195, %p196
      %p199 = scmp.ne.s32.totalorder %s184, %s198
      %p200 = scmp.eq.s32.totalorder %s90, 0
      %p201 = por %p199, %p200
      %s203 = sadd.s32 %s202, 1
      %p206 = scmp.eq.s32.totalorder %s84, 1
      %p207 = scmp.ne.s32.totalorder %s202, %s204
      %p208 = scmp.eq.s32.totalorder %s84, 0
      %p209 = por %p207, %p208
      %p210 = scmp.ne.s32.totalorder %s202, %s204
      %p211 = scmp.eq.s32.totalorder %s89, 1
      %p212 = por %p210, %p211
      %p213 = scmp.ne.s32.totalorder %s204, %s205
      %p214 = scmp.eq.s32.totalorder %s89, 0
      %p215 = por %p213, %p214
      %p216 = scmp.ne.s32.totalorder %s204, %s205
      %p217 = scmp.eq.s32.totalorder %s90, 1
      %p218 = por %p216, %p217
      %p220 = scmp.ne.s32.totalorder %s205, %s219
      %p221 = scmp.eq.s32.totalorder %s90, 0
      %p222 = por %p220, %p221
      %s224 = sadd.s32 %s223, 1
      %p227 = scmp.eq.s32.totalorder %s84, 1
      %p228 = scmp.ne.s32.totalorder %s223, %s225
      %p229 = scmp.eq.s32.totalorder %s84, 0
      %p230 = por %p228, %p229
      %p231 = scmp.ne.s32.totalorder %s223, %s225
      %p232 = scmp.eq.s32.totalorder %s89, 1
      %p233 = por %p231, %p232
      %p234 = scmp.ne.s32.totalorder %s225, %s226
      %p235 = scmp.eq.s32.totalorder %s89, 0
      %p236 = por %p234, %p235
      %p237 = scmp.ne.s32.totalorder %s225, %s226
      %p238 = scmp.eq.s32.totalorder %s90, 1
      %p239 = por %p237, %p238
      %p241 = scmp.ne.s32.totalorder %s226, %s240
      %p242 = scmp.eq.s32.totalorder %s90, 0
      %p243 = por %p241, %p242
      %s245 = sadd.s32 %s244, 1
      %p248 = scmp.eq.s32.totalorder %s84, 1
      %p249 = scmp.ne.s32.totalorder %s244, %s246
      %p250 = scmp.eq.s32.totalorder %s84, 0
      %p251 = por %p249, %p250
      %p252 = scmp.ne.s32.totalorder %s244, %s246
      %p253 = scmp.eq.s32.totalorder %s89, 1
      %p254 = por %p252, %p253
      %p255 = scmp.ne.s32.totalorder %s246, %s247
      %p256 = scmp.eq.s32.totalorder %s89, 0
      %p257 = por %p255, %p256
      %p258 = scmp.ne.s32.totalorder %s246, %s247
      %p259 = scmp.eq.s32.totalorder %s90, 1
      %p260 = por %p258, %p259
      %p262 = scmp.ne.s32.totalorder %s247, %s261
      %p263 = scmp.eq.s32.totalorder %s90, 0
      %p264 = por %p262, %p263
      %s266 = sadd.s32 %s265, 1
      %p269 = scmp.eq.s32.totalorder %s84, 1
      %p270 = scmp.ne.s32.totalorder %s265, %s267
      %p271 = scmp.eq.s32.totalorder %s84, 0
      %p272 = por %p270, %p271
      %p273 = scmp.ne.s32.totalorder %s265, %s267
      %p274 = scmp.eq.s32.totalorder %s89, 1
      %p275 = por %p273, %p274
      %p276 = scmp.ne.s32.totalorder %s267, %s268
      %p277 = scmp.eq.s32.totalorder %s89, 0
      %p278 = por %p276, %p277
      %p279 = scmp.ne.s32.totalorder %s267, %s268
      %p280 = scmp.eq.s32.totalorder %s90, 1
      %p281 = por %p279, %p280
      %p283 = scmp.ne.s32.totalorder %s268, %s282
      %p284 = scmp.eq.s32.totalorder %s90, 0
      %p285 = por %p283, %p284
      %s287 = sadd.s32 %s286, 1
      %p290 = scmp.eq.s32.totalorder %s84, 1
      %p291 = scmp.ne.s32.totalorder %s286, %s288
      %p292 = scmp.eq.s32.totalorder %s84, 0
      %p293 = por %p291, %p292
      %p294 = scmp.ne.s32.totalorder %s286, %s288
      %p295 = scmp.eq.s32.totalorder %s89, 1
      %p296 = por %p294, %p295
      %p297 = scmp.ne.s32.totalorder %s288, %s289
      %p298 = scmp.eq.s32.totalorder %s89, 0
      %p299 = por %p297, %p298
      %p300 = scmp.ne.s32.totalorder %s288, %s289
      %p301 = scmp.eq.s32.totalorder %s90, 1
      %p302 = por %p300, %p301
      %p304 = scmp.ne.s32.totalorder %s289, %s303
      %p305 = scmp.eq.s32.totalorder %s90, 0
      %p306 = por %p304, %p305
      %s308 = sadd.s32 %s307, 1
      %p311 = scmp.eq.s32.totalorder %s84, 1
      %p312 = scmp.ne.s32.totalorder %s307, %s309
      %p313 = scmp.eq.s32.totalorder %s84, 0
      %p314 = por %p312, %p313
      %p315 = scmp.ne.s32.totalorder %s307, %s309
      %p316 = scmp.eq.s32.totalorder %s89, 1
      %p317 = por %p315, %p316
      %p318 = scmp.ne.s32.totalorder %s309, %s310
      %p319 = scmp.eq.s32.totalorder %s89, 0
      %p320 = por %p318, %p319
      %p321 = scmp.ne.s32.totalorder %s309, %s310
      %p322 = scmp.eq.s32.totalorder %s90, 1
      %p323 = por %p321, %p322
      %p325 = scmp.ne.s32.totalorder %s310, %s324
      %p326 = scmp.eq.s32.totalorder %s90, 0
      %p327 = por %p325, %p326
      %s329 = sadd.s32 %s328, 1
      %p332 = scmp.eq.s32.totalorder %s84, 1
      %p333 = scmp.ne.s32.totalorder %s328, %s330
      %p334 = scmp.eq.s32.totalorder %s84, 0
      %p335 = por %p333, %p334
      %p336 = scmp.ne.s32.totalorder %s328, %s330
      %p337 = scmp.eq.s32.totalorder %s89, 1
      %p338 = por %p336, %p337
      %p339 = scmp.ne.s32.totalorder %s330, %s331
      %p340 = scmp.eq.s32.totalorder %s89, 0
      %p341 = por %p339, %p340
      %p342 = scmp.ne.s32.totalorder %s330, %s331
      %p343 = scmp.eq.s32.totalorder %s90, 1
      %p344 = por %p342, %p343
      %p346 = scmp.ne.s32.totalorder %s331, %s345
      %p347 = scmp.eq.s32.totalorder %s90, 0
      %p348 = por %p346, %p347
      %s350 = sadd.s32 %s349, 1
      %p353 = scmp.eq.s32.totalorder %s84, 1
      %p354 = scmp.ne.s32.totalorder %s349, %s351
      %p355 = scmp.eq.s32.totalorder %s84, 0
      %p356 = por %p354, %p355
      %p357 = scmp.ne.s32.totalorder %s349, %s351
      %p358 = scmp.eq.s32.totalorder %s89, 1
      %p359 = por %p357, %p358
      %p360 = scmp.ne.s32.totalorder %s351, %s352
      %p361 = scmp.eq.s32.totalorder %s89, 0
      %p362 = por %p360, %p361
      %p363 = scmp.ne.s32.totalorder %s351, %s352
      %p364 = scmp.eq.s32.totalorder %s90, 1
      %p365 = por %p363, %p364
      %p367 = scmp.ne.s32.totalorder %s352, %s366
      %p368 = scmp.eq.s32.totalorder %s90, 0
      %p369 = por %p367, %p368
      %s371 = sadd.s32 %s370, 1
      %p374 = scmp.eq.s32.totalorder %s84, 1
      %p375 = scmp.ne.s32.totalorder %s370, %s372
      %p376 = scmp.eq.s32.totalorder %s84, 0
      %p377 = por %p375, %p376
      %p378 = scmp.ne.s32.totalorder %s370, %s372
      %p379 = scmp.eq.s32.totalorder %s89, 1
      %p380 = por %p378, %p379
      %p381 = scmp.ne.s32.totalorder %s372, %s373
      %p382 = scmp.eq.s32.totalorder %s89, 0
      %p383 = por %p381, %p382
      %p384 = scmp.ne.s32.totalorder %s372, %s373
      %p385 = scmp.eq.s32.totalorder %s90, 1
      %p386 = por %p384, %p385
      %p388 = scmp.ne.s32.totalorder %s373, %s387
      %p389 = scmp.eq.s32.totalorder %s90, 0
      %p390 = por %p388, %p389
      %s392 = sadd.s32 %s391, 1
      %p395 = scmp.eq.s32.totalorder %s84, 1
      %p396 = scmp.ne.s32.totalorder %s391, %s393
      %p397 = scmp.eq.s32.totalorder %s84, 0
      %p398 = por %p396, %p397
      %p399 = scmp.ne.s32.totalorder %s391, %s393
      %p400 = scmp.eq.s32.totalorder %s89, 1
      %p401 = por %p399, %p400
      %p402 = scmp.ne.s32.totalorder %s393, %s394
      %p403 = scmp.eq.s32.totalorder %s89, 0
      %p404 = por %p402, %p403
      %p405 = scmp.ne.s32.totalorder %s393, %s394
      %p406 = scmp.eq.s32.totalorder %s90, 1
      %p407 = por %p405, %p406
      %p409 = scmp.ne.s32.totalorder %s394, %s408
      %p410 = scmp.eq.s32.totalorder %s90, 0
      %p411 = por %p409, %p410
      %s413 = sadd.s32 %s412, 1
      %p416 = scmp.eq.s32.totalorder %s84, 1
      %p417 = scmp.ne.s32.totalorder %s412, %s414
      %p418 = scmp.eq.s32.totalorder %s84, 0
      %p419 = por %p417, %p418
      %p420 = scmp.ne.s32.totalorder %s412, %s414
      %p421 = scmp.eq.s32.totalorder %s89, 1
      %p422 = por %p420, %p421
      %p423 = scmp.ne.s32.totalorder %s414, %s415
      %p424 = scmp.eq.s32.totalorder %s89, 0
      %p425 = por %p423, %p424
      %p426 = scmp.ne.s32.totalorder %s414, %s415
      %p427 = scmp.eq.s32.totalorder %s90, 1
      %p428 = por %p426, %p427
      %p430 = scmp.ne.s32.totalorder %s415, %s429
      %p431 = scmp.eq.s32.totalorder %s90, 0
      %p432 = por %p430, %p431
      %s434 = sadd.s32 %s433, 1
      %p437 = scmp.eq.s32.totalorder %s84, 1
      %p438 = scmp.ne.s32.totalorder %s433, %s435
      %p439 = scmp.eq.s32.totalorder %s84, 0
      %p440 = por %p438, %p439
      %p441 = scmp.ne.s32.totalorder %s433, %s435
      %p442 = scmp.eq.s32.totalorder %s89, 1
      %p443 = por %p441, %p442
      %p444 = scmp.ne.s32.totalorder %s435, %s436
      %p445 = scmp.eq.s32.totalorder %s89, 0
      %p446 = por %p444, %p445
      %p447 = scmp.ne.s32.totalorder %s435, %s436
      %p448 = scmp.eq.s32.totalorder %s90, 1
      %p449 = por %p447, %p448
      %p451 = scmp.ne.s32.totalorder %s436, %s450
      %p452 = scmp.eq.s32.totalorder %s90, 0
      %p453 = por %p451, %p452
      %s455 = sadd.s32 %s454, 1
      %p458 = scmp.eq.s32.totalorder %s84, 1
      %p459 = scmp.ne.s32.totalorder %s454, %s456
      %p460 = scmp.eq.s32.totalorder %s84, 0
      %p461 = por %p459, %p460
      %p462 = scmp.ne.s32.totalorder %s454, %s456
      %p463 = scmp.eq.s32.totalorder %s89, 1
      %p464 = por %p462, %p463
      %p465 = scmp.ne.s32.totalorder %s456, %s457
      %p466 = scmp.eq.s32.totalorder %s89, 0
      %p467 = por %p465, %p466
      %p468 = scmp.ne.s32.totalorder %s456, %s457
      %p469 = scmp.eq.s32.totalorder %s90, 1
      %p470 = por %p468, %p469
      %p472 = scmp.ne.s32.totalorder %s457, %s471
      %p473 = scmp.eq.s32.totalorder %s90, 0
      %p474 = por %p472, %p473
      %s476 = sadd.s32 %s475, 1
      %p479 = scmp.eq.s32.totalorder %s84, 1
      %p480 = scmp.ne.s32.totalorder %s475, %s477
      %p481 = scmp.eq.s32.totalorder %s84, 0
      %p482 = por %p480, %p481
      %p483 = scmp.ne.s32.totalorder %s475, %s477
      %p484 = scmp.eq.s32.totalorder %s89, 1
      %p485 = por %p483, %p484
      %p486 = scmp.ne.s32.totalorder %s477, %s478
      %p487 = scmp.eq.s32.totalorder %s89, 0
      %p488 = por %p486, %p487
      %p489 = scmp.ne.s32.totalorder %s477, %s478
      %p490 = scmp.eq.s32.totalorder %s90, 1
      %p491 = por %p489, %p490
      %p493 = scmp.ne.s32.totalorder %s478, %s492
      %p494 = scmp.eq.s32.totalorder %s90, 0
      %p495 = por %p493, %p494
      %s497 = sadd.s32 %s496, 1
      %p500 = scmp.eq.s32.totalorder %s84, 1
      %p501 = scmp.ne.s32.totalorder %s496, %s498
      %p502 = scmp.eq.s32.totalorder %s84, 0
      %p503 = por %p501, %p502
      %p504 = scmp.ne.s32.totalorder %s496, %s498
      %p505 = scmp.eq.s32.totalorder %s89, 1
      %p506 = por %p504, %p505
      %p507 = scmp.ne.s32.totalorder %s498, %s499
      %p508 = scmp.eq.s32.totalorder %s89, 0
      %p509 = por %p507, %p508
      %p510 = scmp.ne.s32.totalorder %s498, %s499
      %p511 = scmp.eq.s32.totalorder %s90, 1
      %p512 = por %p510, %p511
      %p514 = scmp.ne.s32.totalorder %s499, %s513
      %p515 = scmp.eq.s32.totalorder %s90, 0
      %p516 = por %p514, %p515
      %s518 = sadd.s32 %s517, 1
      %p521 = scmp.eq.s32.totalorder %s84, 1
      %p522 = scmp.ne.s32.totalorder %s517, %s519
      %p523 = scmp.eq.s32.totalorder %s84, 0
      %p524 = por %p522, %p523
      %p525 = scmp.ne.s32.totalorder %s517, %s519
      %p526 = scmp.eq.s32.totalorder %s89, 1
      %p527 = por %p525, %p526
      %p528 = scmp.ne.s32.totalorder %s519, %s520
      %p529 = scmp.eq.s32.totalorder %s89, 0
      %p530 = por %p528, %p529
      %p531 = scmp.ne.s32.totalorder %s519, %s520
      %p532 = scmp.eq.s32.totalorder %s90, 1
      %p533 = por %p531, %p532
      %p535 = scmp.ne.s32.totalorder %s520, %s534
      %p536 = scmp.eq.s32.totalorder %s90, 0
      %p537 = por %p535, %p536
      %s539 = sadd.s32 %s538, 1
      %p542 = scmp.eq.s32.totalorder %s84, 1
      %p543 = scmp.ne.s32.totalorder %s538, %s540
      %p544 = scmp.eq.s32.totalorder %s84, 0
      %p545 = por %p543, %p544
      %p546 = scmp.ne.s32.totalorder %s538, %s540
      %p547 = scmp.eq.s32.totalorder %s89, 1
      %p548 = por %p546, %p547
      %p549 = scmp.ne.s32.totalorder %s540, %s541
      %p550 = scmp.eq.s32.totalorder %s89, 0
      %p551 = por %p549, %p550
      %p552 = scmp.ne.s32.totalorder %s540, %s541
      %p553 = scmp.eq.s32.totalorder %s90, 1
      %p554 = por %p552, %p553
      %p556 = scmp.ne.s32.totalorder %s541, %s555
      %p557 = scmp.eq.s32.totalorder %s90, 0
      %p558 = por %p556, %p557
      %s560 = sadd.s32 %s559, 1
      %p563 = scmp.eq.s32.totalorder %s84, 1
      %p564 = scmp.ne.s32.totalorder %s559, %s561
      %p565 = scmp.eq.s32.totalorder %s84, 0
      %p566 = por %p564, %p565
      %p567 = scmp.ne.s32.totalorder %s559, %s561
      %p568 = scmp.eq.s32.totalorder %s89, 1
      %p569 = por %p567, %p568
      %p570 = scmp.ne.s32.totalorder %s561, %s562
      %p571 = scmp.eq.s32.totalorder %s89, 0
      %p572 = por %p570, %p571
      %p573 = scmp.ne.s32.totalorder %s561, %s562
      %p574 = scmp.eq.s32.totalorder %s90, 1
      %p575 = por %p573, %p574
      %p577 = scmp.ne.s32.totalorder %s562, %s576
      %p578 = scmp.eq.s32.totalorder %s90, 0
      %p579 = por %p577, %p578
      %s581 = sadd.s32 %s580, 1
      %p584 = scmp.eq.s32.totalorder %s84, 1
      %p585 = scmp.ne.s32.totalorder %s580, %s582
      %p586 = scmp.eq.s32.totalorder %s84, 0
      %p587 = por %p585, %p586
      %p588 = scmp.ne.s32.totalorder %s580, %s582
      %p589 = scmp.eq.s32.totalorder %s89, 1
      %p590 = por %p588, %p589
      %p591 = scmp.ne.s32.totalorder %s582, %s583
      %p592 = scmp.eq.s32.totalorder %s89, 0
      %p593 = por %p591, %p592
      %p594 = scmp.ne.s32.totalorder %s582, %s583
      %p595 = scmp.eq.s32.totalorder %s90, 1
      %p596 = por %p594, %p595
      %p598 = scmp.ne.s32.totalorder %s583, %s597
      %p599 = scmp.eq.s32.totalorder %s90, 0
      %p600 = por %p598, %p599
      %s602 = sadd.s32 %s601, 1
      %p605 = scmp.eq.s32.totalorder %s84, 1
      %p606 = scmp.ne.s32.totalorder %s601, %s603
      %p607 = scmp.eq.s32.totalorder %s84, 0
      %p608 = por %p606, %p607
      %p609 = scmp.ne.s32.totalorder %s601, %s603
      %p610 = scmp.eq.s32.totalorder %s89, 1
      %p611 = por %p609, %p610
      %p612 = scmp.ne.s32.totalorder %s603, %s604
      %p613 = scmp.eq.s32.totalorder %s89, 0
      %p614 = por %p612, %p613
      %p615 = scmp.ne.s32.totalorder %s603, %s604
      %p616 = scmp.eq.s32.totalorder %s90, 1
      %p617 = por %p615, %p616
      %p619 = scmp.ne.s32.totalorder %s604, %s618
      %p620 = scmp.eq.s32.totalorder %s90, 0
      %p621 = por %p619, %p620
      %s623 = sadd.s32 %s622, 1
      %p626 = scmp.eq.s32.totalorder %s84, 1
      %p627 = scmp.ne.s32.totalorder %s622, %s624
      %p628 = scmp.eq.s32.totalorder %s84, 0
      %p629 = por %p627, %p628
      %p630 = scmp.ne.s32.totalorder %s622, %s624
      %p631 = scmp.eq.s32.totalorder %s89, 1
      %p632 = por %p630, %p631
      %p633 = scmp.ne.s32.totalorder %s624, %s625
      %p634 = scmp.eq.s32.totalorder %s89, 0
      %p635 = por %p633, %p634
      %p636 = scmp.ne.s32.totalorder %s624, %s625
      %p637 = scmp.eq.s32.totalorder %s90, 1
      %p638 = por %p636, %p637
      %p640 = scmp.ne.s32.totalorder %s625, %s639
      %p641 = scmp.eq.s32.totalorder %s90, 0
      %p642 = por %p640, %p641
      %s644 = sadd.s32 %s643, 1
      %p647 = scmp.eq.s32.totalorder %s84, 1
      %p648 = scmp.ne.s32.totalorder %s643, %s645
      %p649 = scmp.eq.s32.totalorder %s84, 0
      %p650 = por %p648, %p649
      %p651 = scmp.ne.s32.totalorder %s643, %s645
      %p652 = scmp.eq.s32.totalorder %s89, 1
      %p653 = por %p651, %p652
      %p654 = scmp.ne.s32.totalorder %s645, %s646
      %p655 = scmp.eq.s32.totalorder %s89, 0
      %p656 = por %p654, %p655
      %p657 = scmp.ne.s32.totalorder %s645, %s646
      %p658 = scmp.eq.s32.totalorder %s90, 1
      %p659 = por %p657, %p658
      %p661 = scmp.ne.s32.totalorder %s646, %s660
      %p662 = scmp.eq.s32.totalorder %s90, 0
      %p663 = por %p661, %p662
      %s665 = sadd.s32 %s664, 1
      %p668 = scmp.eq.s32.totalorder %s84, 1
      %p669 = scmp.ne.s32.totalorder %s664, %s666
      %p670 = scmp.eq.s32.totalorder %s84, 0
      %p671 = por %p669, %p670
      %p672 = scmp.ne.s32.totalorder %s664, %s666
      %p673 = scmp.eq.s32.totalorder %s89, 1
      %p674 = por %p672, %p673
      %p675 = scmp.ne.s32.totalorder %s666, %s667
      %p676 = scmp.eq.s32.totalorder %s89, 0
      %p677 = por %p675, %p676
      %p678 = scmp.ne.s32.totalorder %s666, %s667
      %p679 = scmp.eq.s32.totalorder %s90, 1
      %p680 = por %p678, %p679
      %p682 = scmp.ne.s32.totalorder %s667, %s681
      %p683 = scmp.eq.s32.totalorder %s90, 0
      %p684 = por %p682, %p683
      %s686 = sadd.s32 %s685, 1
      %p689 = scmp.eq.s32.totalorder %s84, 1
      %p690 = scmp.ne.s32.totalorder %s685, %s687
      %p691 = scmp.eq.s32.totalorder %s84, 0
      %p692 = por %p690, %p691
      %p693 = scmp.ne.s32.totalorder %s685, %s687
      %p694 = scmp.eq.s32.totalorder %s89, 1
      %p695 = por %p693, %p694
      %p696 = scmp.ne.s32.totalorder %s687, %s688
      %p697 = scmp.eq.s32.totalorder %s89, 0
      %p698 = por %p696, %p697
      %p699 = scmp.ne.s32.totalorder %s687, %s688
      %p700 = scmp.eq.s32.totalorder %s90, 1
      %p701 = por %p699, %p700
      %p703 = scmp.ne.s32.totalorder %s688, %s702
      %p704 = scmp.eq.s32.totalorder %s90, 0
      %p705 = por %p703, %p704
      %s707 = sadd.s32 %s706, 1
      %p710 = scmp.eq.s32.totalorder %s84, 1
      %p711 = scmp.ne.s32.totalorder %s706, %s708
      %p712 = scmp.eq.s32.totalorder %s84, 0
      %p713 = por %p711, %p712
      %p714 = scmp.ne.s32.totalorder %s706, %s708
      %p715 = scmp.eq.s32.totalorder %s89, 1
      %p716 = por %p714, %p715
      %p717 = scmp.ne.s32.totalorder %s708, %s709
      %p718 = scmp.eq.s32.totalorder %s89, 0
      %p719 = por %p717, %p718
      %p720 = scmp.ne.s32.totalorder %s708, %s709
      %p721 = scmp.eq.s32.totalorder %s90, 1
      %p722 = por %p720, %p721
      %p724 = scmp.ne.s32.totalorder %s709, %s723
      %p725 = scmp.eq.s32.totalorder %s90, 0
      %p726 = por %p724, %p725
      %s728 = sadd.s32 %s727, 1
      %p731 = scmp.eq.s32.totalorder %s84, 1
      %p732 = scmp.ne.s32.totalorder %s727, %s729
      %p733 = scmp.eq.s32.totalorder %s84, 0
      %p734 = por %p732, %p733
      %p735 = scmp.ne.s32.totalorder %s727, %s729
      %p736 = scmp.eq.s32.totalorder %s89, 1
      %p737 = por %p735, %p736
      %p738 = scmp.ne.s32.totalorder %s729, %s730
      %p739 = scmp.eq.s32.totalorder %s89, 0
      %p740 = por %p738, %p739
      %p741 = scmp.ne.s32.totalorder %s729, %s730
      %p742 = scmp.eq.s32.totalorder %s90, 1
      %p743 = por %p741, %p742
      %p745 = scmp.ne.s32.totalorder %s730, %s744
      %p746 = scmp.eq.s32.totalorder %s90, 0
      %p747 = por %p745, %p746
      %s749 = sadd.s32 %s748, 1
      %p752 = scmp.eq.s32.totalorder %s84, 1
      %p753 = scmp.ne.s32.totalorder %s748, %s750
      %p754 = scmp.eq.s32.totalorder %s84, 0
      %p755 = por %p753, %p754
      %p756 = scmp.ne.s32.totalorder %s748, %s750
      %p757 = scmp.eq.s32.totalorder %s89, 1
      %p758 = por %p756, %p757
      %p759 = scmp.ne.s32.totalorder %s750, %s751
      %p760 = scmp.eq.s32.totalorder %s89, 0
      %p761 = por %p759, %p760
      %p762 = scmp.ne.s32.totalorder %s750, %s751
      %p763 = scmp.eq.s32.totalorder %s90, 1
      %p764 = por %p762, %p763
      %p766 = scmp.ne.s32.totalorder %s751, %s765
      %p767 = scmp.eq.s32.totalorder %s90, 0
      %p768 = por %p766, %p767
      %s770 = sadd.s32 %s769, 1
      %p773 = scmp.eq.s32.totalorder %s84, 1
      %p774 = scmp.ne.s32.totalorder %s769, %s771
      %p775 = scmp.eq.s32.totalorder %s84, 0
      %p776 = por %p774, %p775
      %p777 = scmp.ne.s32.totalorder %s769, %s771
      %p778 = scmp.eq.s32.totalorder %s89, 1
      %p779 = por %p777, %p778
      %p780 = scmp.ne.s32.totalorder %s771, %s772
      %p781 = scmp.eq.s32.totalorder %s89, 0
      %p782 = por %p780, %p781
      %p783 = scmp.ne.s32.totalorder %s771, %s772
      %p784 = scmp.eq.s32.totalorder %s90, 1
      %p785 = por %p783, %p784
      %p787 = scmp.ne.s32.totalorder %s772, %s786
      %p788 = scmp.eq.s32.totalorder %s90, 0
      %p789 = por %p787, %p788
      %s791 = sadd.s32 %s790, 1
      %p794 = scmp.eq.s32.totalorder %s84, 1
      %p795 = scmp.ne.s32.totalorder %s790, %s792
      %p796 = scmp.eq.s32.totalorder %s84, 0
      %p797 = por %p795, %p796
      %p798 = scmp.ne.s32.totalorder %s790, %s792
      %p799 = scmp.eq.s32.totalorder %s89, 1
      %p800 = por %p798, %p799
      %p801 = scmp.ne.s32.totalorder %s792, %s793
      %p802 = scmp.eq.s32.totalorder %s89, 0
      %p803 = por %p801, %p802
      %p804 = scmp.ne.s32.totalorder %s792, %s793
      %p805 = scmp.eq.s32.totalorder %s90, 1
      %p806 = por %p804, %p805
      %p808 = scmp.ne.s32.totalorder %s793, %s807
      %p809 = scmp.eq.s32.totalorder %s90, 0
      %p810 = por %p808, %p809
      %s812 = sadd.s32 %s811, 1
      %p815 = scmp.eq.s32.totalorder %s84, 1
      %p816 = scmp.ne.s32.totalorder %s811, %s813
      %p817 = scmp.eq.s32.totalorder %s84, 0
      %p818 = por %p816, %p817
      %p819 = scmp.ne.s32.totalorder %s811, %s813
      %p820 = scmp.eq.s32.totalorder %s89, 1
      %p821 = por %p819, %p820
      %p822 = scmp.ne.s32.totalorder %s813, %s814
      %p823 = scmp.eq.s32.totalorder %s89, 0
      %p824 = por %p822, %p823
      %p825 = scmp.ne.s32.totalorder %s813, %s814
      %p826 = scmp.eq.s32.totalorder %s90, 1
      %p827 = por %p825, %p826
      %p829 = scmp.ne.s32.totalorder %s814, %s828
      %p830 = scmp.eq.s32.totalorder %s90, 0
      %p831 = por %p829, %p830
      %s833 = sadd.s32 %s832, 1
      %p836 = scmp.eq.s32.totalorder %s84, 1
      %p837 = scmp.ne.s32.totalorder %s832, %s834
      %p838 = scmp.eq.s32.totalorder %s84, 0
      %p839 = por %p837, %p838
      %p840 = scmp.ne.s32.totalorder %s832, %s834
      %p841 = scmp.eq.s32.totalorder %s89, 1
      %p842 = por %p840, %p841
      %p843 = scmp.ne.s32.totalorder %s834, %s835
      %p844 = scmp.eq.s32.totalorder %s89, 0
      %p845 = por %p843, %p844
      %p846 = scmp.ne.s32.totalorder %s834, %s835
      %p847 = scmp.eq.s32.totalorder %s90, 1
      %p848 = por %p846, %p847
      %p850 = scmp.ne.s32.totalorder %s835, %s849
      %p851 = scmp.eq.s32.totalorder %s90, 0
      %p852 = por %p850, %p851
      %s854 = sadd.s32 %s853, 1
      %p857 = scmp.eq.s32.totalorder %s84, 1
      %p858 = scmp.ne.s32.totalorder %s853, %s855
      %p859 = scmp.eq.s32.totalorder %s84, 0
      %p860 = por %p858, %p859
      %p861 = scmp.ne.s32.totalorder %s853, %s855
      %p862 = scmp.eq.s32.totalorder %s89, 1
      %p863 = por %p861, %p862
      %p864 = scmp.ne.s32.totalorder %s855, %s856
      %p865 = scmp.eq.s32.totalorder %s89, 0
      %p866 = por %p864, %p865
      %p867 = scmp.ne.s32.totalorder %s855, %s856
      %p868 = scmp.eq.s32.totalorder %s90, 1
      %p869 = por %p867, %p868
      %p871 = scmp.ne.s32.totalorder %s856, %s870
      %p872 = scmp.eq.s32.totalorder %s90, 0
      %p873 = por %p871, %p872
      %s874 = ssub.s32 %s84, %s91
      %p875 = scmp.eq.s32.totalorder %s874, 0
      %s877 = sadd.s32 %s876, 1
      %s878 = scalar_select %p875, %s876, %s877
      %p881 = pneg %p875
      %p882 = scmp.eq.s32.totalorder %s84, 1
      %p883 = por %p881, %p882
      %p884 = scmp.ne.s32.totalorder %s876, %s879
      %p885 = scmp.eq.s32.totalorder %s84, 0
      %p886 = por %p884, %p885
      %p887 = scmp.ne.s32.totalorder %s876, %s879
      %p888 = scmp.eq.s32.totalorder %s89, 1
      %p889 = por %p887, %p888
      %p890 = scmp.ne.s32.totalorder %s879, %s880
      %p891 = scmp.eq.s32.totalorder %s89, 0
      %p892 = por %p890, %p891
      %p893 = scmp.ne.s32.totalorder %s879, %s880
      %p894 = scmp.eq.s32.totalorder %s90, 1
      %p895 = por %p893, %p894
      %p897 = scmp.ne.s32.totalorder %s880, %s896
      %p898 = scmp.eq.s32.totalorder %s90, 0
      %p899 = por %p897, %p898
      %p900 = scmp.le.s32.totalorder 1, %s84
      %p901 = scmp.lt.s32.totalorder %s84, 3
      %p902 = pnand %p900, %p901
      %p903 = pneg %p902
      // Predicated region
      $region9: #{tpu_custom_call.1} parent=5 // pred_check
        _
      $region10: #{tpu_custom_call.1} parent=5 // pred_check_branch
        %905 = sbr.rel (%p902) target = $region12
      $region11: #{tpu_custom_call.1} parent=5 // pred_region
        %s906 = ssub.s32 %s84, 1
        // Predicated region
        $region13: #{tpu_custom_call.1} parent=11 // pred_check
          %p907 = pneg %p131
        $region14: #{tpu_custom_call.1} parent=11 // pred_check_branch
          %909 = sbr.rel (%p907) target = $region16
        $region15: #{tpu_custom_call.1} parent=11 // pred_region
          _
        $region16: #{tpu_custom_call.1} parent=11 // pred_fallthru
          _
        // Predicated region
        $region17: #{tpu_custom_call.1} parent=11 // pred_check
          %p910 = pneg %p152
        $region18: #{tpu_custom_call.1} parent=11 // pred_check_branch
          %912 = sbr.rel (%p910) target = $region20
        $region19: #{tpu_custom_call.1} parent=11 // pred_region
          _
        $region20: #{tpu_custom_call.1} parent=11 // pred_fallthru
          _
        // Predicated region
        $region21: #{tpu_custom_call.1} parent=11 // pred_check
          %p913 = pneg %p173
        $region22: #{tpu_custom_call.1} parent=11 // pred_check_branch
          %915 = sbr.rel (%p913) target = $region24
        $region23: #{tpu_custom_call.1} parent=11 // pred_region
          _
        $region24: #{tpu_custom_call.1} parent=11 // pred_fallthru
          _
        // Predicated region
        $region25: #{tpu_custom_call.1} parent=11 // pred_check
          %p916 = pneg %p194
        $region26: #{tpu_custom_call.1} parent=11 // pred_check_branch
          %918 = sbr.rel (%p916) target = $region28
        $region27: #{tpu_custom_call.1} parent=11 // pred_region
          _
        $region28: #{tpu_custom_call.1} parent=11 // pred_fallthru
          _
        // Predicated region
        $region29: #{tpu_custom_call.1} parent=11 // pred_check
          %p919 = pneg %p215
        $region30: #{tpu_custom_call.1} parent=11 // pred_check_branch
          %921 = sbr.rel (%p919) target = $region32
        $region31: #{tpu_custom_call.1} parent=11 // pred_region
          _
        $region32: #{tpu_custom_call.1} parent=11 // pred_fallthru
          _
        // Predicated region
        $region33: #{tpu_custom_call.1} parent=11 // pred_check
          %p922 = pneg %p236
        $region34: #{tpu_custom_call.1} parent=11 // pred_check_branch
          %924 = sbr.rel (%p922) target = $region36
        $region35: #{tpu_custom_call.1} parent=11 // pred_region
          _
        $region36: #{tpu_custom_call.1} parent=11 // pred_fallthru
          _
        // Predicated region
        $region37: #{tpu_custom_call.1} parent=11 // pred_check
          %p925 = pneg %p257
        $region38: #{tpu_custom_call.1} parent=11 // pred_check_branch
          %927 = sbr.rel (%p925) target = $region40
        $region39: #{tpu_custom_call.1} parent=11 // pred_region
          _
        $region40: #{tpu_custom_call.1} parent=11 // pred_fallthru
          _
        // Predicated region
        $region41: #{tpu_custom_call.1} parent=11 // pred_check
          %p928 = pneg %p278
        $region42: #{tpu_custom_call.1} parent=11 // pred_check_branch
          %930 = sbr.rel (%p928) target = $region44
        $region43: #{tpu_custom_call.1} parent=11 // pred_region
          _
        $region44: #{tpu_custom_call.1} parent=11 // pred_fallthru
          _
        // Predicated region
        $region45: #{tpu_custom_call.1} parent=11 // pred_check
          %p931 = pneg %p299
        $region46: #{tpu_custom_call.1} parent=11 // pred_check_branch
          %933 = sbr.rel (%p931) target = $region48
        $region47: #{tpu_custom_call.1} parent=11 // pred_region
          _
        $region48: #{tpu_custom_call.1} parent=11 // pred_fallthru
          _
        // Predicated region
        $region49: #{tpu_custom_call.1} parent=11 // pred_check
          %p934 = pneg %p320
        $region50: #{tpu_custom_call.1} parent=11 // pred_check_branch
          %936 = sbr.rel (%p934) target = $region52
        $region51: #{tpu_custom_call.1} parent=11 // pred_region
          _
        $region52: #{tpu_custom_call.1} parent=11 // pred_fallthru
          _
        // Predicated region
        $region53: #{tpu_custom_call.1} parent=11 // pred_check
          %p937 = pneg %p341
        $region54: #{tpu_custom_call.1} parent=11 // pred_check_branch
          %939 = sbr.rel (%p937) target = $region56
        $region55: #{tpu_custom_call.1} parent=11 // pred_region
          _
        $region56: #{tpu_custom_call.1} parent=11 // pred_fallthru
          _
        // Predicated region
        $region57: #{tpu_custom_call.1} parent=11 // pred_check
          %p940 = pneg %p362
        $region58: #{tpu_custom_call.1} parent=11 // pred_check_branch
          %942 = sbr.rel (%p940) target = $region60
        $region59: #{tpu_custom_call.1} parent=11 // pred_region
          _
        $region60: #{tpu_custom_call.1} parent=11 // pred_fallthru
          _
        // Predicated region
        $region61: #{tpu_custom_call.1} parent=11 // pred_check
          %p943 = pneg %p383
        $region62: #{tpu_custom_call.1} parent=11 // pred_check_branch
          %945 = sbr.rel (%p943) target = $region64
        $region63: #{tpu_custom_call.1} parent=11 // pred_region
          _
        $region64: #{tpu_custom_call.1} parent=11 // pred_fallthru
          _
        // Predicated region
        $region65: #{tpu_custom_call.1} parent=11 // pred_check
          %p946 = pneg %p404
        $region66: #{tpu_custom_call.1} parent=11 // pred_check_branch
          %948 = sbr.rel (%p946) target = $region68
        $region67: #{tpu_custom_call.1} parent=11 // pred_region
          _
        $region68: #{tpu_custom_call.1} parent=11 // pred_fallthru
          _
        // Predicated region
        $region69: #{tpu_custom_call.1} parent=11 // pred_check
          %p949 = pneg %p425
        $region70: #{tpu_custom_call.1} parent=11 // pred_check_branch
          %951 = sbr.rel (%p949) target = $region72
        $region71: #{tpu_custom_call.1} parent=11 // pred_region
          _
        $region72: #{tpu_custom_call.1} parent=11 // pred_fallthru
          _
        // Predicated region
        $region73: #{tpu_custom_call.1} parent=11 // pred_check
          %p952 = pneg %p446
        $region74: #{tpu_custom_call.1} parent=11 // pred_check_branch
          %954 = sbr.rel (%p952) target = $region76
        $region75: #{tpu_custom_call.1} parent=11 // pred_region
          _
        $region76: #{tpu_custom_call.1} parent=11 // pred_fallthru
          _
        // Predicated region
        $region77: #{tpu_custom_call.1} parent=11 // pred_check
          %p955 = pneg %p467
        $region78: #{tpu_custom_call.1} parent=11 // pred_check_branch
          %957 = sbr.rel (%p955) target = $region80
        $region79: #{tpu_custom_call.1} parent=11 // pred_region
          _
        $region80: #{tpu_custom_call.1} parent=11 // pred_fallthru
          _
        // Predicated region
        $region81: #{tpu_custom_call.1} parent=11 // pred_check
          %p958 = pneg %p488
        $region82: #{tpu_custom_call.1} parent=11 // pred_check_branch
          %960 = sbr.rel (%p958) target = $region84
        $region83: #{tpu_custom_call.1} parent=11 // pred_region
          _
        $region84: #{tpu_custom_call.1} parent=11 // pred_fallthru
          _
        // Predicated region
        $region85: #{tpu_custom_call.1} parent=11 // pred_check
          %p961 = pneg %p509
        $region86: #{tpu_custom_call.1} parent=11 // pred_check_branch
          %963 = sbr.rel (%p961) target = $region88
        $region87: #{tpu_custom_call.1} parent=11 // pred_region
          _
        $region88: #{tpu_custom_call.1} parent=11 // pred_fallthru
          _
        // Predicated region
        $region89: #{tpu_custom_call.1} parent=11 // pred_check
          %p964 = pneg %p530
        $region90: #{tpu_custom_call.1} parent=11 // pred_check_branch
          %966 = sbr.rel (%p964) target = $region92
        $region91: #{tpu_custom_call.1} parent=11 // pred_region
          _
        $region92: #{tpu_custom_call.1} parent=11 // pred_fallthru
          _
        // Predicated region
        $region93: #{tpu_custom_call.1} parent=11 // pred_check
          %p967 = pneg %p551
        $region94: #{tpu_custom_call.1} parent=11 // pred_check_branch
          %969 = sbr.rel (%p967) target = $region96
        $region95: #{tpu_custom_call.1} parent=11 // pred_region
          _
        $region96: #{tpu_custom_call.1} parent=11 // pred_fallthru
          _
        // Predicated region
        $region97: #{tpu_custom_call.1} parent=11 // pred_check
          %p970 = pneg %p572
        $region98: #{tpu_custom_call.1} parent=11 // pred_check_branch
          %972 = sbr.rel (%p970) target = $region100
        $region99: #{tpu_custom_call.1} parent=11 // pred_region
          _
        $region100: #{tpu_custom_call.1} parent=11 // pred_fallthru
          _
        // Predicated region
        $region101: #{tpu_custom_call.1} parent=11 // pred_check
          %p973 = pneg %p593
        $region102: #{tpu_custom_call.1} parent=11 // pred_check_branch
          %975 = sbr.rel (%p973) target = $region104
        $region103: #{tpu_custom_call.1} parent=11 // pred_region
          _
        $region104: #{tpu_custom_call.1} parent=11 // pred_fallthru
          _
        // Predicated region
        $region105: #{tpu_custom_call.1} parent=11 // pred_check
          %p976 = pneg %p614
        $region106: #{tpu_custom_call.1} parent=11 // pred_check_branch
          %978 = sbr.rel (%p976) target = $region108
        $region107: #{tpu_custom_call.1} parent=11 // pred_region
          _
        $region108: #{tpu_custom_call.1} parent=11 // pred_fallthru
          _
        // Predicated region
        $region109: #{tpu_custom_call.1} parent=11 // pred_check
          %p979 = pneg %p635
        $region110: #{tpu_custom_call.1} parent=11 // pred_check_branch
          %981 = sbr.rel (%p979) target = $region112
        $region111: #{tpu_custom_call.1} parent=11 // pred_region
          _
        $region112: #{tpu_custom_call.1} parent=11 // pred_fallthru
          _
        // Predicated region
        $region113: #{tpu_custom_call.1} parent=11 // pred_check
          %p982 = pneg %p656
        $region114: #{tpu_custom_call.1} parent=11 // pred_check_branch
          %984 = sbr.rel (%p982) target = $region116
        $region115: #{tpu_custom_call.1} parent=11 // pred_region
          _
        $region116: #{tpu_custom_call.1} parent=11 // pred_fallthru
          _
        // Predicated region
        $region117: #{tpu_custom_call.1} parent=11 // pred_check
          %p985 = pneg %p677
        $region118: #{tpu_custom_call.1} parent=11 // pred_check_branch
          %987 = sbr.rel (%p985) target = $region120
        $region119: #{tpu_custom_call.1} parent=11 // pred_region
          _
        $region120: #{tpu_custom_call.1} parent=11 // pred_fallthru
          _
        // Predicated region
        $region121: #{tpu_custom_call.1} parent=11 // pred_check
          %p988 = pneg %p698
        $region122: #{tpu_custom_call.1} parent=11 // pred_check_branch
          %990 = sbr.rel (%p988) target = $region124
        $region123: #{tpu_custom_call.1} parent=11 // pred_region
          _
        $region124: #{tpu_custom_call.1} parent=11 // pred_fallthru
          _
        // Predicated region
        $region125: #{tpu_custom_call.1} parent=11 // pred_check
          %p991 = pneg %p719
        $region126: #{tpu_custom_call.1} parent=11 // pred_check_branch
          %993 = sbr.rel (%p991) target = $region128
        $region127: #{tpu_custom_call.1} parent=11 // pred_region
          _
        $region128: #{tpu_custom_call.1} parent=11 // pred_fallthru
          _
        // Predicated region
        $region129: #{tpu_custom_call.1} parent=11 // pred_check
          %p994 = pneg %p740
        $region130: #{tpu_custom_call.1} parent=11 // pred_check_branch
          %996 = sbr.rel (%p994) target = $region132
        $region131: #{tpu_custom_call.1} parent=11 // pred_region
          _
        $region132: #{tpu_custom_call.1} parent=11 // pred_fallthru
          _
        // Predicated region
        $region133: #{tpu_custom_call.1} parent=11 // pred_check
          %p997 = pneg %p761
        $region134: #{tpu_custom_call.1} parent=11 // pred_check_branch
          %999 = sbr.rel (%p997) target = $region136
        $region135: #{tpu_custom_call.1} parent=11 // pred_region
          _
        $region136: #{tpu_custom_call.1} parent=11 // pred_fallthru
          _
        // Predicated region
        $region137: #{tpu_custom_call.1} parent=11 // pred_check
          %p1000 = pneg %p782
        $region138: #{tpu_custom_call.1} parent=11 // pred_check_branch
          %1002 = sbr.rel (%p1000) target = $region140
        $region139: #{tpu_custom_call.1} parent=11 // pred_region
          _
        $region140: #{tpu_custom_call.1} parent=11 // pred_fallthru
          _
        // Predicated region
        $region141: #{tpu_custom_call.1} parent=11 // pred_check
          %p1003 = pneg %p803
        $region142: #{tpu_custom_call.1} parent=11 // pred_check_branch
          %1005 = sbr.rel (%p1003) target = $region144
        $region143: #{tpu_custom_call.1} parent=11 // pred_region
          _
        $region144: #{tpu_custom_call.1} parent=11 // pred_fallthru
          _
        // Predicated region
        $region145: #{tpu_custom_call.1} parent=11 // pred_check
          %p1006 = pneg %p824
        $region146: #{tpu_custom_call.1} parent=11 // pred_check_branch
          %1008 = sbr.rel (%p1006) target = $region148
        $region147: #{tpu_custom_call.1} parent=11 // pred_region
          _
        $region148: #{tpu_custom_call.1} parent=11 // pred_fallthru
          _
        // Predicated region
        $region149: #{tpu_custom_call.1} parent=11 // pred_check
          %p1009 = pneg %p845
        $region150: #{tpu_custom_call.1} parent=11 // pred_check_branch
          %1011 = sbr.rel (%p1009) target = $region152
        $region151: #{tpu_custom_call.1} parent=11 // pred_region
          _
        $region152: #{tpu_custom_call.1} parent=11 // pred_fallthru
          _
        // Predicated region
        $region153: #{tpu_custom_call.1} parent=11 // pred_check
          %p1012 = pneg %p866
        $region154: #{tpu_custom_call.1} parent=11 // pred_check_branch
          %1014 = sbr.rel (%p1012) target = $region156
        $region155: #{tpu_custom_call.1} parent=11 // pred_region
          _
        $region156: #{tpu_custom_call.1} parent=11 // pred_fallthru
          _
      $region12: #{tpu_custom_call.1} parent=5 // pred_fallthru
        _
      %p1015 = scmp.lt.s32.totalorder %s84, 2
      // Predicated region
      $region157: #{tpu_custom_call.1} parent=5 // pred_check
        %p1016 = pneg %p1015
      $region158: #{tpu_custom_call.1} parent=5 // pred_check_branch
        %1018 = sbr.rel (%p1016) target = $region160
      $region159: #{tpu_custom_call.1} parent=5 // pred_region
        // Predicated region
        $region161: #{tpu_custom_call.1} parent=159 // pred_check
          %p1019 = pneg %p104
        $region162: #{tpu_custom_call.1} parent=159 // pred_check_branch
          %1021 = sbr.rel (%p1019) target = $region164
        $region163: #{tpu_custom_call.1} parent=159 // pred_region
          %p1022 = scmp.lt.s32.totalorder %s84, 1
          %s1023 = scalar_select %p1022, %s84, 1
          %s1024 = smul.addr %s1023, 4
          %s1025 = smul.addr %s1024, 8
          %s1026 = scalar_lea.vmem %s1, %s1025
        $region164: #{tpu_custom_call.1} parent=159 // pred_fallthru
          _
      $region160: #{tpu_custom_call.1} parent=5 // pred_fallthru
        _
      %p1027 = scmp.le.s32.totalorder 1, %s84
      %p1028 = scmp.lt.s32.totalorder %s84, 3
      %p1029 = pnand %p1027, %p1028
      %p1030 = pneg %p1029
      // Predicated region
      $region165: #{tpu_custom_call.1} parent=5 // pred_check
        _
      $region166: #{tpu_custom_call.1} parent=5 // pred_check_branch
        %1032 = sbr.rel (%p1029) target = $region168
      $region167: #{tpu_custom_call.1} parent=5 // pred_region
        %s1033 = ssub.s32 %s84, 1
        %p1034 = scmp.lt.s32.totalorder %s89, 1
        %s1035 = scalar_select %p1034, %s89, 1
        %s1036 = smul.addr %s1035, 4
        %s1037 = smul.addr %s1036, 8
        %s1038 = scalar_lea.vmem %s1, %s1037
        %p1039 = pneg %p110
        %p1040 = pneg %p107
        %p1041 = pneg %p131
        %p1042 = pneg %p128
        %p1043 = pneg %p152
        %p1044 = pneg %p149
        %p1045 = pneg %p173
        %p1046 = pneg %p170
        %p1047 = pneg %p194
        %p1048 = pneg %p191
        %p1049 = pneg %p215
        %p1050 = pneg %p212
        %p1051 = pneg %p236
        %p1052 = pneg %p233
        %p1053 = pneg %p257
        %p1054 = pneg %p254
        %p1055 = pneg %p278
        %p1056 = pneg %p275
        %p1057 = pneg %p299
        %p1058 = pneg %p296
        %p1059 = pneg %p320
        %p1060 = pneg %p317
        %p1061 = pneg %p341
        %p1062 = pneg %p338
        %p1063 = pneg %p362
        %p1064 = pneg %p359
        %p1065 = pneg %p383
        %p1066 = pneg %p380
        %p1067 = pneg %p404
        %p1068 = pneg %p401
        %p1069 = pneg %p425
        %p1070 = pneg %p422
        %p1071 = pneg %p446
        %p1072 = pneg %p443
        %p1073 = pneg %p467
        %p1074 = pneg %p464
        %p1075 = pneg %p488
        %p1076 = pneg %p485
        %p1077 = pneg %p509
        %p1078 = pneg %p506
        %p1079 = pneg %p530
        %p1080 = pneg %p527
        %p1081 = pneg %p551
        %p1082 = pneg %p548
        %p1083 = pneg %p572
        %p1084 = pneg %p569
        %p1085 = pneg %p593
        %p1086 = pneg %p590
        %p1087 = pneg %p614
        %p1088 = pneg %p611
        %p1089 = pneg %p635
        %p1090 = pneg %p632
        %p1091 = pneg %p656
        %p1092 = pneg %p653
        %p1093 = pneg %p677
        %p1094 = pneg %p674
        %p1095 = pneg %p698
        %p1096 = pneg %p695
        %p1097 = pneg %p719
        %p1098 = pneg %p716
        %p1099 = pneg %p740
        %p1100 = pneg %p737
        %p1101 = pneg %p761
        %p1102 = pneg %p758
        %p1103 = pneg %p782
        %p1104 = pneg %p779
        %p1105 = pneg %p803
        %p1106 = pneg %p800
        %p1107 = pneg %p824
        %p1108 = pneg %p821
        %p1109 = pneg %p845
        %p1110 = pneg %p842
        %p1111 = pneg %p866
        %p1112 = pneg %p863
        %p1113 = pneg %p892
        %p1114 = pneg %p889
        %s1115 = sand.u32 %s879, 1
        %s1116 = scalar_lea.sflag [#allocation3], %s1115
        %s1117 = sand.u32 %s879, 1
        %s1118 = scalar_lea.vmem [#allocation2], %s1117
        %p1119 = scmp.lt.s32.totalorder %s89, 1
        %s1120 = scalar_select %p1119, %s89, 1
        %s1121 = smul.addr %s1120, 4
        %s1122 = smul.addr %s1121, 8
        %s1123 = scalar_lea.vmem %s1, %s1122
        %v1124 = vld [vmem:[%s1123] sm:$0xff]
        %v1125 = vld [vmem:[%s1123 + $0x8] sm:$0xff]
        %v1126 = vld [vmem:[%s1123 + $0x10] sm:$0xff]
        %v1127 = vld [vmem:[%s1123 + $0x18] sm:$0xff]
        %v1128 = vmul.f32 %v1124, 7.5
        %v1129 = vmul.f32 %v1125, 7.5
        %v1130 = vmul.f32 %v1126, 7.5
        %v1131 = vmul.f32 %v1127, 7.5
        %v1132 = vmax.f32 %v1128, 0.0
        %v1133 = vmax.f32 %v1129, 0.0
        %v1134 = vmax.f32 %v1130, 0.0
        %v1135 = vmax.f32 %v1131, 0.0
        %v1136 = vmin.f32 %v1132, 15.0
        %v1137 = vmin.f32 %v1133, 15.0
        %v1138 = vmin.f32 %v1134, 15.0
        %v1139 = vmin.f32 %v1135, 15.0
        %v1140 = vround.ne.pseudo %v1136
        %v1141 = vround.ne.pseudo %v1137
        %v1142 = vround.ne.pseudo %v1138
        %v1143 = vround.ne.pseudo %v1139
        %v1144 = vlaneseq
        %v1145 = vand.u32 %v1144, 127
        %v1146 = vadd.s32 %v1145, 128
        %v1147 = vadd.s32 %v1145, 256
        %v1148 = vadd.s32 %v1145, 384
        %vm1149 = vcmp.gt.s32.totalorder %v1145, 0
        %vm1150 = vcmp.gt.s32.totalorder %v1146, 0
        %vm1151 = vcmp.gt.s32.totalorder %v1147, 0
        %vm1152 = vcmp.gt.s32.totalorder %v1148, 0
        %1153 = vrot.lane.b32.xlu0 %v1140, 1
        %v1154 = vpop.permute.xlu0 %1153
        %1155 = vrot.lane.b32.xlu0 %v1141, 1
        %v1156 = vpop.permute.xlu0 %1155
        %1157 = vrot.lane.b32.xlu0 %v1142, 1
        %v1158 = vpop.permute.xlu0 %1157
        %1159 = vrot.lane.b32.xlu0 %v1143, 1
        %v1160 = vpop.permute.xlu0 %1159
        %vm1161 = vcmp.lt.s32.totalorder %v1145, 1
        %v1162 = vsel %vm1161, %v1158, %v1160
        %v1163 = vsel %vm1161, %v1156, %v1158
        %v1164 = vsel %vm1161, %v1154, %v1156
        %v1165 = vsel %vm1161, %v1160, %v1154
        %v1166 = vsel %vm1149, %v1165, 0.0
        %v1167 = vsel %vm1150, %v1164, 0.0
        %v1168 = vsel %vm1151, %v1163, 0.0
        %v1169 = vsel %vm1152, %v1162, 0.0
        %vm1170 = vcmp.lt.s32.totalorder %v1145, 511
        %vm1171 = vcmp.lt.s32.totalorder %v1146, 511
        %vm1172 = vcmp.lt.s32.totalorder %v1147, 511
        %vm1173 = vcmp.lt.s32.totalorder %v1148, 511
        %1174 = vrot.lane.b32.xlu0 %v1140, 127
        %v1175 = vpop.permute.xlu0 %1174
        %1176 = vrot.lane.b32.xlu0 %v1141, 127
        %v1177 = vpop.permute.xlu0 %1176
        %1178 = vrot.lane.b32.xlu0 %v1142, 127
        %v1179 = vpop.permute.xlu0 %1178
        %1180 = vrot.lane.b32.xlu0 %v1143, 127
        %v1181 = vpop.permute.xlu0 %1180
        %vm1182 = vcmp.lt.s32.totalorder %v1145, 127
        %v1183 = vsel %vm1182, %v1179, %v1181
        %v1184 = vsel %vm1182, %v1177, %v1179
        %v1185 = vsel %vm1182, %v1175, %v1177
        %v1186 = vsel %vm1182, %v1181, %v1175
        %v1187 = vsel %vm1170, %v1185, 0.0
        %v1188 = vsel %vm1171, %v1184, 0.0
        %v1189 = vsel %vm1172, %v1183, 0.0
        %v1190 = vsel %vm1173, %v1186, 0.0
        %v1191 = vld [vmem:[%s3] sm:$0xff]
        %v1192 = vld [vmem:[%s3 + $0x8] sm:$0xff]
        %vm1193 = vcmask 195584
        %v1195 = vsel %vm1193, %v1191, 0
        %v1198 = vsel %vm1193, %v1192, 0
        %1200 = vmatprep.subr.mxu0 %v1167
        %1201 = vmatpush1.msra.mxu0 %v1166
        %1202 = vmatprep.subr.mxu0 %v1141
        %1203 = vmatpush1.msra.mxu0 %v1140
        %1204 = vmatprep.subr.mxu0 %v1188
        %1205 = vmatpush1.msra.mxu0 %v1187
        %1206 = vmatprep.subr.mxu0 0.0
        %1207 = vmatpush1.msra.mxu0 0.0
        %1208 = vmatprep.subr.mxu0 0.0
        %1209 = vmatpush1.msra.mxu0 0.0
        %1210 = vmatprep.subr.mxu0 0.0
        %1211 = vmatpush1.msra.mxu0 0.0
        %1212 = vmatprep.subr.mxu0 0.0
        %1213 = vmatpush1.msra.mxu0 0.0
        %1214 = vmatprep.subr.mxu0 0.0
        %1215 = vmatpush1.msra.mxu0 0.0
        %1216 = vmatprep.subr.mxu0 0.0
        %1217 = vmatpush1.msra.mxu0 0.0
        %1218 = vmatprep.subr.mxu0 0.0
        %1219 = vmatpush1.msra.mxu0 0.0
        %1220 = vmatprep.subr.mxu0 0.0
        %1221 = vmatpush1.msra.mxu0 0.0
        %1222 = vmatprep.subr.mxu0 0.0
        %1223 = vmatpush1.msra.mxu0 0.0
        %1224 = vmatprep.subr.mxu0 0.0
        %1225 = vmatpush1.msra.mxu0 0.0
        %1226 = vmatprep.subr.mxu0 0.0
        %1227 = vmatpush1.msra.mxu0 0.0
        %1228 = vmatprep.subr.mxu0 0.0
        %1229 = vmatpush1.msra.mxu0 0.0
        %1230 = vmatprep.subr.mxu0 0.0
        %1231 = vmatpush1.msra.mxu0 0.0
        %1232 = vmatprep.subr.mxu0 0.0
        %1233 = vmatpush1.msra.mxu0 0.0
        %1234 = vmatprep.subr.mxu0 0.0
        %1235 = vmatpush1.msra.mxu0 0.0
        %1236 = vmatprep.subr.mxu0 0.0
        %1237 = vmatpush1.msra.mxu0 0.0
        %1238 = vmatprep.subr.mxu0 0.0
        %1239 = vmatpush1.msra.mxu0 0.0
        %1240 = vmatprep.subr.mxu0 0.0
        %1241 = vmatpush1.msra.mxu0 0.0
        %1242 = vmatprep.subr.mxu0 0.0
        %1243 = vmatpush1.msra.mxu0 0.0
        %1244 = vmatprep.subr.mxu0 0.0
        %1245 = vmatpush1.msra.mxu0 0.0
        %1246 = vmatprep.subr.mxu0 0.0
        %1247 = vmatpush1.msra.mxu0 0.0
        %1248 = vmatprep.subr.mxu0 0.0
        %1249 = vmatpush1.msra.mxu0 0.0
        %1250 = vmatprep.subr.mxu0 0.0
        %1251 = vmatpush1.msra.mxu0 0.0
        %1252 = vmatprep.subr.mxu0 0.0
        %1253 = vmatpush1.msra.mxu0 0.0
        %1254 = vmatprep.subr.mxu0 0.0
        %1255 = vmatpush1.msra.mxu0 0.0
        %1256 = vmatprep.subr.mxu0 0.0
        %1257 = vmatpush1.msra.mxu0 0.0
        %1258 = vmatprep.subr.mxu0 0.0
        %1259 = vmatpush1.msra.mxu0 0.0
        %1260 = vmatprep.subr.mxu0 0.0
        %1261 = vmatpush1.msra.mxu0 0.0
        %1262 = vmatprep.subr.mxu0 0.0
        %1263 = vmatpush1.msra.mxu0 0.0
        %1264 = vmatprep.mubr.f32.mxu0 0.0
        %1265 = vmatmul.mubr.f32.gmra.mrb[0].mxu0 %v1195
        %v1266 = vpop.f32.mrb[0].mxu0
        %v1267 = vadd.f32 0.0, %v1266
        %v1268 = vpop.f32.mrb[0].mxu0
        %v1269 = vadd.f32 0.0, %v1268
        %1270 = vmatprep.mubr.f32.mxu0 0.0
        %1271 = vmatmul.mubr.f32.gmra.mrb[0].mxu0 %v1198
        %v1272 = vpop.f32.mrb[0].mxu0
        %v1273 = vadd.f32 0.0, %v1272
        %v1274 = vpop.f32.mrb[0].mxu0
        %v1275 = vadd.f32 0.0, %v1274
        %1276 = vdwg.mxu0
        %1277 = vmatprep.subr.mxu0 %v1169
        %1278 = vmatpush1.msra.mxu0 %v1168
        %1279 = vmatprep.subr.mxu0 %v1143
        %1280 = vmatpush1.msra.mxu0 %v1142
        %1281 = vmatprep.subr.mxu0 %v1190
        %1282 = vmatpush1.msra.mxu0 %v1189
        %1283 = vmatprep.subr.mxu0 0.0
        %1284 = vmatpush1.msra.mxu0 0.0
        %1285 = vmatprep.subr.mxu0 0.0
        %1286 = vmatpush1.msra.mxu0 0.0
        %1287 = vmatprep.subr.mxu0 0.0
        %1288 = vmatpush1.msra.mxu0 0.0
        %1289 = vmatprep.subr.mxu0 0.0
        %1290 = vmatpush1.msra.mxu0 0.0
        %1291 = vmatprep.subr.mxu0 0.0
        %1292 = vmatpush1.msra.mxu0 0.0
        %1293 = vmatprep.subr.mxu0 0.0
        %1294 = vmatpush1.msra.mxu0 0.0
        %1295 = vmatprep.subr.mxu0 0.0
        %1296 = vmatpush1.msra.mxu0 0.0
        %1297 = vmatprep.subr.mxu0 0.0
        %1298 = vmatpush1.msra.mxu0 0.0
        %1299 = vmatprep.subr.mxu0 0.0
        %1300 = vmatpush1.msra.mxu0 0.0
        %1301 = vmatprep.subr.mxu0 0.0
        %1302 = vmatpush1.msra.mxu0 0.0
        %1303 = vmatprep.subr.mxu0 0.0
        %1304 = vmatpush1.msra.mxu0 0.0
        %1305 = vmatprep.subr.mxu0 0.0
        %1306 = vmatpush1.msra.mxu0 0.0
        %1307 = vmatprep.subr.mxu0 0.0
        %1308 = vmatpush1.msra.mxu0 0.0
        %1309 = vmatprep.subr.mxu0 0.0
        %1310 = vmatpush1.msra.mxu0 0.0
        %1311 = vmatprep.subr.mxu0 0.0
        %1312 = vmatpush1.msra.mxu0 0.0
        %1313 = vmatprep.subr.mxu0 0.0
        %1314 = vmatpush1.msra.mxu0 0.0
        %1315 = vmatprep.subr.mxu0 0.0
        %1316 = vmatpush1.msra.mxu0 0.0
        %1317 = vmatprep.subr.mxu0 0.0
        %1318 = vmatpush1.msra.mxu0 0.0
        %1319 = vmatprep.subr.mxu0 0.0
        %1320 = vmatpush1.msra.mxu0 0.0
        %1321 = vmatprep.subr.mxu0 0.0
        %1322 = vmatpush1.msra.mxu0 0.0
        %1323 = vmatprep.subr.mxu0 0.0
        %1324 = vmatpush1.msra.mxu0 0.0
        %1325 = vmatprep.subr.mxu0 0.0
        %1326 = vmatpush1.msra.mxu0 0.0
        %1327 = vmatprep.subr.mxu0 0.0
        %1328 = vmatpush1.msra.mxu0 0.0
        %1329 = vmatprep.subr.mxu0 0.0
        %1330 = vmatpush1.msra.mxu0 0.0
        %1331 = vmatprep.subr.mxu0 0.0
        %1332 = vmatpush1.msra.mxu0 0.0
        %1333 = vmatprep.subr.mxu0 0.0
        %1334 = vmatpush1.msra.mxu0 0.0
        %1335 = vmatprep.subr.mxu0 0.0
        %1336 = vmatpush1.msra.mxu0 0.0
        %1337 = vmatprep.subr.mxu0 0.0
        %1338 = vmatpush1.msra.mxu0 0.0
        %1339 = vmatprep.subr.mxu0 0.0
        %1340 = vmatpush1.msra.mxu0 0.0
        %1341 = vmatprep.mubr.f32.mxu0 0.0
        %1342 = vmatmul.mubr.f32.gmra.mrb[0].mxu0 %v1195
        %v1343 = vpop.f32.mrb[0].mxu0
        %v1344 = vadd.f32 0.0, %v1343
        %v1345 = vpop.f32.mrb[0].mxu0
        %v1346 = vadd.f32 0.0, %v1345
        %1347 = vmatprep.mubr.f32.mxu0 0.0
        %1348 = vmatmul.mubr.f32.gmra.mrb[0].mxu0 %v1198
        %v1349 = vpop.f32.mrb[0].mxu0
        %v1350 = vadd.f32 0.0, %v1349
        %v1351 = vpop.f32.mrb[0].mxu0
        %v1352 = vadd.f32 0.0, %v1351
        %1353 = vdwg.mxu0
        %v1354 = vld [vmem:[%s5] sm:$0xff]
        %v1355 = vld [vmem:[%s5 + $0x8] sm:$0xff]
        %1357 = vset.pattern.permute.xlu0 0
        %1358 = vperm.xlu0 %1357, %v1354
        %v1359 = vpop.permute.xlu0 %1358
        %1362 = vset.pattern.permute.xlu0 0
        %1363 = vperm.xlu0 %1362, %v1355
        %v1364 = vpop.permute.xlu0 %1363
        %v1366 = vmul.f32 %v1267, %v1359
        %v1367 = vmul.f32 %v1269, %v1359
        %v1368 = vmul.f32 %v1344, %v1359
        %v1369 = vmul.f32 %v1346, %v1359
        %v1370 = vmul.f32 %v1273, %v1364
        %v1371 = vmul.f32 %v1275, %v1364
        %v1372 = vmul.f32 %v1350, %v1364
        %v1373 = vmul.f32 %v1352, %v1364
        %v1374 = vld [vmem:[%s7] sm:$0xff]
        %v1375 = vld [vmem:[%s7 + $0x8] sm:$0xff]
        %1377 = vset.pattern.permute.xlu0 0
        %1378 = vperm.xlu0 %1377, %v1374
        %v1379 = vpop.permute.xlu0 %1378
        %1382 = vset.pattern.permute.xlu0 0
        %1383 = vperm.xlu0 %1382, %v1375
        %v1384 = vpop.permute.xlu0 %1383
        %v1386 = vadd.f32 %v1366, %v1379
        %v1387 = vadd.f32 %v1367, %v1379
        %v1388 = vadd.f32 %v1368, %v1379
        %v1389 = vadd.f32 %v1369, %v1379
        %v1390 = vadd.f32 %v1370, %v1384
        %v1391 = vadd.f32 %v1371, %v1384
        %v1392 = vadd.f32 %v1372, %v1384
        %v1393 = vadd.f32 %v1373, %v1384
        %v1394 = vmax.f32 %v1386, 0.0
        %v1395 = vmax.f32 %v1387, 0.0
        %v1396 = vmax.f32 %v1388, 0.0
        %v1397 = vmax.f32 %v1389, 0.0
        %v1398 = vmax.f32 %v1390, 0.0
        %v1399 = vmax.f32 %v1391, 0.0
        %v1400 = vmax.f32 %v1392, 0.0
        %v1401 = vmax.f32 %v1393, 0.0
        %v1402 = vmin.f32 %v1394, 15.0
        %v1403 = vmin.f32 %v1395, 15.0
        %v1404 = vmin.f32 %v1396, 15.0
        %v1405 = vmin.f32 %v1397, 15.0
        %v1406 = vmin.f32 %v1398, 15.0
        %v1407 = vmin.f32 %v1399, 15.0
        %v1408 = vmin.f32 %v1400, 15.0
        %v1409 = vmin.f32 %v1401, 15.0
        %v1410 = vround.ne.pseudo %v1402
        %v1411 = vround.ne.pseudo %v1403
        %v1412 = vround.ne.pseudo %v1404
        %v1413 = vround.ne.pseudo %v1405
        %v1414 = vround.ne.pseudo %v1406
        %v1415 = vround.ne.pseudo %v1407
        %v1416 = vround.ne.pseudo %v1408
        %v1417 = vround.ne.pseudo %v1409
        %1418 = vrot.lane.b32.xlu0 %v1410, 127
        %v1419 = vpop.permute.xlu0 %1418
        %1420 = vrot.lane.b32.xlu0 %v1414, 127
        %v1421 = vpop.permute.xlu0 %1420
        %1422 = vrot.lane.b32.xlu0 %v1411, 127
        %v1423 = vpop.permute.xlu0 %1422
        %1424 = vrot.lane.b32.xlu0 %v1415, 127
        %v1425 = vpop.permute.xlu0 %1424
        %1426 = vrot.lane.b32.xlu0 %v1412, 127
        %v1427 = vpop.permute.xlu0 %1426
        %1428 = vrot.lane.b32.xlu0 %v1416, 127
        %v1429 = vpop.permute.xlu0 %1428
        %1430 = vrot.lane.b32.xlu0 %v1413, 127
        %v1431 = vpop.permute.xlu0 %1430
        %1432 = vrot.lane.b32.xlu0 %v1417, 127
        %v1433 = vpop.permute.xlu0 %1432
        %v1434 = vsel %vm1182, %v1427, %v1431
        %v1435 = vsel %vm1182, %v1429, %v1433
        %v1436 = vsel %vm1182, %v1423, %v1427
        %v1437 = vsel %vm1182, %v1425, %v1429
        %v1438 = vsel %vm1182, %v1419, %v1423
        %v1439 = vsel %vm1182, %v1421, %v1425
        %v1440 = vsel %vm1182, %v1431, %v1419
        %v1441 = vsel %vm1182, %v1433, %v1421
        %v1442 = vmax.f32 %v1410, %v1438
        %v1443 = vmax.f32 %v1411, %v1436
        %v1444 = vmax.f32 %v1412, %v1434
        %v1445 = vmax.f32 %v1413, %v1440
        %v1446 = vmax.f32 %v1414, %v1439
        %v1447 = vmax.f32 %v1415, %v1437
        %v1448 = vmax.f32 %v1416, %v1435
        %v1449 = vmax.f32 %v1417, %v1441
        %v1450 = vld [vmem:[%s45] sm:$0xff]
        %v1451 = vld [vmem:[%s45 + $0x8] sm:$0xff]
        %v1452 = vld [vmem:[%s45 + $0x10] sm:$0xff]
        %v1453 = vld [vmem:[%s45 + $0x18] sm:$0xff]
        %v1454 = vld [vmem:[%s45 + $0x20] sm:$0xff]
        %v1455 = vld [vmem:[%s45 + $0x28] sm:$0xff]
        %v1456 = vld [vmem:[%s45 + $0x30] sm:$0xff]
        %v1457 = vld [vmem:[%s45 + $0x38] sm:$0xff]
        %v1458 = vld [vmem:[%s45 + $0x40] sm:$0xff]
        %v1459 = vld [vmem:[%s45 + $0x48] sm:$0xff]
        %v1460 = vld [vmem:[%s45 + $0x50] sm:$0xff]
        %v1461 = vld [vmem:[%s45 + $0x58] sm:$0xff]
        %v1462 = vld [vmem:[%s45 + $0x60] sm:$0xff]
        %v1463 = vld [vmem:[%s45 + $0x68] sm:$0xff]
        %v1464 = vld [vmem:[%s45 + $0x70] sm:$0xff]
        %v1465 = vld [vmem:[%s45 + $0x78] sm:$0xff]
        %v1466 = vld [vmem:[%s45 + $0x80] sm:$0xff]
        %v1467 = vld [vmem:[%s45 + $0x88] sm:$0xff]
        %v1468 = vld [vmem:[%s45 + $0x90] sm:$0xff]
        %v1469 = vld [vmem:[%s45 + $0x98] sm:$0xff]
        %v1470 = vld [vmem:[%s45 + $0xa0] sm:$0xff]
        %v1471 = vld [vmem:[%s45 + $0xa8] sm:$0xff]
        %v1472 = vld [vmem:[%s45 + $0xb0] sm:$0xff]
        %v1473 = vld [vmem:[%s45 + $0xb8] sm:$0xff]
        %v1474 = vld [vmem:[%s45 + $0xc0] sm:$0xff]
        %v1475 = vld [vmem:[%s45 + $0xc8] sm:$0xff]
        %v1476 = vld [vmem:[%s45 + $0xd0] sm:$0xff]
        %v1477 = vld [vmem:[%s45 + $0xd8] sm:$0xff]
        %v1478 = vld [vmem:[%s45 + $0xe0] sm:$0xff]
        %v1479 = vld [vmem:[%s45 + $0xe8] sm:$0xff]
        %v1480 = vld [vmem:[%s45 + $0xf0] sm:$0xff]
        %v1481 = vld [vmem:[%s45 + $0xf8] sm:$0xff]
        %v1482 = vld [vmem:[%s45 + $0x100] sm:$0xff]
        %v1483 = vld [vmem:[%s45 + $0x108] sm:$0xff]
        %v1484 = vld [vmem:[%s45 + $0x110] sm:$0xff]
        %v1485 = vld [vmem:[%s45 + $0x118] sm:$0xff]
        %v1486 = vld [vmem:[%s45 + $0x120] sm:$0xff]
        %v1487 = vld [vmem:[%s45 + $0x128] sm:$0xff]
        %v1488 = vld [vmem:[%s45 + $0x130] sm:$0xff]
        %v1489 = vld [vmem:[%s45 + $0x138] sm:$0xff]
        %v1490 = vld [vmem:[%s45 + $0x140] sm:$0xff]
        %v1491 = vld [vmem:[%s45 + $0x148] sm:$0xff]
        %v1492 = vld [vmem:[%s45 + $0x150] sm:$0xff]
        %v1493 = vld [vmem:[%s45 + $0x158] sm:$0xff]
        %v1494 = vld [vmem:[%s45 + $0x160] sm:$0xff]
        %v1495 = vld [vmem:[%s45 + $0x168] sm:$0xff]
        %v1496 = vld [vmem:[%s45 + $0x170] sm:$0xff]
        %v1497 = vld [vmem:[%s45 + $0x178] sm:$0xff]
        %v1498 = vld [vmem:[%s45 + $0x180] sm:$0xff]
        %v1499 = vld [vmem:[%s45 + $0x188] sm:$0xff]
        %v1500 = vld [vmem:[%s45 + $0x190] sm:$0xff]
        %v1501 = vld [vmem:[%s45 + $0x198] sm:$0xff]
        %v1502 = vld [vmem:[%s45 + $0x1a0] sm:$0xff]
        %v1503 = vld [vmem:[%s45 + $0x1a8] sm:$0xff]
        %v1504 = vld [vmem:[%s45 + $0x1b0] sm:$0xff]
        %v1505 = vld [vmem:[%s45 + $0x1b8] sm:$0xff]
        %v1506 = vld [vmem:[%s45 + $0x1c0] sm:$0xff]
        %v1507 = vld [vmem:[%s45 + $0x1c8] sm:$0xff]
        %v1508 = vld [vmem:[%s45 + $0x1d0] sm:$0xff]
        %v1509 = vld [vmem:[%s45 + $0x1d8] sm:$0xff]
        %v1510 = vld [vmem:[%s45 + $0x1e0] sm:$0xff]
        %v1511 = vld [vmem:[%s45 + $0x1e8] sm:$0xff]
        %v1512 = vld [vmem:[%s45 + $0x1f0] sm:$0xff]
        %v1513 = vld [vmem:[%s45 + $0x1f8] sm:$0xff]
        %v1514 = vld [vmem:[%s45 + $0x200] sm:$0xff]
        %v1515 = vld [vmem:[%s45 + $0x208] sm:$0xff]
        %v1516 = vld [vmem:[%s45 + $0x210] sm:$0xff]
        %v1517 = vld [vmem:[%s45 + $0x218] sm:$0xff]
        %v1518 = vld [vmem:[%s45 + $0x220] sm:$0xff]
        %v1519 = vld [vmem:[%s45 + $0x228] sm:$0xff]
        %v1520 = vld [vmem:[%s45 + $0x230] sm:$0xff]
        %v1521 = vld [vmem:[%s45 + $0x238] sm:$0xff]
        %v1522 = vld [vmem:[%s45 + $0x240] sm:$0xff]
        %v1523 = vld [vmem:[%s45 + $0x248] sm:$0xff]
        %v1524 = vld [vmem:[%s45 + $0x250] sm:$0xff]
        %v1525 = vld [vmem:[%s45 + $0x258] sm:$0xff]
        %v1526 = vld [vmem:[%s45 + $0x260] sm:$0xff]
        %v1527 = vld [vmem:[%s45 + $0x268] sm:$0xff]
        %v1528 = vld [vmem:[%s45 + $0x270] sm:$0xff]
        %v1529 = vld [vmem:[%s45 + $0x278] sm:$0xff]
        %v1530 = vld [vmem:[%s45 + $0x280] sm:$0xff]
        %v1531 = vld [vmem:[%s45 + $0x288] sm:$0xff]
        %v1532 = vld [vmem:[%s45 + $0x290] sm:$0xff]
        %v1533 = vld [vmem:[%s45 + $0x298] sm:$0xff]
        %v1534 = vld [vmem:[%s45 + $0x2a0] sm:$0xff]
        %v1535 = vld [vmem:[%s45 + $0x2a8] sm:$0xff]
        %v1536 = vld [vmem:[%s45 + $0x2b0] sm:$0xff]
        %v1537 = vld [vmem:[%s45 + $0x2b8] sm:$0xff]
        %v1538 = vld [vmem:[%s45 + $0x2c0] sm:$0xff]
        %v1539 = vld [vmem:[%s45 + $0x2c8] sm:$0xff]
        %v1540 = vld [vmem:[%s45 + $0x2d0] sm:$0xff]
        %v1541 = vld [vmem:[%s45 + $0x2d8] sm:$0xff]
        %v1542 = vld [vmem:[%s45 + $0x2e0] sm:$0xff]
        %v1543 = vld [vmem:[%s45 + $0x2e8] sm:$0xff]
        %v1544 = vld [vmem:[%s45 + $0x2f0] sm:$0xff]
        %v1545 = vld [vmem:[%s45 + $0x2f8] sm:$0xff]
        %v1546 = vld [vmem:[%s45 + $0x300] sm:$0xff]
        %v1547 = vld [vmem:[%s45 + $0x308] sm:$0xff]
        %v1548 = vld [vmem:[%s45 + $0x310] sm:$0xff]
        %v1549 = vld [vmem:[%s45 + $0x318] sm:$0xff]
        %v1550 = vld [vmem:[%s45 + $0x320] sm:$0xff]
        %v1551 = vld [vmem:[%s45 + $0x328] sm:$0xff]
        %v1552 = vld [vmem:[%s45 + $0x330] sm:$0xff]
        %v1553 = vld [vmem:[%s45 + $0x338] sm:$0xff]
        %v1554 = vld [vmem:[%s45 + $0x340] sm:$0xff]
        %v1555 = vld [vmem:[%s45 + $0x348] sm:$0xff]
        %v1556 = vld [vmem:[%s45 + $0x350] sm:$0xff]
        %v1557 = vld [vmem:[%s45 + $0x358] sm:$0xff]
        %v1558 = vld [vmem:[%s45 + $0x360] sm:$0xff]
        %v1559 = vld [vmem:[%s45 + $0x368] sm:$0xff]
        %v1560 = vld [vmem:[%s45 + $0x370] sm:$0xff]
        %v1561 = vld [vmem:[%s45 + $0x378] sm:$0xff]
        %v1562 = vld [vmem:[%s45 + $0x380] sm:$0xff]
        %v1563 = vld [vmem:[%s45 + $0x388] sm:$0xff]
        %v1564 = vld [vmem:[%s45 + $0x390] sm:$0xff]
        %v1565 = vld [vmem:[%s45 + $0x398] sm:$0xff]
        %v1566 = vld [vmem:[%s45 + $0x3a0] sm:$0xff]
        %v1567 = vld [vmem:[%s45 + $0x3a8] sm:$0xff]
        %v1568 = vld [vmem:[%s45 + $0x3b0] sm:$0xff]
        %v1569 = vld [vmem:[%s45 + $0x3b8] sm:$0xff]
        %v1570 = vld [vmem:[%s45 + $0x3c0] sm:$0xff]
        %v1571 = vld [vmem:[%s45 + $0x3c8] sm:$0xff]
        %v1572 = vld [vmem:[%s45 + $0x3d0] sm:$0xff]
        %v1573 = vld [vmem:[%s45 + $0x3d8] sm:$0xff]
        %v1574 = vld [vmem:[%s45 + $0x3e0] sm:$0xff]
        %v1575 = vld [vmem:[%s45 + $0x3e8] sm:$0xff]
        %v1576 = vld [vmem:[%s45 + $0x3f0] sm:$0xff]
        %v1577 = vld [vmem:[%s45 + $0x3f8] sm:$0xff]
        %1578 = vmatprep.subr.mxu0 %v1451
        %1579 = vmatpush1.msra.mxu0 %v1450
        %1580 = vmatprep.subr.mxu0 %v1453
        %1581 = vmatpush1.msra.mxu0 %v1452
        %1582 = vmatprep.subr.mxu0 %v1455
        %1583 = vmatpush1.msra.mxu0 %v1454
        %1584 = vmatprep.subr.mxu0 %v1457
        %1585 = vmatpush1.msra.mxu0 %v1456
        %1586 = vmatprep.subr.mxu0 %v1459
        %1587 = vmatpush1.msra.mxu0 %v1458
        %1588 = vmatprep.subr.mxu0 %v1461
        %1589 = vmatpush1.msra.mxu0 %v1460
        %1590 = vmatprep.subr.mxu0 %v1463
        %1591 = vmatpush1.msra.mxu0 %v1462
        %1592 = vmatprep.subr.mxu0 %v1465
        %1593 = vmatpush1.msra.mxu0 %v1464
        %1594 = vmatprep.subr.mxu0 %v1467
        %1595 = vmatpush1.msra.mxu0 %v1466
        %1596 = vmatprep.subr.mxu0 %v1469
        %1597 = vmatpush1.msra.mxu0 %v1468
        %1598 = vmatprep.subr.mxu0 %v1471
        %1599 = vmatpush1.msra.mxu0 %v1470
        %1600 = vmatprep.subr.mxu0 %v1473
        %1601 = vmatpush1.msra.mxu0 %v1472
        %1602 = vmatprep.subr.mxu0 %v1475
        %1603 = vmatpush1.msra.mxu0 %v1474
        %1604 = vmatprep.subr.mxu0 %v1477
        %1605 = vmatpush1.msra.mxu0 %v1476
        %1606 = vmatprep.subr.mxu0 %v1479
        %1607 = vmatpush1.msra.mxu0 %v1478
        %1608 = vmatprep.subr.mxu0 %v1481
        %1609 = vmatpush1.msra.mxu0 %v1480
        %1610 = vmatprep.subr.mxu0 %v1483
        %1611 = vmatpush1.msra.mxu0 %v1482
        %1612 = vmatprep.subr.mxu0 %v1485
        %1613 = vmatpush1.msra.mxu0 %v1484
        %1614 = vmatprep.subr.mxu0 %v1487
        %1615 = vmatpush1.msra.mxu0 %v1486
        %1616 = vmatprep.subr.mxu0 %v1489
        %1617 = vmatpush1.msra.mxu0 %v1488
        %1618 = vmatprep.subr.mxu0 %v1491
        %1619 = vmatpush1.msra.mxu0 %v1490
        %1620 = vmatprep.subr.mxu0 %v1493
        %1621 = vmatpush1.msra.mxu0 %v1492
        %1622 = vmatprep.subr.mxu0 %v1495
        %1623 = vmatpush1.msra.mxu0 %v1494
        %1624 = vmatprep.subr.mxu0 %v1497
        %1625 = vmatpush1.msra.mxu0 %v1496
        %1626 = vmatprep.subr.mxu0 %v1499
        %1627 = vmatpush1.msra.mxu0 %v1498
        %1628 = vmatprep.subr.mxu0 %v1501
        %1629 = vmatpush1.msra.mxu0 %v1500
        %1630 = vmatprep.subr.mxu0 %v1503
        %1631 = vmatpush1.msra.mxu0 %v1502
        %1632 = vmatprep.subr.mxu0 %v1505
        %1633 = vmatpush1.msra.mxu0 %v1504
        %1634 = vmatprep.subr.mxu0 %v1507
        %1635 = vmatpush1.msra.mxu0 %v1506
        %1636 = vmatprep.subr.mxu0 %v1509
        %1637 = vmatpush1.msra.mxu0 %v1508
        %1638 = vmatprep.subr.mxu0 %v1511
        %1639 = vmatpush1.msra.mxu0 %v1510
        %1640 = vmatprep.subr.mxu0 %v1513
        %1641 = vmatpush1.msra.mxu0 %v1512
        %1642 = vmatprep.mubr.f32.mxu0 %v1443
        %1643 = vmatmul.mubr.f32.gmra.mrb[0].mxu0 %v1442
        %v1644 = vpop.f32.mrb[0].mxu0
        %v1645 = vadd.f32 0.0, %v1644
        %v1646 = vpop.f32.mrb[0].mxu0
        %v1647 = vadd.f32 0.0, %v1646
        %1648 = vmatprep.mubr.f32.mxu0 %v1447
        %1649 = vmatmul.mubr.f32.gmra.mrb[0].mxu0 %v1446
        %v1650 = vpop.f32.mrb[0].mxu0
        %v1651 = vadd.f32 0.0, %v1650
        %v1652 = vpop.f32.mrb[0].mxu0
        %v1653 = vadd.f32 0.0, %v1652
        %1654 = vdwg.mxu0
        %1655 = vmatprep.subr.mxu0 %v1515
        %1656 = vmatpush1.msra.mxu0 %v1514
        %1657 = vmatprep.subr.mxu0 %v1517
        %1658 = vmatpush1.msra.mxu0 %v1516
        %1659 = vmatprep.subr.mxu0 %v1519
        %1660 = vmatpush1.msra.mxu0 %v1518
        %1661 = vmatprep.subr.mxu0 %v1521
        %1662 = vmatpush1.msra.mxu0 %v1520
        %1663 = vmatprep.subr.mxu0 %v1523
        %1664 = vmatpush1.msra.mxu0 %v1522
        %1665 = vmatprep.subr.mxu0 %v1525
        %1666 = vmatpush1.msra.mxu0 %v1524
        %1667 = vmatprep.subr.mxu0 %v1527
        %1668 = vmatpush1.msra.mxu0 %v1526
        %1669 = vmatprep.subr.mxu0 %v1529
        %1670 = vmatpush1.msra.mxu0 %v1528
        %1671 = vmatprep.subr.mxu0 %v1531
        %1672 = vmatpush1.msra.mxu0 %v1530
        %1673 = vmatprep.subr.mxu0 %v1533
        %1674 = vmatpush1.msra.mxu0 %v1532
        %1675 = vmatprep.subr.mxu0 %v1535
        %1676 = vmatpush1.msra.mxu0 %v1534
        %1677 = vmatprep.subr.mxu0 %v1537
        %1678 = vmatpush1.msra.mxu0 %v1536
        %1679 = vmatprep.subr.mxu0 %v1539
        %1680 = vmatpush1.msra.mxu0 %v1538
        %1681 = vmatprep.subr.mxu0 %v1541
        %1682 = vmatpush1.msra.mxu0 %v1540
        %1683 = vmatprep.subr.mxu0 %v1543
        %1684 = vmatpush1.msra.mxu0 %v1542
        %1685 = vmatprep.subr.mxu0 %v1545
        %1686 = vmatpush1.msra.mxu0 %v1544
        %1687 = vmatprep.subr.mxu0 %v1547
        %1688 = vmatpush1.msra.mxu0 %v1546
        %1689 = vmatprep.subr.mxu0 %v1549
        %1690 = vmatpush1.msra.mxu0 %v1548
        %1691 = vmatprep.subr.mxu0 %v1551
        %1692 = vmatpush1.msra.mxu0 %v1550
        %1693 = vmatprep.subr.mxu0 %v1553
        %1694 = vmatpush1.msra.mxu0 %v1552
        %1695 = vmatprep.subr.mxu0 %v1555
        %1696 = vmatpush1.msra.mxu0 %v1554
        %1697 = vmatprep.subr.mxu0 %v1557
        %1698 = vmatpush1.msra.mxu0 %v1556
        %1699 = vmatprep.subr.mxu0 %v1559
        %1700 = vmatpush1.msra.mxu0 %v1558
        %1701 = vmatprep.subr.mxu0 %v1561
        %1702 = vmatpush1.msra.mxu0 %v1560
        %1703 = vmatprep.subr.mxu0 %v1563
        %1704 = vmatpush1.msra.mxu0 %v1562
        %1705 = vmatprep.subr.mxu0 %v1565
        %1706 = vmatpush1.msra.mxu0 %v1564
        %1707 = vmatprep.subr.mxu0 %v1567
        %1708 = vmatpush1.msra.mxu0 %v1566
        %1709 = vmatprep.subr.mxu0 %v1569
        %1710 = vmatpush1.msra.mxu0 %v1568
        %1711 = vmatprep.subr.mxu0 %v1571
        %1712 = vmatpush1.msra.mxu0 %v1570
        %1713 = vmatprep.subr.mxu0 %v1573
        %1714 = vmatpush1.msra.mxu0 %v1572
        %1715 = vmatprep.subr.mxu0 %v1575
        %1716 = vmatpush1.msra.mxu0 %v1574
        %1717 = vmatprep.subr.mxu0 %v1577
        %1718 = vmatpush1.msra.mxu0 %v1576
        %1719 = vmatprep.mubr.f32.mxu0 %v1445
        %1720 = vmatmul.mubr.f32.gmra.mrb[0].mxu0 %v1444
        %v1721 = vpop.f32.mrb[0].mxu0
        %v1722 = vadd.f32 %v1645, %v1721
        %v1723 = vpop.f32.mrb[0].mxu0
        %v1724 = vadd.f32 %v1647, %v1723
        %1725 = vmatprep.mubr.f32.mxu0 %v1449
        %1726 = vmatmul.mubr.f32.gmra.mrb[0].mxu0 %v1448
        %v1727 = vpop.f32.mrb[0].mxu0
        %v1728 = vadd.f32 %v1651, %v1727
        %v1729 = vpop.f32.mrb[0].mxu0
        %v1730 = vadd.f32 %v1653, %v1729
        %1731 = vdwg.mxu0
        %1732 = vrot.lane.b32.xlu0 %v1722, 1
        %v1733 = vpop.permute.xlu0 %1732
        %1734 = vrot.lane.b32.xlu0 %v1728, 1
        %v1735 = vpop.permute.xlu0 %1734
        %1736 = vrot.lane.b32.xlu0 %v1724, 1
        %v1737 = vpop.permute.xlu0 %1736
        %1738 = vrot.lane.b32.xlu0 %v1730, 1
        %v1739 = vpop.permute.xlu0 %1738
        %v1740 = vsel %vm1161, %v1733, %v1737
        %v1741 = vsel %vm1161, %v1735, %v1739
        %v1742 = vsel %vm1161, %v1737, %v1733
        %v1743 = vsel %vm1161, %v1739, %v1735
        %v1744 = vsel %vm1149, %v1742, 0.0
        %v1745 = vsel %vm1150, %v1740, 0.0
        %v1746 = vsel %vm1149, %v1743, 0.0
        %v1747 = vsel %vm1150, %v1741, 0.0
        %vm1748 = vcmp.lt.s32.totalorder %v1145, 255
        %vm1749 = vcmp.lt.s32.totalorder %v1146, 255
        %1750 = vrot.lane.b32.xlu0 %v1722, 127
        %v1751 = vpop.permute.xlu0 %1750
        %1752 = vrot.lane.b32.xlu0 %v1728, 127
        %v1753 = vpop.permute.xlu0 %1752
        %1754 = vrot.lane.b32.xlu0 %v1724, 127
        %v1755 = vpop.permute.xlu0 %1754
        %1756 = vrot.lane.b32.xlu0 %v1730, 127
        %v1757 = vpop.permute.xlu0 %1756
        %v1758 = vsel %vm1182, %v1751, %v1755
        %v1759 = vsel %vm1182, %v1753, %v1757
        %v1760 = vsel %vm1182, %v1755, %v1751
        %v1761 = vsel %vm1182, %v1757, %v1753
        %v1762 = vsel %vm1748, %v1758, 0.0
        %v1763 = vsel %vm1749, %v1760, 0.0
        %v1764 = vsel %vm1748, %v1759, 0.0
        %v1765 = vsel %vm1749, %v1761, 0.0
        %v1766 = vld [vmem:[%s9] sm:$0xff]
        %v1767 = vld [vmem:[%s9 + $0x8] sm:$0xff]
        %vm1768 = vcmask 392192
        %v1770 = vsel %vm1768, %v1766, 0
        %v1773 = vsel %vm1768, %v1767, 0
        %1775 = vmatprep.subr.mxu0 %v1745
        %1776 = vmatpush1.msra.mxu0 %v1744
        %1777 = vmatprep.subr.mxu0 %v1747
        %1778 = vmatpush1.msra.mxu0 %v1746
        %1779 = vmatprep.subr.mxu0 %v1724
        %1780 = vmatpush1.msra.mxu0 %v1722
        %1781 = vmatprep.subr.mxu0 %v1730
        %1782 = vmatpush1.msra.mxu0 %v1728
        %1783 = vmatprep.subr.mxu0 %v1763
        %1784 = vmatpush1.msra.mxu0 %v1762
        %1785 = vmatprep.subr.mxu0 %v1765
        %1786 = vmatpush1.msra.mxu0 %v1764
        %1787 = vmatprep.subr.mxu0 0.0
        %1788 = vmatpush1.msra.mxu0 0.0
        %1789 = vmatprep.subr.mxu0 0.0
        %1790 = vmatpush1.msra.mxu0 0.0
        %1791 = vmatprep.subr.mxu0 0.0
        %1792 = vmatpush1.msra.mxu0 0.0
        %1793 = vmatprep.subr.mxu0 0.0
        %1794 = vmatpush1.msra.mxu0 0.0
        %1795 = vmatprep.subr.mxu0 0.0
        %1796 = vmatpush1.msra.mxu0 0.0
        %1797 = vmatprep.subr.mxu0 0.0
        %1798 = vmatpush1.msra.mxu0 0.0
        %1799 = vmatprep.subr.mxu0 0.0
        %1800 = vmatpush1.msra.mxu0 0.0
        %1801 = vmatprep.subr.mxu0 0.0
        %1802 = vmatpush1.msra.mxu0 0.0
        %1803 = vmatprep.subr.mxu0 0.0
        %1804 = vmatpush1.msra.mxu0 0.0
        %1805 = vmatprep.subr.mxu0 0.0
        %1806 = vmatpush1.msra.mxu0 0.0
        %1807 = vmatprep.subr.mxu0 0.0
        %1808 = vmatpush1.msra.mxu0 0.0
        %1809 = vmatprep.subr.mxu0 0.0
        %1810 = vmatpush1.msra.mxu0 0.0
        %1811 = vmatprep.subr.mxu0 0.0
        %1812 = vmatpush1.msra.mxu0 0.0
        %1813 = vmatprep.subr.mxu0 0.0
        %1814 = vmatpush1.msra.mxu0 0.0
        %1815 = vmatprep.subr.mxu0 0.0
        %1816 = vmatpush1.msra.mxu0 0.0
        %1817 = vmatprep.subr.mxu0 0.0
        %1818 = vmatpush1.msra.mxu0 0.0
        %1819 = vmatprep.subr.mxu0 0.0
        %1820 = vmatpush1.msra.mxu0 0.0
        %1821 = vmatprep.subr.mxu0 0.0
        %1822 = vmatpush1.msra.mxu0 0.0
        %1823 = vmatprep.subr.mxu0 0.0
        %1824 = vmatpush1.msra.mxu0 0.0
        %1825 = vmatprep.subr.mxu0 0.0
        %1826 = vmatpush1.msra.mxu0 0.0
        %1827 = vmatprep.subr.mxu0 0.0
        %1828 = vmatpush1.msra.mxu0 0.0
        %1829 = vmatprep.subr.mxu0 0.0
        %1830 = vmatpush1.msra.mxu0 0.0
        %1831 = vmatprep.subr.mxu0 0.0
        %1832 = vmatpush1.msra.mxu0 0.0
        %1833 = vmatprep.subr.mxu0 0.0
        %1834 = vmatpush1.msra.mxu0 0.0
        %1835 = vmatprep.subr.mxu0 0.0
        %1836 = vmatpush1.msra.mxu0 0.0
        %1837 = vmatprep.subr.mxu0 0.0
        %1838 = vmatpush1.msra.mxu0 0.0
        %1839 = vmatprep.mubr.f32.mxu0 0.0
        %1840 = vmatmul.mubr.f32.gmra.mrb[0].mxu0 %v1770
        %v1841 = vpop.f32.mrb[0].mxu0
        %v1842 = vadd.f32 0.0, %v1841
        %v1843 = vpop.f32.mrb[0].mxu0
        %v1844 = vadd.f32 0.0, %v1843
        %1845 = vmatprep.mubr.f32.mxu0 0.0
        %1846 = vmatmul.mubr.f32.gmra.mrb[0].mxu0 %v1773
        %v1847 = vpop.f32.mrb[0].mxu0
        %v1848 = vadd.f32 0.0, %v1847
        %v1849 = vpop.f32.mrb[0].mxu0
        %v1850 = vadd.f32 0.0, %v1849
        %1851 = vdwg.mxu0
        %v1852 = vld [vmem:[%s11] sm:$0xff]
        %v1853 = vld [vmem:[%s11 + $0x8] sm:$0xff]
        %1855 = vset.pattern.permute.xlu0 0
        %1856 = vperm.xlu0 %1855, %v1852
        %v1857 = vpop.permute.xlu0 %1856
        %1860 = vset.pattern.permute.xlu0 0
        %1861 = vperm.xlu0 %1860, %v1853
        %v1862 = vpop.permute.xlu0 %1861
        %v1864 = vmul.f32 %v1842, %v1857
        %v1865 = vmul.f32 %v1844, %v1857
        %v1866 = vmul.f32 %v1848, %v1862
        %v1867 = vmul.f32 %v1850, %v1862
        %v1868 = vld [vmem:[%s13] sm:$0xff]
        %v1869 = vld [vmem:[%s13 + $0x8] sm:$0xff]
        %1871 = vset.pattern.permute.xlu0 0
        %1872 = vperm.xlu0 %1871, %v1868
        %v1873 = vpop.permute.xlu0 %1872
        %1876 = vset.pattern.permute.xlu0 0
        %1877 = vperm.xlu0 %1876, %v1869
        %v1878 = vpop.permute.xlu0 %1877
        %v1880 = vadd.f32 %v1864, %v1873
        %v1881 = vadd.f32 %v1865, %v1873
        %v1882 = vadd.f32 %v1866, %v1878
        %v1883 = vadd.f32 %v1867, %v1878
        %v1884 = vmax.f32 %v1880, 0.0
        %v1885 = vmax.f32 %v1881, 0.0
        %v1886 = vmax.f32 %v1882, 0.0
        %v1887 = vmax.f32 %v1883, 0.0
        %v1888 = vmin.f32 %v1884, 15.0
        %v1889 = vmin.f32 %v1885, 15.0
        %v1890 = vmin.f32 %v1886, 15.0
        %v1891 = vmin.f32 %v1887, 15.0
        %v1892 = vround.ne.pseudo %v1888
        %v1893 = vround.ne.pseudo %v1889
        %v1894 = vround.ne.pseudo %v1890
        %v1895 = vround.ne.pseudo %v1891
        %1896 = vrot.lane.b32.xlu0 %v1892, 127
        %v1897 = vpop.permute.xlu0 %1896
        %1898 = vrot.lane.b32.xlu0 %v1894, 127
        %v1899 = vpop.permute.xlu0 %1898
        %1900 = vrot.lane.b32.xlu0 %v1893, 127
        %v1901 = vpop.permute.xlu0 %1900
        %1902 = vrot.lane.b32.xlu0 %v1895, 127
        %v1903 = vpop.permute.xlu0 %1902
        %v1904 = vsel %vm1182, %v1897, %v1901
        %v1905 = vsel %vm1182, %v1899, %v1903
        %v1906 = vsel %vm1182, %v1901, %v1897
        %v1907 = vsel %vm1182, %v1903, %v1899
        %v1908 = vmax.f32 %v1892, %v1904
        %v1909 = vmax.f32 %v1893, %v1906
        %v1910 = vmax.f32 %v1894, %v1905
        %v1911 = vmax.f32 %v1895, %v1907
        %v1912 = vld [vmem:[%s47] sm:$0xff]
        %v1913 = vld [vmem:[%s47 + $0x8] sm:$0xff]
        %v1914 = vld [vmem:[%s47 + $0x10] sm:$0xff]
        %v1915 = vld [vmem:[%s47 + $0x18] sm:$0xff]
        %v1916 = vld [vmem:[%s47 + $0x20] sm:$0xff]
        %v1917 = vld [vmem:[%s47 + $0x28] sm:$0xff]
        %v1918 = vld [vmem:[%s47 + $0x30] sm:$0xff]
        %v1919 = vld [vmem:[%s47 + $0x38] sm:$0xff]
        %v1920 = vld [vmem:[%s47 + $0x40] sm:$0xff]
        %v1921 = vld [vmem:[%s47 + $0x48] sm:$0xff]
        %v1922 = vld [vmem:[%s47 + $0x50] sm:$0xff]
        %v1923 = vld [vmem:[%s47 + $0x58] sm:$0xff]
        %v1924 = vld [vmem:[%s47 + $0x60] sm:$0xff]
        %v1925 = vld [vmem:[%s47 + $0x68] sm:$0xff]
        %v1926 = vld [vmem:[%s47 + $0x70] sm:$0xff]
        %v1927 = vld [vmem:[%s47 + $0x78] sm:$0xff]
        %v1928 = vld [vmem:[%s47 + $0x80] sm:$0xff]
        %v1929 = vld [vmem:[%s47 + $0x88] sm:$0xff]
        %v1930 = vld [vmem:[%s47 + $0x90] sm:$0xff]
        %v1931 = vld [vmem:[%s47 + $0x98] sm:$0xff]
        %v1932 = vld [vmem:[%s47 + $0xa0] sm:$0xff]
        %v1933 = vld [vmem:[%s47 + $0xa8] sm:$0xff]
        %v1934 = vld [vmem:[%s47 + $0xb0] sm:$0xff]
        %v1935 = vld [vmem:[%s47 + $0xb8] sm:$0xff]
        %v1936 = vld [vmem:[%s47 + $0xc0] sm:$0xff]
        %v1937 = vld [vmem:[%s47 + $0xc8] sm:$0xff]
        %v1938 = vld [vmem:[%s47 + $0xd0] sm:$0xff]
        %v1939 = vld [vmem:[%s47 + $0xd8] sm:$0xff]
        %v1940 = vld [vmem:[%s47 + $0xe0] sm:$0xff]
        %v1941 = vld [vmem:[%s47 + $0xe8] sm:$0xff]
        %v1942 = vld [vmem:[%s47 + $0xf0] sm:$0xff]
        %v1943 = vld [vmem:[%s47 + $0xf8] sm:$0xff]
        %1944 = vmatprep.subr.mxu0 0.0
        %1945 = vmatpush1.msra.mxu0 %v1912
        %1946 = vmatprep.subr.mxu0 0.0
        %1947 = vmatpush1.msra.mxu0 %v1913
        %1948 = vmatprep.subr.mxu0 0.0
        %1949 = vmatpush1.msra.mxu0 %v1914
        %1950 = vmatprep.subr.mxu0 0.0
        %1951 = vmatpush1.msra.mxu0 %v1915
        %1952 = vmatprep.subr.mxu0 0.0
        %1953 = vmatpush1.msra.mxu0 %v1916
        %1954 = vmatprep.subr.mxu0 0.0
        %1955 = vmatpush1.msra.mxu0 %v1917
        %1956 = vmatprep.subr.mxu0 0.0
        %1957 = vmatpush1.msra.mxu0 %v1918
        %1958 = vmatprep.subr.mxu0 0.0
        %1959 = vmatpush1.msra.mxu0 %v1919
        %1960 = vmatprep.subr.mxu0 0.0
        %1961 = vmatpush1.msra.mxu0 %v1920
        %1962 = vmatprep.subr.mxu0 0.0
        %1963 = vmatpush1.msra.mxu0 %v1921
        %1964 = vmatprep.subr.mxu0 0.0
        %1965 = vmatpush1.msra.mxu0 %v1922
        %1966 = vmatprep.subr.mxu0 0.0
        %1967 = vmatpush1.msra.mxu0 %v1923
        %1968 = vmatprep.subr.mxu0 0.0
        %1969 = vmatpush1.msra.mxu0 %v1924
        %1970 = vmatprep.subr.mxu0 0.0
        %1971 = vmatpush1.msra.mxu0 %v1925
        %1972 = vmatprep.subr.mxu0 0.0
        %1973 = vmatpush1.msra.mxu0 %v1926
        %1974 = vmatprep.subr.mxu0 0.0
        %1975 = vmatpush1.msra.mxu0 %v1927
        %1976 = vmatprep.subr.mxu0 0.0
        %1977 = vmatpush1.msra.mxu0 %v1928
        %1978 = vmatprep.subr.mxu0 0.0
        %1979 = vmatpush1.msra.mxu0 %v1929
        %1980 = vmatprep.subr.mxu0 0.0
        %1981 = vmatpush1.msra.mxu0 %v1930
        %1982 = vmatprep.subr.mxu0 0.0
        %1983 = vmatpush1.msra.mxu0 %v1931
        %1984 = vmatprep.subr.mxu0 0.0
        %1985 = vmatpush1.msra.mxu0 %v1932
        %1986 = vmatprep.subr.mxu0 0.0
        %1987 = vmatpush1.msra.mxu0 %v1933
        %1988 = vmatprep.subr.mxu0 0.0
        %1989 = vmatpush1.msra.mxu0 %v1934
        %1990 = vmatprep.subr.mxu0 0.0
        %1991 = vmatpush1.msra.mxu0 %v1935
        %1992 = vmatprep.subr.mxu0 0.0
        %1993 = vmatpush1.msra.mxu0 %v1936
        %1994 = vmatprep.subr.mxu0 0.0
        %1995 = vmatpush1.msra.mxu0 %v1937
        %1996 = vmatprep.subr.mxu0 0.0
        %1997 = vmatpush1.msra.mxu0 %v1938
        %1998 = vmatprep.subr.mxu0 0.0
        %1999 = vmatpush1.msra.mxu0 %v1939
        %2000 = vmatprep.subr.mxu0 0.0
        %2001 = vmatpush1.msra.mxu0 %v1940
        %2002 = vmatprep.subr.mxu0 0.0
        %2003 = vmatpush1.msra.mxu0 %v1941
        %2004 = vmatprep.subr.mxu0 0.0
        %2005 = vmatpush1.msra.mxu0 %v1942
        %2006 = vmatprep.subr.mxu0 0.0
        %2007 = vmatpush1.msra.mxu0 %v1943
        %2008 = vmatprep.mubr.f32.mxu0 %v1909
        %2009 = vmatmul.mubr.f32.gmra.mrb[0].mxu0 %v1908
        %v2010 = vpop.f32.mrb[0].mxu0
        %v2011 = vadd.f32 0.0, %v2010
        %v2012 = vpop.f32.mrb[0].mxu0
        %2013 = vmatprep.mubr.f32.mxu0 %v1911
        %2014 = vmatmul.mubr.f32.gmra.mrb[0].mxu0 %v1910
        %v2015 = vpop.f32.mrb[0].mxu0
        %v2016 = vadd.f32 0.0, %v2015
        %v2017 = vpop.f32.mrb[0].mxu0
        %2018 = vdwg.mxu0
        %2019 = vrot.lane.b32.xlu0 %v2011, 1
        %v2020 = vpop.permute.xlu0 %2019
        %2021 = vrot.lane.b32.xlu0 %v2016, 1
        %v2022 = vpop.permute.xlu0 %2021
        %v2023 = vsel %vm1149, %v2020, 0.0
        %v2024 = vsel %vm1149, %v2022, 0.0
        %2025 = vrot.lane.b32.xlu0 %v2011, 127
        %v2026 = vpop.permute.xlu0 %2025
        %2027 = vrot.lane.b32.xlu0 %v2016, 127
        %v2028 = vpop.permute.xlu0 %2027
        %v2029 = vsel %vm1182, %v2026, 0.0
        %v2030 = vsel %vm1182, %v2028, 0.0
        %v2031 = vld [vmem:[%s15] sm:$0xff]
        %v2032 = vld [vmem:[%s15 + $0x8] sm:$0xff]
        %v2034 = vsel %vm1768, %v2031, 0
        %v2037 = vsel %vm1768, %v2032, 0
        %2039 = vmatprep.subr.mxu0 0.0
        %2040 = vmatpush1.msra.mxu0 %v2023
        %2041 = vmatprep.subr.mxu0 0.0
        %2042 = vmatpush1.msra.mxu0 %v2024
        %2043 = vmatprep.subr.mxu0 0.0
        %2044 = vmatpush1.msra.mxu0 %v2011
        %2045 = vmatprep.subr.mxu0 0.0
        %2046 = vmatpush1.msra.mxu0 %v2016
        %2047 = vmatprep.subr.mxu0 0.0
        %2048 = vmatpush1.msra.mxu0 %v2029
        %2049 = vmatprep.subr.mxu0 0.0
        %2050 = vmatpush1.msra.mxu0 %v2030
        %2051 = vmatprep.subr.mxu0 0.0
        %2052 = vmatpush1.msra.mxu0 0.0
        %2053 = vmatprep.subr.mxu0 0.0
        %2054 = vmatpush1.msra.mxu0 0.0
        %2055 = vmatprep.subr.mxu0 0.0
        %2056 = vmatpush1.msra.mxu0 0.0
        %2057 = vmatprep.subr.mxu0 0.0
        %2058 = vmatpush1.msra.mxu0 0.0
        %2059 = vmatprep.subr.mxu0 0.0
        %2060 = vmatpush1.msra.mxu0 0.0
        %2061 = vmatprep.subr.mxu0 0.0
        %2062 = vmatpush1.msra.mxu0 0.0
        %2063 = vmatprep.subr.mxu0 0.0
        %2064 = vmatpush1.msra.mxu0 0.0
        %2065 = vmatprep.subr.mxu0 0.0
        %2066 = vmatpush1.msra.mxu0 0.0
        %2067 = vmatprep.subr.mxu0 0.0
        %2068 = vmatpush1.msra.mxu0 0.0
        %2069 = vmatprep.subr.mxu0 0.0
        %2070 = vmatpush1.msra.mxu0 0.0
        %2071 = vmatprep.subr.mxu0 0.0
        %2072 = vmatpush1.msra.mxu0 0.0
        %2073 = vmatprep.subr.mxu0 0.0
        %2074 = vmatpush1.msra.mxu0 0.0
        %2075 = vmatprep.subr.mxu0 0.0
        %2076 = vmatpush1.msra.mxu0 0.0
        %2077 = vmatprep.subr.mxu0 0.0
        %2078 = vmatpush1.msra.mxu0 0.0
        %2079 = vmatprep.subr.mxu0 0.0
        %2080 = vmatpush1.msra.mxu0 0.0
        %2081 = vmatprep.subr.mxu0 0.0
        %2082 = vmatpush1.msra.mxu0 0.0
        %2083 = vmatprep.subr.mxu0 0.0
        %2084 = vmatpush1.msra.mxu0 0.0
        %2085 = vmatprep.subr.mxu0 0.0
        %2086 = vmatpush1.msra.mxu0 0.0
        %2087 = vmatprep.subr.mxu0 0.0
        %2088 = vmatpush1.msra.mxu0 0.0
        %2089 = vmatprep.subr.mxu0 0.0
        %2090 = vmatpush1.msra.mxu0 0.0
        %2091 = vmatprep.subr.mxu0 0.0
        %2092 = vmatpush1.msra.mxu0 0.0
        %2093 = vmatprep.subr.mxu0 0.0
        %2094 = vmatpush1.msra.mxu0 0.0
        %2095 = vmatprep.subr.mxu0 0.0
        %2096 = vmatpush1.msra.mxu0 0.0
        %2097 = vmatprep.subr.mxu0 0.0
        %2098 = vmatpush1.msra.mxu0 0.0
        %2099 = vmatprep.subr.mxu0 0.0
        %2100 = vmatpush1.msra.mxu0 0.0
        %2101 = vmatprep.subr.mxu0 0.0
        %2102 = vmatpush1.msra.mxu0 0.0
        %2103 = vmatprep.mubr.f32.mxu0 0.0
        %2104 = vmatmul.mubr.f32.gmra.mrb[0].mxu0 %v2034
        %v2105 = vpop.f32.mrb[0].mxu0
        %v2106 = vadd.f32 0.0, %v2105
        %v2107 = vpop.f32.mrb[0].mxu0
        %2108 = vmatprep.mubr.f32.mxu0 0.0
        %2109 = vmatmul.mubr.f32.gmra.mrb[0].mxu0 %v2037
        %v2110 = vpop.f32.mrb[0].mxu0
        %v2111 = vadd.f32 0.0, %v2110
        %v2112 = vpop.f32.mrb[0].mxu0
        %2113 = vdwg.mxu0
        %v2114 = vld [vmem:[%s17] sm:$0xff]
        %v2115 = vld [vmem:[%s17 + $0x8] sm:$0xff]
        %2117 = vset.pattern.permute.xlu0 0
        %2118 = vperm.xlu0 %2117, %v2114
        %v2119 = vpop.permute.xlu0 %2118
        %2122 = vset.pattern.permute.xlu0 0
        %2123 = vperm.xlu0 %2122, %v2115
        %v2124 = vpop.permute.xlu0 %2123
        %v2126 = vmul.f32 %v2106, %v2119
        %v2127 = vmul.f32 %v2111, %v2124
        %v2128 = vld [vmem:[%s19] sm:$0xff]
        %v2129 = vld [vmem:[%s19 + $0x8] sm:$0xff]
        %2131 = vset.pattern.permute.xlu0 0
        %2132 = vperm.xlu0 %2131, %v2128
        %v2133 = vpop.permute.xlu0 %2132
        %2136 = vset.pattern.permute.xlu0 0
        %2137 = vperm.xlu0 %2136, %v2129
        %v2138 = vpop.permute.xlu0 %2137
        %v2140 = vadd.f32 %v2126, %v2133
        %v2141 = vadd.f32 %v2127, %v2138
        %v2142 = vmax.f32 %v2140, 0.0
        %v2143 = vmax.f32 %v2141, 0.0
        %v2144 = vmin.f32 %v2142, 15.0
        %v2145 = vmin.f32 %v2143, 15.0
        %v2146 = vround.ne.pseudo %v2144
        %v2147 = vround.ne.pseudo %v2145
        %2148 = vrot.lane.b32.xlu0 %v2146, 127
        %v2149 = vpop.permute.xlu0 %2148
        %2150 = vrot.lane.b32.xlu0 %v2147, 127
        %v2151 = vpop.permute.xlu0 %2150
        %v2152 = vmax.f32 %v2146, %v2149
        %v2153 = vmax.f32 %v2147, %v2151
        %v2154 = vld [vmem:[%s49] sm:$0xff]
        %v2155 = vld [vmem:[%s49 + $0x8] sm:$0xff]
        %v2156 = vld [vmem:[%s49 + $0x10] sm:$0xff]
        %v2157 = vld [vmem:[%s49 + $0x18] sm:$0xff]
        %v2158 = vld [vmem:[%s49 + $0x20] sm:$0xff]
        %v2159 = vld [vmem:[%s49 + $0x28] sm:$0xff]
        %v2160 = vld [vmem:[%s49 + $0x30] sm:$0xff]
        %v2161 = vld [vmem:[%s49 + $0x38] sm:$0xff]
        %v2162 = vld [vmem:[%s49 + $0x40] sm:$0xff]
        %v2163 = vld [vmem:[%s49 + $0x48] sm:$0xff]
        %v2164 = vld [vmem:[%s49 + $0x50] sm:$0xff]
        %v2165 = vld [vmem:[%s49 + $0x58] sm:$0xff]
        %v2166 = vld [vmem:[%s49 + $0x60] sm:$0xff]
        %v2167 = vld [vmem:[%s49 + $0x68] sm:$0xff]
        %v2168 = vld [vmem:[%s49 + $0x70] sm:$0xff]
        %v2169 = vld [vmem:[%s49 + $0x78] sm:$0xff]
        %2170 = vmatprep.subr.mxu0 0.0
        %2171 = vmatpush1.msra.mxu0 %v2154
        %2172 = vmatprep.subr.mxu0 0.0
        %2173 = vmatpush1.msra.mxu0 %v2155
        %2174 = vmatprep.subr.mxu0 0.0
        %2175 = vmatpush1.msra.mxu0 %v2156
        %2176 = vmatprep.subr.mxu0 0.0
        %2177 = vmatpush1.msra.mxu0 %v2157
        %2178 = vmatprep.subr.mxu0 0.0
        %2179 = vmatpush1.msra.mxu0 %v2158
        %2180 = vmatprep.subr.mxu0 0.0
        %2181 = vmatpush1.msra.mxu0 %v2159
        %2182 = vmatprep.subr.mxu0 0.0
        %2183 = vmatpush1.msra.mxu0 %v2160
        %2184 = vmatprep.subr.mxu0 0.0
        %2185 = vmatpush1.msra.mxu0 %v2161
        %2186 = vmatprep.subr.mxu0 0.0
        %2187 = vmatpush1.msra.mxu0 %v2162
        %2188 = vmatprep.subr.mxu0 0.0
        %2189 = vmatpush1.msra.mxu0 %v2163
        %2190 = vmatprep.subr.mxu0 0.0
        %2191 = vmatpush1.msra.mxu0 %v2164
        %2192 = vmatprep.subr.mxu0 0.0
        %2193 = vmatpush1.msra.mxu0 %v2165
        %2194 = vmatprep.subr.mxu0 0.0
        %2195 = vmatpush1.msra.mxu0 %v2166
        %2196 = vmatprep.subr.mxu0 0.0
        %2197 = vmatpush1.msra.mxu0 %v2167
        %2198 = vmatprep.subr.mxu0 0.0
        %2199 = vmatpush1.msra.mxu0 %v2168
        %2200 = vmatprep.subr.mxu0 0.0
        %2201 = vmatpush1.msra.mxu0 %v2169
        %2202 = vmatprep.subr.mxu0 0.0
        %2203 = vmatpush1.msra.mxu0 0.0
        %2204 = vmatprep.subr.mxu0 0.0
        %2205 = vmatpush1.msra.mxu0 0.0
        %2206 = vmatprep.subr.mxu0 0.0
        %2207 = vmatpush1.msra.mxu0 0.0
        %2208 = vmatprep.subr.mxu0 0.0
        %2209 = vmatpush1.msra.mxu0 0.0
        %2210 = vmatprep.subr.mxu0 0.0
        %2211 = vmatpush1.msra.mxu0 0.0
        %2212 = vmatprep.subr.mxu0 0.0
        %2213 = vmatpush1.msra.mxu0 0.0
        %2214 = vmatprep.subr.mxu0 0.0
        %2215 = vmatpush1.msra.mxu0 0.0
        %2216 = vmatprep.subr.mxu0 0.0
        %2217 = vmatpush1.msra.mxu0 0.0
        %2218 = vmatprep.subr.mxu0 0.0
        %2219 = vmatpush1.msra.mxu0 0.0
        %2220 = vmatprep.subr.mxu0 0.0
        %2221 = vmatpush1.msra.mxu0 0.0
        %2222 = vmatprep.subr.mxu0 0.0
        %2223 = vmatpush1.msra.mxu0 0.0
        %2224 = vmatprep.subr.mxu0 0.0
        %2225 = vmatpush1.msra.mxu0 0.0
        %2226 = vmatprep.subr.mxu0 0.0
        %2227 = vmatpush1.msra.mxu0 0.0
        %2228 = vmatprep.subr.mxu0 0.0
        %2229 = vmatpush1.msra.mxu0 0.0
        %2230 = vmatprep.subr.mxu0 0.0
        %2231 = vmatpush1.msra.mxu0 0.0
        %2232 = vmatprep.subr.mxu0 0.0
        %2233 = vmatpush1.msra.mxu0 0.0
        %2234 = vmatprep.mubr.f32.mxu0 0.0
        %2235 = vmatmul.mubr.f32.gmra.mrb[0].mxu0 %v2152
        %v2236 = vpop.f32.mrb[0].mxu0
        %v2237 = vadd.f32 0.0, %v2236
        %v2238 = vpop.f32.mrb[0].mxu0
        %2239 = vmatprep.mubr.f32.mxu0 0.0
        %2240 = vmatmul.mubr.f32.gmra.mrb[0].mxu0 %v2153
        %v2241 = vpop.f32.mrb[0].mxu0
        %v2242 = vadd.f32 0.0, %v2241
        %v2243 = vpop.f32.mrb[0].mxu0
        %2244 = vdwg.mxu0
        %vm2245 = vcmask 1048064
        %2246 = vrot.lane.b32.xlu0 %v2237, 64
        %v2247 = vpop.permute.xlu0 %2246
        %v2248 = vsel %vm2245, %v2247, %v2237
        %2249 = vrot.lane.b32.xlu0 %v2242, 64
        %v2250 = vpop.permute.xlu0 %2249
        %v2251 = vsel %vm2245, %v2250, %v2242
        %2252 = vrot.lane.b32.xlu0 %v2248, 64
        %v2253 = vpop.permute.xlu0 %2252
        %2254 = vrot.lane.b32.xlu0 %v2251, 64
        %v2255 = vpop.permute.xlu0 %2254
        %v2256 = vsel %vm2245, %v2253, %v2237
        %v2257 = vsel %vm2245, %v2255, %v2242
        %2260 = vrot.lane.b32.xlu0 %v2256, 65
        %v2261 = vpop.permute.xlu0 %2260
        %2262 = vrot.lane.b32.xlu0 %v2257, 65
        %v2263 = vpop.permute.xlu0 %2262
        %v2266 = vsel %vm1149, %v2261, 0.0
        %v2267 = vsel %vm1149, %v2263, 0.0
        %vm2268 = vcmp.lt.s32.totalorder %v1145, 63
        %2269 = vrot.lane.b32.xlu0 %v2256, 127
        %v2270 = vpop.permute.xlu0 %2269
        %2271 = vrot.lane.b32.xlu0 %v2257, 127
        %v2272 = vpop.permute.xlu0 %2271
        %v2275 = vsel %vm2268, %v2270, 0.0
        %v2276 = vsel %vm2268, %v2272, 0.0
        %v2277 = vld [vmem:[%s21] sm:$0xff]
        %v2278 = vld [vmem:[%s21 + $0x8] sm:$0xff]
        %v2280 = vsel %vm1768, %v2277, 0
        %v2283 = vsel %vm1768, %v2278, 0
        %2285 = vmatprep.subr.mxu0 0.0
        %2286 = vmatpush1.msra.mxu0 %v2266
        %2287 = vmatprep.subr.mxu0 0.0
        %2288 = vmatpush1.msra.mxu0 %v2267
        %2289 = vmatprep.subr.mxu0 0.0
        %2290 = vmatpush1.msra.mxu0 %v2237
        %2291 = vmatprep.subr.mxu0 0.0
        %2292 = vmatpush1.msra.mxu0 %v2242
        %2293 = vmatprep.subr.mxu0 0.0
        %2294 = vmatpush1.msra.mxu0 %v2275
        %2295 = vmatprep.subr.mxu0 0.0
        %2296 = vmatpush1.msra.mxu0 %v2276
        %2297 = vmatprep.subr.mxu0 0.0
        %2298 = vmatpush1.msra.mxu0 0.0
        %2299 = vmatprep.subr.mxu0 0.0
        %2300 = vmatpush1.msra.mxu0 0.0
        %2301 = vmatprep.subr.mxu0 0.0
        %2302 = vmatpush1.msra.mxu0 0.0
        %2303 = vmatprep.subr.mxu0 0.0
        %2304 = vmatpush1.msra.mxu0 0.0
        %2305 = vmatprep.subr.mxu0 0.0
        %2306 = vmatpush1.msra.mxu0 0.0
        %2307 = vmatprep.subr.mxu0 0.0
        %2308 = vmatpush1.msra.mxu0 0.0
        %2309 = vmatprep.subr.mxu0 0.0
        %2310 = vmatpush1.msra.mxu0 0.0
        %2311 = vmatprep.subr.mxu0 0.0
        %2312 = vmatpush1.msra.mxu0 0.0
        %2313 = vmatprep.subr.mxu0 0.0
        %2314 = vmatpush1.msra.mxu0 0.0
        %2315 = vmatprep.subr.mxu0 0.0
        %2316 = vmatpush1.msra.mxu0 0.0
        %2317 = vmatprep.subr.mxu0 0.0
        %2318 = vmatpush1.msra.mxu0 0.0
        %2319 = vmatprep.subr.mxu0 0.0
        %2320 = vmatpush1.msra.mxu0 0.0
        %2321 = vmatprep.subr.mxu0 0.0
        %2322 = vmatpush1.msra.mxu0 0.0
        %2323 = vmatprep.subr.mxu0 0.0
        %2324 = vmatpush1.msra.mxu0 0.0
        %2325 = vmatprep.subr.mxu0 0.0
        %2326 = vmatpush1.msra.mxu0 0.0
        %2327 = vmatprep.subr.mxu0 0.0
        %2328 = vmatpush1.msra.mxu0 0.0
        %2329 = vmatprep.subr.mxu0 0.0
        %2330 = vmatpush1.msra.mxu0 0.0
        %2331 = vmatprep.subr.mxu0 0.0
        %2332 = vmatpush1.msra.mxu0 0.0
        %2333 = vmatprep.subr.mxu0 0.0
        %2334 = vmatpush1.msra.mxu0 0.0
        %2335 = vmatprep.subr.mxu0 0.0
        %2336 = vmatpush1.msra.mxu0 0.0
        %2337 = vmatprep.subr.mxu0 0.0
        %2338 = vmatpush1.msra.mxu0 0.0
        %2339 = vmatprep.subr.mxu0 0.0
        %2340 = vmatpush1.msra.mxu0 0.0
        %2341 = vmatprep.subr.mxu0 0.0
        %2342 = vmatpush1.msra.mxu0 0.0
        %2343 = vmatprep.subr.mxu0 0.0
        %2344 = vmatpush1.msra.mxu0 0.0
        %2345 = vmatprep.subr.mxu0 0.0
        %2346 = vmatpush1.msra.mxu0 0.0
        %2347 = vmatprep.subr.mxu0 0.0
        %2348 = vmatpush1.msra.mxu0 0.0
        %2349 = vmatprep.mubr.f32.mxu0 0.0
        %2350 = vmatmul.mubr.f32.gmra.mrb[0].mxu0 %v2280
        %v2351 = vpop.f32.mrb[0].mxu0
        %v2352 = vadd.f32 0.0, %v2351
        %v2353 = vpop.f32.mrb[0].mxu0
        %2354 = vmatprep.mubr.f32.mxu0 0.0
        %2355 = vmatmul.mubr.f32.gmra.mrb[0].mxu0 %v2283
        %v2356 = vpop.f32.mrb[0].mxu0
        %v2357 = vadd.f32 0.0, %v2356
        %v2358 = vpop.f32.mrb[0].mxu0
        %2359 = vdwg.mxu0
        %v2360 = vld [vmem:[%s23] sm:$0xff]
        %v2361 = vld [vmem:[%s23 + $0x8] sm:$0xff]
        %2363 = vset.pattern.permute.xlu0 0
        %2364 = vperm.xlu0 %2363, %v2360
        %v2365 = vpop.permute.xlu0 %2364
        %2368 = vset.pattern.permute.xlu0 0
        %2369 = vperm.xlu0 %2368, %v2361
        %v2370 = vpop.permute.xlu0 %2369
        %v2372 = vmul.f32 %v2352, %v2365
        %v2373 = vmul.f32 %v2357, %v2370
        %v2374 = vld [vmem:[%s25] sm:$0xff]
        %v2375 = vld [vmem:[%s25 + $0x8] sm:$0xff]
        %2377 = vset.pattern.permute.xlu0 0
        %2378 = vperm.xlu0 %2377, %v2374
        %v2379 = vpop.permute.xlu0 %2378
        %2382 = vset.pattern.permute.xlu0 0
        %2383 = vperm.xlu0 %2382, %v2375
        %v2384 = vpop.permute.xlu0 %2383
        %v2386 = vadd.f32 %v2372, %v2379
        %v2387 = vadd.f32 %v2373, %v2384
        %v2388 = vmax.f32 %v2386, 0.0
        %v2389 = vmax.f32 %v2387, 0.0
        %v2390 = vmin.f32 %v2388, 15.0
        %v2391 = vmin.f32 %v2389, 15.0
        %v2392 = vround.ne.pseudo %v2390
        %v2393 = vround.ne.pseudo %v2391
        %2394 = vrot.lane.b32.xlu0 %v2392, 64
        %v2395 = vpop.permute.xlu0 %2394
        %v2396 = vsel %vm2245, %v2395, %v2392
        %2397 = vrot.lane.b32.xlu0 %v2393, 64
        %v2398 = vpop.permute.xlu0 %2397
        %v2399 = vsel %vm2245, %v2398, %v2393
        %2400 = vrot.lane.b32.xlu0 %v2396, 64
        %v2401 = vpop.permute.xlu0 %2400
        %2402 = vrot.lane.b32.xlu0 %v2399, 64
        %v2403 = vpop.permute.xlu0 %2402
        %v2404 = vsel %vm2245, %v2401, %v2392
        %v2405 = vsel %vm2245, %v2403, %v2393
        %2408 = vrot.lane.b32.xlu0 %v2404, 127
        %v2409 = vpop.permute.xlu0 %2408
        %2410 = vrot.lane.b32.xlu0 %v2405, 127
        %v2411 = vpop.permute.xlu0 %2410
        %v2414 = vmax.f32 %v2392, %v2409
        %v2415 = vmax.f32 %v2393, %v2411
        %v2416 = vld [vmem:[%s51] sm:$0xff]
        %v2417 = vld [vmem:[%s51 + $0x8] sm:$0xff]
        %v2418 = vld [vmem:[%s51 + $0x10] sm:$0xff]
        %v2419 = vld [vmem:[%s51 + $0x18] sm:$0xff]
        %v2420 = vld [vmem:[%s51 + $0x20] sm:$0xff]
        %v2421 = vld [vmem:[%s51 + $0x28] sm:$0xff]
        %v2422 = vld [vmem:[%s51 + $0x30] sm:$0xff]
        %v2423 = vld [vmem:[%s51 + $0x38] sm:$0xff]
        %vm2424 = vcmask 523264
        %v2426 = vsel %vm2424, %v2414, 0
        %v2429 = vsel %vm2424, %v2415, 0
        %2431 = vmatprep.subr.mxu0 0.0
        %2432 = vmatpush1.msra.mxu0 %v2416
        %2433 = vmatprep.subr.mxu0 0.0
        %2434 = vmatpush1.msra.mxu0 %v2417
        %2435 = vmatprep.subr.mxu0 0.0
        %2436 = vmatpush1.msra.mxu0 %v2418
        %2437 = vmatprep.subr.mxu0 0.0
        %2438 = vmatpush1.msra.mxu0 %v2419
        %2439 = vmatprep.subr.mxu0 0.0
        %2440 = vmatpush1.msra.mxu0 %v2420
        %2441 = vmatprep.subr.mxu0 0.0
        %2442 = vmatpush1.msra.mxu0 %v2421
        %2443 = vmatprep.subr.mxu0 0.0
        %2444 = vmatpush1.msra.mxu0 %v2422
        %2445 = vmatprep.subr.mxu0 0.0
        %2446 = vmatpush1.msra.mxu0 %v2423
        %2447 = vmatprep.subr.mxu0 0.0
        %2448 = vmatpush1.msra.mxu0 0.0
        %2449 = vmatprep.subr.mxu0 0.0
        %2450 = vmatpush1.msra.mxu0 0.0
        %2451 = vmatprep.subr.mxu0 0.0
        %2452 = vmatpush1.msra.mxu0 0.0
        %2453 = vmatprep.subr.mxu0 0.0
        %2454 = vmatpush1.msra.mxu0 0.0
        %2455 = vmatprep.subr.mxu0 0.0
        %2456 = vmatpush1.msra.mxu0 0.0
        %2457 = vmatprep.subr.mxu0 0.0
        %2458 = vmatpush1.msra.mxu0 0.0
        %2459 = vmatprep.subr.mxu0 0.0
        %2460 = vmatpush1.msra.mxu0 0.0
        %2461 = vmatprep.subr.mxu0 0.0
        %2462 = vmatpush1.msra.mxu0 0.0
        %2463 = vmatprep.subr.mxu0 0.0
        %2464 = vmatpush1.msra.mxu0 0.0
        %2465 = vmatprep.subr.mxu0 0.0
        %2466 = vmatpush1.msra.mxu0 0.0
        %2467 = vmatprep.subr.mxu0 0.0
        %2468 = vmatpush1.msra.mxu0 0.0
        %2469 = vmatprep.subr.mxu0 0.0
        %2470 = vmatpush1.msra.mxu0 0.0
        %2471 = vmatprep.subr.mxu0 0.0
        %2472 = vmatpush1.msra.mxu0 0.0
        %2473 = vmatprep.subr.mxu0 0.0
        %2474 = vmatpush1.msra.mxu0 0.0
        %2475 = vmatprep.subr.mxu0 0.0
        %2476 = vmatpush1.msra.mxu0 0.0
        %2477 = vmatprep.subr.mxu0 0.0
        %2478 = vmatpush1.msra.mxu0 0.0
        %2479 = vmatprep.subr.mxu0 0.0
        %2480 = vmatpush1.msra.mxu0 0.0
        %2481 = vmatprep.subr.mxu0 0.0
        %2482 = vmatpush1.msra.mxu0 0.0
        %2483 = vmatprep.subr.mxu0 0.0
        %2484 = vmatpush1.msra.mxu0 0.0
        %2485 = vmatprep.subr.mxu0 0.0
        %2486 = vmatpush1.msra.mxu0 0.0
        %2487 = vmatprep.subr.mxu0 0.0
        %2488 = vmatpush1.msra.mxu0 0.0
        %2489 = vmatprep.subr.mxu0 0.0
        %2490 = vmatpush1.msra.mxu0 0.0
        %2491 = vmatprep.subr.mxu0 0.0
        %2492 = vmatpush1.msra.mxu0 0.0
        %2493 = vmatprep.subr.mxu0 0.0
        %2494 = vmatpush1.msra.mxu0 0.0
        %2495 = vmatprep.mubr.f32.mxu0 0.0
        %2496 = vmatmul.mubr.f32.gmra.mrb[0].mxu0 %v2426
        %v2497 = vpop.f32.mrb[0].mxu0
        %v2498 = vadd.f32 0.0, %v2497
        %v2499 = vpop.f32.mrb[0].mxu0
        %2500 = vmatprep.mubr.f32.mxu0 0.0
        %2501 = vmatmul.mubr.f32.gmra.mrb[0].mxu0 %v2429
        %v2502 = vpop.f32.mrb[0].mxu0
        %v2503 = vadd.f32 0.0, %v2502
        %v2504 = vpop.f32.mrb[0].mxu0
        %2505 = vdwg.mxu0
        %vm2506 = vcmask 1047808
        %2507 = vrot.lane.b32.xlu0 %v2498, 32
        %v2508 = vpop.permute.xlu0 %2507
        %v2509 = vsel %vm2506, %v2508, %v2498
        %2510 = vrot.lane.b32.xlu0 %v2503, 32
        %v2511 = vpop.permute.xlu0 %2510
        %v2512 = vsel %vm2506, %v2511, %v2503
        %2513 = vrot.lane.b32.xlu0 %v2509, 32
        %v2514 = vpop.permute.xlu0 %2513
        %2515 = vrot.lane.b32.xlu0 %v2512, 32
        %v2516 = vpop.permute.xlu0 %2515
        %v2517 = vsel %vm2506, %v2514, %v2498
        %v2518 = vsel %vm2506, %v2516, %v2503
        %2521 = vrot.lane.b32.xlu0 %v2517, 97
        %v2522 = vpop.permute.xlu0 %2521
        %2523 = vrot.lane.b32.xlu0 %v2518, 97
        %v2524 = vpop.permute.xlu0 %2523
        %v2527 = vsel %vm1149, %v2522, 0.0
        %v2528 = vsel %vm1149, %v2524, 0.0
        %vm2529 = vcmp.lt.s32.totalorder %v1145, 31
        %2530 = vrot.lane.b32.xlu0 %v2517, 127
        %v2531 = vpop.permute.xlu0 %2530
        %2532 = vrot.lane.b32.xlu0 %v2518, 127
        %v2533 = vpop.permute.xlu0 %2532
        %v2536 = vsel %vm2529, %v2531, 0.0
        %v2537 = vsel %vm2529, %v2533, 0.0
        %v2538 = vld [vmem:[%s27] sm:$0xff]
        %v2539 = vld [vmem:[%s27 + $0x8] sm:$0xff]
        %v2541 = vsel %vm1768, %v2538, 0
        %v2544 = vsel %vm1768, %v2539, 0
        %2546 = vmatprep.subr.mxu0 0.0
        %2547 = vmatpush1.msra.mxu0 %v2527
        %2548 = vmatprep.subr.mxu0 0.0
        %2549 = vmatpush1.msra.mxu0 %v2528
        %2550 = vmatprep.subr.mxu0 0.0
        %2551 = vmatpush1.msra.mxu0 %v2498
        %2552 = vmatprep.subr.mxu0 0.0
        %2553 = vmatpush1.msra.mxu0 %v2503
        %2554 = vmatprep.subr.mxu0 0.0
        %2555 = vmatpush1.msra.mxu0 %v2536
        %2556 = vmatprep.subr.mxu0 0.0
        %2557 = vmatpush1.msra.mxu0 %v2537
        %2558 = vmatprep.subr.mxu0 0.0
        %2559 = vmatpush1.msra.mxu0 0.0
        %2560 = vmatprep.subr.mxu0 0.0
        %2561 = vmatpush1.msra.mxu0 0.0
        %2562 = vmatprep.subr.mxu0 0.0
        %2563 = vmatpush1.msra.mxu0 0.0
        %2564 = vmatprep.subr.mxu0 0.0
        %2565 = vmatpush1.msra.mxu0 0.0
        %2566 = vmatprep.subr.mxu0 0.0
        %2567 = vmatpush1.msra.mxu0 0.0
        %2568 = vmatprep.subr.mxu0 0.0
        %2569 = vmatpush1.msra.mxu0 0.0
        %2570 = vmatprep.subr.mxu0 0.0
        %2571 = vmatpush1.msra.mxu0 0.0
        %2572 = vmatprep.subr.mxu0 0.0
        %2573 = vmatpush1.msra.mxu0 0.0
        %2574 = vmatprep.subr.mxu0 0.0
        %2575 = vmatpush1.msra.mxu0 0.0
        %2576 = vmatprep.subr.mxu0 0.0
        %2577 = vmatpush1.msra.mxu0 0.0
        %2578 = vmatprep.subr.mxu0 0.0
        %2579 = vmatpush1.msra.mxu0 0.0
        %2580 = vmatprep.subr.mxu0 0.0
        %2581 = vmatpush1.msra.mxu0 0.0
        %2582 = vmatprep.subr.mxu0 0.0
        %2583 = vmatpush1.msra.mxu0 0.0
        %2584 = vmatprep.subr.mxu0 0.0
        %2585 = vmatpush1.msra.mxu0 0.0
        %2586 = vmatprep.subr.mxu0 0.0
        %2587 = vmatpush1.msra.mxu0 0.0
        %2588 = vmatprep.subr.mxu0 0.0
        %2589 = vmatpush1.msra.mxu0 0.0
        %2590 = vmatprep.subr.mxu0 0.0
        %2591 = vmatpush1.msra.mxu0 0.0
        %2592 = vmatprep.subr.mxu0 0.0
        %2593 = vmatpush1.msra.mxu0 0.0
        %2594 = vmatprep.subr.mxu0 0.0
        %2595 = vmatpush1.msra.mxu0 0.0
        %2596 = vmatprep.subr.mxu0 0.0
        %2597 = vmatpush1.msra.mxu0 0.0
        %2598 = vmatprep.subr.mxu0 0.0
        %2599 = vmatpush1.msra.mxu0 0.0
        %2600 = vmatprep.subr.mxu0 0.0
        %2601 = vmatpush1.msra.mxu0 0.0
        %2602 = vmatprep.subr.mxu0 0.0
        %2603 = vmatpush1.msra.mxu0 0.0
        %2604 = vmatprep.subr.mxu0 0.0
        %2605 = vmatpush1.msra.mxu0 0.0
        %2606 = vmatprep.subr.mxu0 0.0
        %2607 = vmatpush1.msra.mxu0 0.0
        %2608 = vmatprep.subr.mxu0 0.0
        %2609 = vmatpush1.msra.mxu0 0.0
        %2610 = vmatprep.mubr.f32.mxu0 0.0
        %2611 = vmatmul.mubr.f32.gmra.mrb[0].mxu0 %v2541
        %v2612 = vpop.f32.mrb[0].mxu0
        %v2613 = vadd.f32 0.0, %v2612
        %v2614 = vpop.f32.mrb[0].mxu0
        %2615 = vmatprep.mubr.f32.mxu0 0.0
        %2616 = vmatmul.mubr.f32.gmra.mrb[0].mxu0 %v2544
        %v2617 = vpop.f32.mrb[0].mxu0
        %v2618 = vadd.f32 0.0, %v2617
        %v2619 = vpop.f32.mrb[0].mxu0
        %2620 = vdwg.mxu0
        %v2621 = vld [vmem:[%s29] sm:$0xff]
        %v2622 = vld [vmem:[%s29 + $0x8] sm:$0xff]
        %2624 = vset.pattern.permute.xlu0 0
        %2625 = vperm.xlu0 %2624, %v2621
        %v2626 = vpop.permute.xlu0 %2625
        %2629 = vset.pattern.permute.xlu0 0
        %2630 = vperm.xlu0 %2629, %v2622
        %v2631 = vpop.permute.xlu0 %2630
        %v2633 = vmul.f32 %v2613, %v2626
        %v2634 = vmul.f32 %v2618, %v2631
        %v2635 = vld [vmem:[%s31] sm:$0xff]
        %v2636 = vld [vmem:[%s31 + $0x8] sm:$0xff]
        %2638 = vset.pattern.permute.xlu0 0
        %2639 = vperm.xlu0 %2638, %v2635
        %v2640 = vpop.permute.xlu0 %2639
        %2643 = vset.pattern.permute.xlu0 0
        %2644 = vperm.xlu0 %2643, %v2636
        %v2645 = vpop.permute.xlu0 %2644
        %v2647 = vadd.f32 %v2633, %v2640
        %v2648 = vadd.f32 %v2634, %v2645
        %v2649 = vmax.f32 %v2647, 0.0
        %v2650 = vmax.f32 %v2648, 0.0
        %v2651 = vmin.f32 %v2649, 15.0
        %v2652 = vmin.f32 %v2650, 15.0
        %v2653 = vround.ne.pseudo %v2651
        %v2654 = vround.ne.pseudo %v2652
        %2655 = vrot.lane.b32.xlu0 %v2653, 32
        %v2656 = vpop.permute.xlu0 %2655
        %v2657 = vsel %vm2506, %v2656, %v2653
        %2658 = vrot.lane.b32.xlu0 %v2654, 32
        %v2659 = vpop.permute.xlu0 %2658
        %v2660 = vsel %vm2506, %v2659, %v2654
        %2661 = vrot.lane.b32.xlu0 %v2657, 32
        %v2662 = vpop.permute.xlu0 %2661
        %2663 = vrot.lane.b32.xlu0 %v2660, 32
        %v2664 = vpop.permute.xlu0 %2663
        %v2665 = vsel %vm2506, %v2662, %v2653
        %v2666 = vsel %vm2506, %v2664, %v2654
        %2669 = vrot.lane.b32.xlu0 %v2665, 127
        %v2670 = vpop.permute.xlu0 %2669
        %2671 = vrot.lane.b32.xlu0 %v2666, 127
        %v2672 = vpop.permute.xlu0 %2671
        %v2675 = vmax.f32 %v2653, %v2670
        %v2676 = vmax.f32 %v2654, %v2672
        %v2677 = vld [vmem:[%s53] sm:$0xff]
        %v2678 = vld [vmem:[%s53 + $0x8] sm:$0xff]
        %v2679 = vld [vmem:[%s53 + $0x10] sm:$0xff]
        %v2680 = vld [vmem:[%s53 + $0x18] sm:$0xff]
        %vm2681 = vcmask 261120
        %v2683 = vsel %vm2681, %v2675, 0
        %v2686 = vsel %vm2681, %v2676, 0
        %2688 = vmatprep.subr.mxu0 0.0
        %2689 = vmatpush1.msra.mxu0 %v2677
        %2690 = vmatprep.subr.mxu0 0.0
        %2691 = vmatpush1.msra.mxu0 %v2678
        %2692 = vmatprep.subr.mxu0 0.0
        %2693 = vmatpush1.msra.mxu0 %v2679
        %2694 = vmatprep.subr.mxu0 0.0
        %2695 = vmatpush1.msra.mxu0 %v2680
        %2696 = vmatprep.subr.mxu0 0.0
        %2697 = vmatpush1.msra.mxu0 0.0
        %2698 = vmatprep.subr.mxu0 0.0
        %2699 = vmatpush1.msra.mxu0 0.0
        %2700 = vmatprep.subr.mxu0 0.0
        %2701 = vmatpush1.msra.mxu0 0.0
        %2702 = vmatprep.subr.mxu0 0.0
        %2703 = vmatpush1.msra.mxu0 0.0
        %2704 = vmatprep.subr.mxu0 0.0
        %2705 = vmatpush1.msra.mxu0 0.0
        %2706 = vmatprep.subr.mxu0 0.0
        %2707 = vmatpush1.msra.mxu0 0.0
        %2708 = vmatprep.subr.mxu0 0.0
        %2709 = vmatpush1.msra.mxu0 0.0
        %2710 = vmatprep.subr.mxu0 0.0
        %2711 = vmatpush1.msra.mxu0 0.0
        %2712 = vmatprep.subr.mxu0 0.0
        %2713 = vmatpush1.msra.mxu0 0.0
        %2714 = vmatprep.subr.mxu0 0.0
        %2715 = vmatpush1.msra.mxu0 0.0
        %2716 = vmatprep.subr.mxu0 0.0
        %2717 = vmatpush1.msra.mxu0 0.0
        %2718 = vmatprep.subr.mxu0 0.0
        %2719 = vmatpush1.msra.mxu0 0.0
        %2720 = vmatprep.subr.mxu0 0.0
        %2721 = vmatpush1.msra.mxu0 0.0
        %2722 = vmatprep.subr.mxu0 0.0
        %2723 = vmatpush1.msra.mxu0 0.0
        %2724 = vmatprep.subr.mxu0 0.0
        %2725 = vmatpush1.msra.mxu0 0.0
        %2726 = vmatprep.subr.mxu0 0.0
        %2727 = vmatpush1.msra.mxu0 0.0
        %2728 = vmatprep.subr.mxu0 0.0
        %2729 = vmatpush1.msra.mxu0 0.0
        %2730 = vmatprep.subr.mxu0 0.0
        %2731 = vmatpush1.msra.mxu0 0.0
        %2732 = vmatprep.subr.mxu0 0.0
        %2733 = vmatpush1.msra.mxu0 0.0
        %2734 = vmatprep.subr.mxu0 0.0
        %2735 = vmatpush1.msra.mxu0 0.0
        %2736 = vmatprep.subr.mxu0 0.0
        %2737 = vmatpush1.msra.mxu0 0.0
        %2738 = vmatprep.subr.mxu0 0.0
        %2739 = vmatpush1.msra.mxu0 0.0
        %2740 = vmatprep.subr.mxu0 0.0
        %2741 = vmatpush1.msra.mxu0 0.0
        %2742 = vmatprep.subr.mxu0 0.0
        %2743 = vmatpush1.msra.mxu0 0.0
        %2744 = vmatprep.subr.mxu0 0.0
        %2745 = vmatpush1.msra.mxu0 0.0
        %2746 = vmatprep.subr.mxu0 0.0
        %2747 = vmatpush1.msra.mxu0 0.0
        %2748 = vmatprep.subr.mxu0 0.0
        %2749 = vmatpush1.msra.mxu0 0.0
        %2750 = vmatprep.subr.mxu0 0.0
        %2751 = vmatpush1.msra.mxu0 0.0
        %2752 = vmatprep.mubr.f32.mxu0 0.0
        %2753 = vmatmul.mubr.f32.gmra.mrb[0].mxu0 %v2683
        %v2754 = vpop.f32.mrb[0].mxu0
        %v2755 = vadd.f32 0.0, %v2754
        %v2756 = vpop.f32.mrb[0].mxu0
        %2757 = vmatprep.mubr.f32.mxu0 0.0
        %2758 = vmatmul.mubr.f32.gmra.mrb[0].mxu0 %v2686
        %v2759 = vpop.f32.mrb[0].mxu0
        %v2760 = vadd.f32 0.0, %v2759
        %v2761 = vpop.f32.mrb[0].mxu0
        %2762 = vdwg.mxu0
        %vm2763 = vcmask 1047680
        %2764 = vrot.lane.b32.xlu0 %v2755, 16
        %v2765 = vpop.permute.xlu0 %2764
        %v2766 = vsel %vm2763, %v2765, %v2755
        %2767 = vrot.lane.b32.xlu0 %v2760, 16
        %v2768 = vpop.permute.xlu0 %2767
        %v2769 = vsel %vm2763, %v2768, %v2760
        %2770 = vrot.lane.b32.xlu0 %v2766, 16
        %v2771 = vpop.permute.xlu0 %2770
        %2772 = vrot.lane.b32.xlu0 %v2769, 16
        %v2773 = vpop.permute.xlu0 %2772
        %v2774 = vsel %vm2763, %v2771, %v2755
        %v2775 = vsel %vm2763, %v2773, %v2760
        %2778 = vrot.lane.b32.xlu0 %v2774, 113
        %v2779 = vpop.permute.xlu0 %2778
        %2780 = vrot.lane.b32.xlu0 %v2775, 113
        %v2781 = vpop.permute.xlu0 %2780
        %v2784 = vsel %vm1149, %v2779, 0.0
        %v2785 = vsel %vm1149, %v2781, 0.0
        %vm2786 = vcmp.lt.s32.totalorder %v1145, 15
        %2787 = vrot.lane.b32.xlu0 %v2774, 127
        %v2788 = vpop.permute.xlu0 %2787
        %2789 = vrot.lane.b32.xlu0 %v2775, 127
        %v2790 = vpop.permute.xlu0 %2789
        %v2793 = vsel %vm2786, %v2788, 0.0
        %v2794 = vsel %vm2786, %v2790, 0.0
        %v2795 = vld [vmem:[%s33] sm:$0xff]
        %v2796 = vld [vmem:[%s33 + $0x8] sm:$0xff]
        %v2798 = vsel %vm1768, %v2795, 0
        %v2801 = vsel %vm1768, %v2796, 0
        %2803 = vmatprep.subr.mxu0 0.0
        %2804 = vmatpush1.msra.mxu0 %v2784
        %2805 = vmatprep.subr.mxu0 0.0
        %2806 = vmatpush1.msra.mxu0 %v2785
        %2807 = vmatprep.subr.mxu0 0.0
        %2808 = vmatpush1.msra.mxu0 %v2755
        %2809 = vmatprep.subr.mxu0 0.0
        %2810 = vmatpush1.msra.mxu0 %v2760
        %2811 = vmatprep.subr.mxu0 0.0
        %2812 = vmatpush1.msra.mxu0 %v2793
        %2813 = vmatprep.subr.mxu0 0.0
        %2814 = vmatpush1.msra.mxu0 %v2794
        %2815 = vmatprep.subr.mxu0 0.0
        %2816 = vmatpush1.msra.mxu0 0.0
        %2817 = vmatprep.subr.mxu0 0.0
        %2818 = vmatpush1.msra.mxu0 0.0
        %2819 = vmatprep.subr.mxu0 0.0
        %2820 = vmatpush1.msra.mxu0 0.0
        %2821 = vmatprep.subr.mxu0 0.0
        %2822 = vmatpush1.msra.mxu0 0.0
        %2823 = vmatprep.subr.mxu0 0.0
        %2824 = vmatpush1.msra.mxu0 0.0
        %2825 = vmatprep.subr.mxu0 0.0
        %2826 = vmatpush1.msra.mxu0 0.0
        %2827 = vmatprep.subr.mxu0 0.0
        %2828 = vmatpush1.msra.mxu0 0.0
        %2829 = vmatprep.subr.mxu0 0.0
        %2830 = vmatpush1.msra.mxu0 0.0
        %2831 = vmatprep.subr.mxu0 0.0
        %2832 = vmatpush1.msra.mxu0 0.0
        %2833 = vmatprep.subr.mxu0 0.0
        %2834 = vmatpush1.msra.mxu0 0.0
        %2835 = vmatprep.subr.mxu0 0.0
        %2836 = vmatpush1.msra.mxu0 0.0
        %2837 = vmatprep.subr.mxu0 0.0
        %2838 = vmatpush1.msra.mxu0 0.0
        %2839 = vmatprep.subr.mxu0 0.0
        %2840 = vmatpush1.msra.mxu0 0.0
        %2841 = vmatprep.subr.mxu0 0.0
        %2842 = vmatpush1.msra.mxu0 0.0
        %2843 = vmatprep.subr.mxu0 0.0
        %2844 = vmatpush1.msra.mxu0 0.0
        %2845 = vmatprep.subr.mxu0 0.0
        %2846 = vmatpush1.msra.mxu0 0.0
        %2847 = vmatprep.subr.mxu0 0.0
        %2848 = vmatpush1.msra.mxu0 0.0
        %2849 = vmatprep.subr.mxu0 0.0
        %2850 = vmatpush1.msra.mxu0 0.0
        %2851 = vmatprep.subr.mxu0 0.0
        %2852 = vmatpush1.msra.mxu0 0.0
        %2853 = vmatprep.subr.mxu0 0.0
        %2854 = vmatpush1.msra.mxu0 0.0
        %2855 = vmatprep.subr.mxu0 0.0
        %2856 = vmatpush1.msra.mxu0 0.0
        %2857 = vmatprep.subr.mxu0 0.0
        %2858 = vmatpush1.msra.mxu0 0.0
        %2859 = vmatprep.subr.mxu0 0.0
        %2860 = vmatpush1.msra.mxu0 0.0
        %2861 = vmatprep.subr.mxu0 0.0
        %2862 = vmatpush1.msra.mxu0 0.0
        %2863 = vmatprep.subr.mxu0 0.0
        %2864 = vmatpush1.msra.mxu0 0.0
        %2865 = vmatprep.subr.mxu0 0.0
        %2866 = vmatpush1.msra.mxu0 0.0
        %2867 = vmatprep.mubr.f32.mxu0 0.0
        %2868 = vmatmul.mubr.f32.gmra.mrb[0].mxu0 %v2798
        %v2869 = vpop.f32.mrb[0].mxu0
        %v2870 = vadd.f32 0.0, %v2869
        %v2871 = vpop.f32.mrb[0].mxu0
        %2872 = vmatprep.mubr.f32.mxu0 0.0
        %2873 = vmatmul.mubr.f32.gmra.mrb[0].mxu0 %v2801
        %v2874 = vpop.f32.mrb[0].mxu0
        %v2875 = vadd.f32 0.0, %v2874
        %v2876 = vpop.f32.mrb[0].mxu0
        %2877 = vdwg.mxu0
        %v2878 = vld [vmem:[%s35] sm:$0xff]
        %v2879 = vld [vmem:[%s35 + $0x8] sm:$0xff]
        %2881 = vset.pattern.permute.xlu0 0
        %2882 = vperm.xlu0 %2881, %v2878
        %v2883 = vpop.permute.xlu0 %2882
        %2886 = vset.pattern.permute.xlu0 0
        %2887 = vperm.xlu0 %2886, %v2879
        %v2888 = vpop.permute.xlu0 %2887
        %v2890 = vmul.f32 %v2870, %v2883
        %v2891 = vmul.f32 %v2875, %v2888
        %v2892 = vld [vmem:[%s37] sm:$0xff]
        %v2893 = vld [vmem:[%s37 + $0x8] sm:$0xff]
        %2895 = vset.pattern.permute.xlu0 0
        %2896 = vperm.xlu0 %2895, %v2892
        %v2897 = vpop.permute.xlu0 %2896
        %2900 = vset.pattern.permute.xlu0 0
        %2901 = vperm.xlu0 %2900, %v2893
        %v2902 = vpop.permute.xlu0 %2901
        %v2904 = vadd.f32 %v2890, %v2897
        %v2905 = vadd.f32 %v2891, %v2902
        %v2906 = vmax.f32 %v2904, 0.0
        %v2907 = vmax.f32 %v2905, 0.0
        %v2908 = vmin.f32 %v2906, 15.0
        %v2909 = vmin.f32 %v2907, 15.0
        %v2910 = vround.ne.pseudo %v2908
        %v2911 = vround.ne.pseudo %v2909
        %2912 = vrot.lane.b32.xlu0 %v2910, 16
        %v2913 = vpop.permute.xlu0 %2912
        %v2914 = vsel %vm2763, %v2913, %v2910
        %2915 = vrot.lane.b32.xlu0 %v2911, 16
        %v2916 = vpop.permute.xlu0 %2915
        %v2917 = vsel %vm2763, %v2916, %v2911
        %2918 = vrot.lane.b32.xlu0 %v2914, 16
        %v2919 = vpop.permute.xlu0 %2918
        %2920 = vrot.lane.b32.xlu0 %v2917, 16
        %v2921 = vpop.permute.xlu0 %2920
        %v2922 = vsel %vm2763, %v2919, %v2910
        %v2923 = vsel %vm2763, %v2921, %v2911
        %2926 = vrot.lane.b32.xlu0 %v2922, 127
        %v2927 = vpop.permute.xlu0 %2926
        %2928 = vrot.lane.b32.xlu0 %v2923, 127
        %v2929 = vpop.permute.xlu0 %2928
        %v2932 = vmax.f32 %v2910, %v2927
        %v2933 = vmax.f32 %v2911, %v2929
        %v2934 = vld [vmem:[%s55] sm:$0xff]
        %v2935 = vld [vmem:[%s55 + $0x8] sm:$0xff]
        %vm2936 = vcmask 130048
        %v2938 = vsel %vm2936, %v2932, 0
        %v2941 = vsel %vm2936, %v2933, 0
        %2943 = vmatprep.subr.mxu0 0.0
        %2944 = vmatpush1.msra.mxu0 %v2934
        %2945 = vmatprep.subr.mxu0 0.0
        %2946 = vmatpush1.msra.mxu0 %v2935
        %2947 = vmatprep.subr.mxu0 0.0
        %2948 = vmatpush1.msra.mxu0 0.0
        %2949 = vmatprep.subr.mxu0 0.0
        %2950 = vmatpush1.msra.mxu0 0.0
        %2951 = vmatprep.subr.mxu0 0.0
        %2952 = vmatpush1.msra.mxu0 0.0
        %2953 = vmatprep.subr.mxu0 0.0
        %2954 = vmatpush1.msra.mxu0 0.0
        %2955 = vmatprep.subr.mxu0 0.0
        %2956 = vmatpush1.msra.mxu0 0.0
        %2957 = vmatprep.subr.mxu0 0.0
        %2958 = vmatpush1.msra.mxu0 0.0
        %2959 = vmatprep.subr.mxu0 0.0
        %2960 = vmatpush1.msra.mxu0 0.0
        %2961 = vmatprep.subr.mxu0 0.0
        %2962 = vmatpush1.msra.mxu0 0.0
        %2963 = vmatprep.subr.mxu0 0.0
        %2964 = vmatpush1.msra.mxu0 0.0
        %2965 = vmatprep.subr.mxu0 0.0
        %2966 = vmatpush1.msra.mxu0 0.0
        %2967 = vmatprep.subr.mxu0 0.0
        %2968 = vmatpush1.msra.mxu0 0.0
        %2969 = vmatprep.subr.mxu0 0.0
        %2970 = vmatpush1.msra.mxu0 0.0
        %2971 = vmatprep.subr.mxu0 0.0
        %2972 = vmatpush1.msra.mxu0 0.0
        %2973 = vmatprep.subr.mxu0 0.0
        %2974 = vmatpush1.msra.mxu0 0.0
        %2975 = vmatprep.subr.mxu0 0.0
        %2976 = vmatpush1.msra.mxu0 0.0
        %2977 = vmatprep.subr.mxu0 0.0
        %2978 = vmatpush1.msra.mxu0 0.0
        %2979 = vmatprep.subr.mxu0 0.0
        %2980 = vmatpush1.msra.mxu0 0.0
        %2981 = vmatprep.subr.mxu0 0.0
        %2982 = vmatpush1.msra.mxu0 0.0
        %2983 = vmatprep.subr.mxu0 0.0
        %2984 = vmatpush1.msra.mxu0 0.0
        %2985 = vmatprep.subr.mxu0 0.0
        %2986 = vmatpush1.msra.mxu0 0.0
        %2987 = vmatprep.subr.mxu0 0.0
        %2988 = vmatpush1.msra.mxu0 0.0
        %2989 = vmatprep.subr.mxu0 0.0
        %2990 = vmatpush1.msra.mxu0 0.0
        %2991 = vmatprep.subr.mxu0 0.0
        %2992 = vmatpush1.msra.mxu0 0.0
        %2993 = vmatprep.subr.mxu0 0.0
        %2994 = vmatpush1.msra.mxu0 0.0
        %2995 = vmatprep.subr.mxu0 0.0
        %2996 = vmatpush1.msra.mxu0 0.0
        %2997 = vmatprep.subr.mxu0 0.0
        %2998 = vmatpush1.msra.mxu0 0.0
        %2999 = vmatprep.subr.mxu0 0.0
        %3000 = vmatpush1.msra.mxu0 0.0
        %3001 = vmatprep.subr.mxu0 0.0
        %3002 = vmatpush1.msra.mxu0 0.0
        %3003 = vmatprep.subr.mxu0 0.0
        %3004 = vmatpush1.msra.mxu0 0.0
        %3005 = vmatprep.subr.mxu0 0.0
        %3006 = vmatpush1.msra.mxu0 0.0
        %3007 = vmatprep.mubr.f32.mxu0 0.0
        %3008 = vmatmul.mubr.f32.gmra.mrb[0].mxu0 %v2938
        %v3009 = vpop.f32.mrb[0].mxu0
        %v3010 = vadd.f32 0.0, %v3009
        %v3011 = vpop.f32.mrb[0].mxu0
        %3012 = vmatprep.mubr.f32.mxu0 0.0
        %3013 = vmatmul.mubr.f32.gmra.mrb[0].mxu0 %v2941
        %v3014 = vpop.f32.mrb[0].mxu0
        %v3015 = vadd.f32 0.0, %v3014
        %v3016 = vpop.f32.mrb[0].mxu0
        %3017 = vdwg.mxu0
        %vm3018 = vcmask 1047616
        %3019 = vrot.lane.b32.xlu0 %v3010, 8
        %v3020 = vpop.permute.xlu0 %3019
        %v3021 = vsel %vm3018, %v3020, %v3010
        %3022 = vrot.lane.b32.xlu0 %v3015, 8
        %v3023 = vpop.permute.xlu0 %3022
        %v3024 = vsel %vm3018, %v3023, %v3015
        %3025 = vrot.lane.b32.xlu0 %v3021, 8
        %v3026 = vpop.permute.xlu0 %3025
        %3027 = vrot.lane.b32.xlu0 %v3024, 8
        %v3028 = vpop.permute.xlu0 %3027
        %v3029 = vsel %vm3018, %v3026, %v3010
        %v3030 = vsel %vm3018, %v3028, %v3015
        %3033 = vrot.lane.b32.xlu0 %v3029, 121
        %v3034 = vpop.permute.xlu0 %3033
        %3035 = vrot.lane.b32.xlu0 %v3030, 121
        %v3036 = vpop.permute.xlu0 %3035
        %v3039 = vsel %vm1149, %v3034, 0.0
        %v3040 = vsel %vm1149, %v3036, 0.0
        %vm3041 = vcmp.lt.s32.totalorder %v1145, 7
        %3042 = vrot.lane.b32.xlu0 %v3029, 127
        %v3043 = vpop.permute.xlu0 %3042
        %3044 = vrot.lane.b32.xlu0 %v3030, 127
        %v3045 = vpop.permute.xlu0 %3044
        %v3048 = vsel %vm3041, %v3043, 0.0
        %v3049 = vsel %vm3041, %v3045, 0.0
        %v3050 = vld [vmem:[%s39] sm:$0xff]
        %v3051 = vld [vmem:[%s39 + $0x8] sm:$0xff]
        %v3052 = vld [vmem:[%s39 + $0x10] sm:$0xff]
        %v3053 = vld [vmem:[%s39 + $0x18] sm:$0xff]
        %v3054 = vld [vmem:[%s39 + $0x20] sm:$0xff]
        %v3055 = vld [vmem:[%s39 + $0x28] sm:$0xff]
        %v3056 = vld [vmem:[%s39 + $0x30] sm:$0xff]
        %v3057 = vld [vmem:[%s39 + $0x38] sm:$0xff]
        %v3058 = vld [vmem:[%s39 + $0x40] sm:$0xff]
        %v3059 = vld [vmem:[%s39 + $0x48] sm:$0xff]
        %v3060 = vld [vmem:[%s39 + $0x50] sm:$0xff]
        %v3061 = vld [vmem:[%s39 + $0x58] sm:$0xff]
        %v3062 = vld [vmem:[%s39 + $0x60] sm:$0xff]
        %v3063 = vld [vmem:[%s39 + $0x68] sm:$0xff]
        %v3064 = vld [vmem:[%s39 + $0x70] sm:$0xff]
        %v3065 = vld [vmem:[%s39 + $0x78] sm:$0xff]
        %v3067 = vsel %vm1768, %v3050, 0
        %v3070 = vsel %vm1768, %v3051, 0
        %v3073 = vsel %vm1768, %v3052, 0
        %v3076 = vsel %vm1768, %v3053, 0
        %v3079 = vsel %vm1768, %v3054, 0
        %v3082 = vsel %vm1768, %v3055, 0
        %v3085 = vsel %vm1768, %v3056, 0
        %v3088 = vsel %vm1768, %v3057, 0
        %v3091 = vsel %vm1768, %v3058, 0
        %v3094 = vsel %vm1768, %v3059, 0
        %v3097 = vsel %vm1768, %v3060, 0
        %v3100 = vsel %vm1768, %v3061, 0
        %v3103 = vsel %vm1768, %v3062, 0
        %v3106 = vsel %vm1768, %v3063, 0
        %v3109 = vsel %vm1768, %v3064, 0
        %v3112 = vsel %vm1768, %v3065, 0
        %3114 = vmatprep.subr.mxu0 0.0
        %3115 = vmatpush1.msra.mxu0 %v3039
        %3116 = vmatprep.subr.mxu0 0.0
        %3117 = vmatpush1.msra.mxu0 %v3040
        %3118 = vmatprep.subr.mxu0 0.0
        %3119 = vmatpush1.msra.mxu0 %v3010
        %3120 = vmatprep.subr.mxu0 0.0
        %3121 = vmatpush1.msra.mxu0 %v3015
        %3122 = vmatprep.subr.mxu0 0.0
        %3123 = vmatpush1.msra.mxu0 %v3048
        %3124 = vmatprep.subr.mxu0 0.0
        %3125 = vmatpush1.msra.mxu0 %v3049
        %3126 = vmatprep.subr.mxu0 0.0
        %3127 = vmatpush1.msra.mxu0 0.0
        %3128 = vmatprep.subr.mxu0 0.0
        %3129 = vmatpush1.msra.mxu0 0.0
        %3130 = vmatprep.subr.mxu0 0.0
        %3131 = vmatpush1.msra.mxu0 0.0
        %3132 = vmatprep.subr.mxu0 0.0
        %3133 = vmatpush1.msra.mxu0 0.0
        %3134 = vmatprep.subr.mxu0 0.0
        %3135 = vmatpush1.msra.mxu0 0.0
        %3136 = vmatprep.subr.mxu0 0.0
        %3137 = vmatpush1.msra.mxu0 0.0
        %3138 = vmatprep.subr.mxu0 0.0
        %3139 = vmatpush1.msra.mxu0 0.0
        %3140 = vmatprep.subr.mxu0 0.0
        %3141 = vmatpush1.msra.mxu0 0.0
        %3142 = vmatprep.subr.mxu0 0.0
        %3143 = vmatpush1.msra.mxu0 0.0
        %3144 = vmatprep.subr.mxu0 0.0
        %3145 = vmatpush1.msra.mxu0 0.0
        %3146 = vmatprep.subr.mxu0 0.0
        %3147 = vmatpush1.msra.mxu0 0.0
        %3148 = vmatprep.subr.mxu0 0.0
        %3149 = vmatpush1.msra.mxu0 0.0
        %3150 = vmatprep.subr.mxu0 0.0
        %3151 = vmatpush1.msra.mxu0 0.0
        %3152 = vmatprep.subr.mxu0 0.0
        %3153 = vmatpush1.msra.mxu0 0.0
        %3154 = vmatprep.subr.mxu0 0.0
        %3155 = vmatpush1.msra.mxu0 0.0
        %3156 = vmatprep.subr.mxu0 0.0
        %3157 = vmatpush1.msra.mxu0 0.0
        %3158 = vmatprep.subr.mxu0 0.0
        %3159 = vmatpush1.msra.mxu0 0.0
        %3160 = vmatprep.subr.mxu0 0.0
        %3161 = vmatpush1.msra.mxu0 0.0
        %3162 = vmatprep.subr.mxu0 0.0
        %3163 = vmatpush1.msra.mxu0 0.0
        %3164 = vmatprep.subr.mxu0 0.0
        %3165 = vmatpush1.msra.mxu0 0.0
        %3166 = vmatprep.subr.mxu0 0.0
        %3167 = vmatpush1.msra.mxu0 0.0
        %3168 = vmatprep.subr.mxu0 0.0
        %3169 = vmatpush1.msra.mxu0 0.0
        %3170 = vmatprep.subr.mxu0 0.0
        %3171 = vmatpush1.msra.mxu0 0.0
        %3172 = vmatprep.subr.mxu0 0.0
        %3173 = vmatpush1.msra.mxu0 0.0
        %3174 = vmatprep.subr.mxu0 0.0
        %3175 = vmatpush1.msra.mxu0 0.0
        %3176 = vmatprep.subr.mxu0 0.0
        %3177 = vmatpush1.msra.mxu0 0.0
        %3178 = vmatprep.mubr.f32.mxu0 0.0
        %3179 = vmatmul.mubr.f32.gmra.mrb[0].mxu0 %v3067
        %v3180 = vpop.f32.mrb[0].mxu0
        %v3181 = vadd.f32 0.0, %v3180
        %v3182 = vpop.f32.mrb[0].mxu0
        %3183 = vmatprep.mubr.f32.mxu0 0.0
        %3184 = vmatmul.mubr.f32.gmra.mrb[0].mxu0 %v3070
        %v3185 = vpop.f32.mrb[0].mxu0
        %v3186 = vadd.f32 0.0, %v3185
        %v3187 = vpop.f32.mrb[0].mxu0
        %3188 = vmatprep.mubr.f32.mxu0 0.0
        %3189 = vmatmul.mubr.f32.gmra.mrb[0].mxu0 %v3073
        %v3190 = vpop.f32.mrb[0].mxu0
        %v3191 = vadd.f32 0.0, %v3190
        %v3192 = vpop.f32.mrb[0].mxu0
        %3193 = vmatprep.mubr.f32.mxu0 0.0
        %3194 = vmatmul.mubr.f32.gmra.mrb[0].mxu0 %v3076
        %v3195 = vpop.f32.mrb[0].mxu0
        %v3196 = vadd.f32 0.0, %v3195
        %v3197 = vpop.f32.mrb[0].mxu0
        %3198 = vmatprep.mubr.f32.mxu0 0.0
        %3199 = vmatmul.mubr.f32.gmra.mrb[0].mxu0 %v3079
        %v3200 = vpop.f32.mrb[0].mxu0
        %v3201 = vadd.f32 0.0, %v3200
        %v3202 = vpop.f32.mrb[0].mxu0
        %3203 = vmatprep.mubr.f32.mxu0 0.0
        %3204 = vmatmul.mubr.f32.gmra.mrb[0].mxu0 %v3082
        %v3205 = vpop.f32.mrb[0].mxu0
        %v3206 = vadd.f32 0.0, %v3205
        %v3207 = vpop.f32.mrb[0].mxu0
        %3208 = vmatprep.mubr.f32.mxu0 0.0
        %3209 = vmatmul.mubr.f32.gmra.mrb[0].mxu0 %v3085
        %v3210 = vpop.f32.mrb[0].mxu0
        %v3211 = vadd.f32 0.0, %v3210
        %v3212 = vpop.f32.mrb[0].mxu0
        %3213 = vmatprep.mubr.f32.mxu0 0.0
        %3214 = vmatmul.mubr.f32.gmra.mrb[0].mxu0 %v3088
        %v3215 = vpop.f32.mrb[0].mxu0
        %v3216 = vadd.f32 0.0, %v3215
        %v3217 = vpop.f32.mrb[0].mxu0
        %3218 = vmatprep.mubr.f32.mxu0 0.0
        %3219 = vmatmul.mubr.f32.gmra.mrb[0].mxu0 %v3091
        %v3220 = vpop.f32.mrb[0].mxu0
        %v3221 = vadd.f32 0.0, %v3220
        %v3222 = vpop.f32.mrb[0].mxu0
        %3223 = vmatprep.mubr.f32.mxu0 0.0
        %3224 = vmatmul.mubr.f32.gmra.mrb[0].mxu0 %v3094
        %v3225 = vpop.f32.mrb[0].mxu0
        %v3226 = vadd.f32 0.0, %v3225
        %v3227 = vpop.f32.mrb[0].mxu0
        %3228 = vmatprep.mubr.f32.mxu0 0.0
        %3229 = vmatmul.mubr.f32.gmra.mrb[0].mxu0 %v3097
        %v3230 = vpop.f32.mrb[0].mxu0
        %v3231 = vadd.f32 0.0, %v3230
        %v3232 = vpop.f32.mrb[0].mxu0
        %3233 = vmatprep.mubr.f32.mxu0 0.0
        %3234 = vmatmul.mubr.f32.gmra.mrb[0].mxu0 %v3100
        %v3235 = vpop.f32.mrb[0].mxu0
        %v3236 = vadd.f32 0.0, %v3235
        %v3237 = vpop.f32.mrb[0].mxu0
        %3238 = vmatprep.mubr.f32.mxu0 0.0
        %3239 = vmatmul.mubr.f32.gmra.mrb[0].mxu0 %v3103
        %v3240 = vpop.f32.mrb[0].mxu0
        %v3241 = vadd.f32 0.0, %v3240
        %v3242 = vpop.f32.mrb[0].mxu0
        %3243 = vmatprep.mubr.f32.mxu0 0.0
        %3244 = vmatmul.mubr.f32.gmra.mrb[0].mxu0 %v3106
        %v3245 = vpop.f32.mrb[0].mxu0
        %v3246 = vadd.f32 0.0, %v3245
        %v3247 = vpop.f32.mrb[0].mxu0
        %3248 = vmatprep.mubr.f32.mxu0 0.0
        %3249 = vmatmul.mubr.f32.gmra.mrb[0].mxu0 %v3109
        %v3250 = vpop.f32.mrb[0].mxu0
        %v3251 = vadd.f32 0.0, %v3250
        %v3252 = vpop.f32.mrb[0].mxu0
        %3253 = vmatprep.mubr.f32.mxu0 0.0
        %3254 = vmatmul.mubr.f32.gmra.mrb[0].mxu0 %v3112
        %v3255 = vpop.f32.mrb[0].mxu0
        %v3256 = vadd.f32 0.0, %v3255
        %v3257 = vpop.f32.mrb[0].mxu0
        %3258 = vdwg.mxu0
        %v3259 = vld [vmem:[%s41] sm:$0xff]
        %v3260 = vld [vmem:[%s41 + $0x8] sm:$0xff]
        %v3261 = vld [vmem:[%s41 + $0x10] sm:$0xff]
        %v3262 = vld [vmem:[%s41 + $0x18] sm:$0xff]
        %v3263 = vld [vmem:[%s41 + $0x20] sm:$0xff]
        %v3264 = vld [vmem:[%s41 + $0x28] sm:$0xff]
        %v3265 = vld [vmem:[%s41 + $0x30] sm:$0xff]
        %v3266 = vld [vmem:[%s41 + $0x38] sm:$0xff]
        %v3267 = vld [vmem:[%s41 + $0x40] sm:$0xff]
        %v3268 = vld [vmem:[%s41 + $0x48] sm:$0xff]
        %v3269 = vld [vmem:[%s41 + $0x50] sm:$0xff]
        %v3270 = vld [vmem:[%s41 + $0x58] sm:$0xff]
        %v3271 = vld [vmem:[%s41 + $0x60] sm:$0xff]
        %v3272 = vld [vmem:[%s41 + $0x68] sm:$0xff]
        %v3273 = vld [vmem:[%s41 + $0x70] sm:$0xff]
        %v3274 = vld [vmem:[%s41 + $0x78] sm:$0xff]
        %3276 = vset.pattern.permute.xlu0 0
        %3277 = vperm.xlu0 %3276, %v3259
        %v3278 = vpop.permute.xlu0 %3277
        %3281 = vset.pattern.permute.xlu0 0
        %3282 = vperm.xlu0 %3281, %v3260
        %v3283 = vpop.permute.xlu0 %3282
        %3286 = vset.pattern.permute.xlu0 0
        %3287 = vperm.xlu0 %3286, %v3261
        %v3288 = vpop.permute.xlu0 %3287
        %3291 = vset.pattern.permute.xlu0 0
        %3292 = vperm.xlu0 %3291, %v3262
        %v3293 = vpop.permute.xlu0 %3292
        %3296 = vset.pattern.permute.xlu0 0
        %3297 = vperm.xlu0 %3296, %v3263
        %v3298 = vpop.permute.xlu0 %3297
        %3301 = vset.pattern.permute.xlu0 0
        %3302 = vperm.xlu0 %3301, %v3264
        %v3303 = vpop.permute.xlu0 %3302
        %3306 = vset.pattern.permute.xlu0 0
        %3307 = vperm.xlu0 %3306, %v3265
        %v3308 = vpop.permute.xlu0 %3307
        %3311 = vset.pattern.permute.xlu0 0
        %3312 = vperm.xlu0 %3311, %v3266
        %v3313 = vpop.permute.xlu0 %3312
        %3316 = vset.pattern.permute.xlu0 0
        %3317 = vperm.xlu0 %3316, %v3267
        %v3318 = vpop.permute.xlu0 %3317
        %3321 = vset.pattern.permute.xlu0 0
        %3322 = vperm.xlu0 %3321, %v3268
        %v3323 = vpop.permute.xlu0 %3322
        %3326 = vset.pattern.permute.xlu0 0
        %3327 = vperm.xlu0 %3326, %v3269
        %v3328 = vpop.permute.xlu0 %3327
        %3331 = vset.pattern.permute.xlu0 0
        %3332 = vperm.xlu0 %3331, %v3270
        %v3333 = vpop.permute.xlu0 %3332
        %3336 = vset.pattern.permute.xlu0 0
        %3337 = vperm.xlu0 %3336, %v3271
        %v3338 = vpop.permute.xlu0 %3337
        %3341 = vset.pattern.permute.xlu0 0
        %3342 = vperm.xlu0 %3341, %v3272
        %v3343 = vpop.permute.xlu0 %3342
        %3346 = vset.pattern.permute.xlu0 0
        %3347 = vperm.xlu0 %3346, %v3273
        %v3348 = vpop.permute.xlu0 %3347
        %3351 = vset.pattern.permute.xlu0 0
        %3352 = vperm.xlu0 %3351, %v3274
        %v3353 = vpop.permute.xlu0 %3352
        %v3355 = vmul.f32 %v3181, %v3278
        %v3356 = vmul.f32 %v3186, %v3283
        %v3357 = vmul.f32 %v3191, %v3288
        %v3358 = vmul.f32 %v3196, %v3293
        %v3359 = vmul.f32 %v3201, %v3298
        %v3360 = vmul.f32 %v3206, %v3303
        %v3361 = vmul.f32 %v3211, %v3308
        %v3362 = vmul.f32 %v3216, %v3313
        %v3363 = vmul.f32 %v3221, %v3318
        %v3364 = vmul.f32 %v3226, %v3323
        %v3365 = vmul.f32 %v3231, %v3328
        %v3366 = vmul.f32 %v3236, %v3333
        %v3367 = vmul.f32 %v3241, %v3338
        %v3368 = vmul.f32 %v3246, %v3343
        %v3369 = vmul.f32 %v3251, %v3348
        %v3370 = vmul.f32 %v3256, %v3353
        %v3371 = vld [vmem:[%s43] sm:$0xff]
        %v3372 = vld [vmem:[%s43 + $0x8] sm:$0xff]
        %v3373 = vld [vmem:[%s43 + $0x10] sm:$0xff]
        %v3374 = vld [vmem:[%s43 + $0x18] sm:$0xff]
        %v3375 = vld [vmem:[%s43 + $0x20] sm:$0xff]
        %v3376 = vld [vmem:[%s43 + $0x28] sm:$0xff]
        %v3377 = vld [vmem:[%s43 + $0x30] sm:$0xff]
        %v3378 = vld [vmem:[%s43 + $0x38] sm:$0xff]
        %v3379 = vld [vmem:[%s43 + $0x40] sm:$0xff]
        %v3380 = vld [vmem:[%s43 + $0x48] sm:$0xff]
        %v3381 = vld [vmem:[%s43 + $0x50] sm:$0xff]
        %v3382 = vld [vmem:[%s43 + $0x58] sm:$0xff]
        %v3383 = vld [vmem:[%s43 + $0x60] sm:$0xff]
        %v3384 = vld [vmem:[%s43 + $0x68] sm:$0xff]
        %v3385 = vld [vmem:[%s43 + $0x70] sm:$0xff]
        %v3386 = vld [vmem:[%s43 + $0x78] sm:$0xff]
        %3388 = vset.pattern.permute.xlu0 0
        %3389 = vperm.xlu0 %3388, %v3371
        %v3390 = vpop.permute.xlu0 %3389
        %3393 = vset.pattern.permute.xlu0 0
        %3394 = vperm.xlu0 %3393, %v3372
        %v3395 = vpop.permute.xlu0 %3394
        %3398 = vset.pattern.permute.xlu0 0
        %3399 = vperm.xlu0 %3398, %v3373
        %v3400 = vpop.permute.xlu0 %3399
        %3403 = vset.pattern.permute.xlu0 0
        %3404 = vperm.xlu0 %3403, %v3374
        %v3405 = vpop.permute.xlu0 %3404
        %3408 = vset.pattern.permute.xlu0 0
        %3409 = vperm.xlu0 %3408, %v3375
        %v3410 = vpop.permute.xlu0 %3409
        %3413 = vset.pattern.permute.xlu0 0
        %3414 = vperm.xlu0 %3413, %v3376
        %v3415 = vpop.permute.xlu0 %3414
        %3418 = vset.pattern.permute.xlu0 0
        %3419 = vperm.xlu0 %3418, %v3377
        %v3420 = vpop.permute.xlu0 %3419
        %3423 = vset.pattern.permute.xlu0 0
        %3424 = vperm.xlu0 %3423, %v3378
        %v3425 = vpop.permute.xlu0 %3424
        %3428 = vset.pattern.permute.xlu0 0
        %3429 = vperm.xlu0 %3428, %v3379
        %v3430 = vpop.permute.xlu0 %3429
        %3433 = vset.pattern.permute.xlu0 0
        %3434 = vperm.xlu0 %3433, %v3380
        %v3435 = vpop.permute.xlu0 %3434
        %3438 = vset.pattern.permute.xlu0 0
        %3439 = vperm.xlu0 %3438, %v3381
        %v3440 = vpop.permute.xlu0 %3439
        %3443 = vset.pattern.permute.xlu0 0
        %3444 = vperm.xlu0 %3443, %v3382
        %v3445 = vpop.permute.xlu0 %3444
        %3448 = vset.pattern.permute.xlu0 0
        %3449 = vperm.xlu0 %3448, %v3383
        %v3450 = vpop.permute.xlu0 %3449
        %3453 = vset.pattern.permute.xlu0 0
        %3454 = vperm.xlu0 %3453, %v3384
        %v3455 = vpop.permute.xlu0 %3454
        %3458 = vset.pattern.permute.xlu0 0
        %3459 = vperm.xlu0 %3458, %v3385
        %v3460 = vpop.permute.xlu0 %3459
        %3463 = vset.pattern.permute.xlu0 0
        %3464 = vperm.xlu0 %3463, %v3386
        %v3465 = vpop.permute.xlu0 %3464
        %v3467 = vadd.f32 %v3355, %v3390
        %v3468 = vadd.f32 %v3356, %v3395
        %v3469 = vadd.f32 %v3357, %v3400
        %v3470 = vadd.f32 %v3358, %v3405
        %v3471 = vadd.f32 %v3359, %v3410
        %v3472 = vadd.f32 %v3360, %v3415
        %v3473 = vadd.f32 %v3361, %v3420
        %v3474 = vadd.f32 %v3362, %v3425
        %v3475 = vadd.f32 %v3363, %v3430
        %v3476 = vadd.f32 %v3364, %v3435
        %v3477 = vadd.f32 %v3365, %v3440
        %v3478 = vadd.f32 %v3366, %v3445
        %v3479 = vadd.f32 %v3367, %v3450
        %v3480 = vadd.f32 %v3368, %v3455
        %v3481 = vadd.f32 %v3369, %v3460
        %v3482 = vadd.f32 %v3370, %v3465
        %v3483 = vmax.f32 %v3467, 0.0
        %v3484 = vmax.f32 %v3468, 0.0
        %v3485 = vmax.f32 %v3469, 0.0
        %v3486 = vmax.f32 %v3470, 0.0
        %v3487 = vmax.f32 %v3471, 0.0
        %v3488 = vmax.f32 %v3472, 0.0
        %v3489 = vmax.f32 %v3473, 0.0
        %v3490 = vmax.f32 %v3474, 0.0
        %v3491 = vmax.f32 %v3475, 0.0
        %v3492 = vmax.f32 %v3476, 0.0
        %v3493 = vmax.f32 %v3477, 0.0
        %v3494 = vmax.f32 %v3478, 0.0
        %v3495 = vmax.f32 %v3479, 0.0
        %v3496 = vmax.f32 %v3480, 0.0
        %v3497 = vmax.f32 %v3481, 0.0
        %v3498 = vmax.f32 %v3482, 0.0
        %v3499 = vmin.f32 %v3483, 15.0
        %v3500 = vmin.f32 %v3484, 15.0
        %v3501 = vmin.f32 %v3485, 15.0
        %v3502 = vmin.f32 %v3486, 15.0
        %v3503 = vmin.f32 %v3487, 15.0
        %v3504 = vmin.f32 %v3488, 15.0
        %v3505 = vmin.f32 %v3489, 15.0
        %v3506 = vmin.f32 %v3490, 15.0
        %v3507 = vmin.f32 %v3491, 15.0
        %v3508 = vmin.f32 %v3492, 15.0
        %v3509 = vmin.f32 %v3493, 15.0
        %v3510 = vmin.f32 %v3494, 15.0
        %v3511 = vmin.f32 %v3495, 15.0
        %v3512 = vmin.f32 %v3496, 15.0
        %v3513 = vmin.f32 %v3497, 15.0
        %v3514 = vmin.f32 %v3498, 15.0
        %v3515 = vround.ne.pseudo %v3499
        %v3516 = vround.ne.pseudo %v3500
        %v3517 = vround.ne.pseudo %v3501
        %v3518 = vround.ne.pseudo %v3502
        %v3519 = vround.ne.pseudo %v3503
        %v3520 = vround.ne.pseudo %v3504
        %v3521 = vround.ne.pseudo %v3505
        %v3522 = vround.ne.pseudo %v3506
        %v3523 = vround.ne.pseudo %v3507
        %v3524 = vround.ne.pseudo %v3508
        %v3525 = vround.ne.pseudo %v3509
        %v3526 = vround.ne.pseudo %v3510
        %v3527 = vround.ne.pseudo %v3511
        %v3528 = vround.ne.pseudo %v3512
        %v3529 = vround.ne.pseudo %v3513
        %v3530 = vround.ne.pseudo %v3514
        %3531 = vrot.lane.b32.xlu0 %v3515, 8
        %v3532 = vpop.permute.xlu0 %3531
        %v3533 = vsel %vm3018, %v3532, %v3515
        %3534 = vrot.lane.b32.xlu0 %v3516, 8
        %v3535 = vpop.permute.xlu0 %3534
        %v3536 = vsel %vm3018, %v3535, %v3516
        %3537 = vrot.lane.b32.xlu0 %v3517, 8
        %v3538 = vpop.permute.xlu0 %3537
        %v3539 = vsel %vm3018, %v3538, %v3517
        %3540 = vrot.lane.b32.xlu0 %v3518, 8
        %v3541 = vpop.permute.xlu0 %3540
        %v3542 = vsel %vm3018, %v3541, %v3518
        %3543 = vrot.lane.b32.xlu0 %v3519, 8
        %v3544 = vpop.permute.xlu0 %3543
        %v3545 = vsel %vm3018, %v3544, %v3519
        %3546 = vrot.lane.b32.xlu0 %v3520, 8
        %v3547 = vpop.permute.xlu0 %3546
        %v3548 = vsel %vm3018, %v3547, %v3520
        %3549 = vrot.lane.b32.xlu0 %v3521, 8
        %v3550 = vpop.permute.xlu0 %3549
        %v3551 = vsel %vm3018, %v3550, %v3521
        %3552 = vrot.lane.b32.xlu0 %v3522, 8
        %v3553 = vpop.permute.xlu0 %3552
        %v3554 = vsel %vm3018, %v3553, %v3522
        %3555 = vrot.lane.b32.xlu0 %v3523, 8
        %v3556 = vpop.permute.xlu0 %3555
        %v3557 = vsel %vm3018, %v3556, %v3523
        %3558 = vrot.lane.b32.xlu0 %v3524, 8
        %v3559 = vpop.permute.xlu0 %3558
        %v3560 = vsel %vm3018, %v3559, %v3524
        %3561 = vrot.lane.b32.xlu0 %v3525, 8
        %v3562 = vpop.permute.xlu0 %3561
        %v3563 = vsel %vm3018, %v3562, %v3525
        %3564 = vrot.lane.b32.xlu0 %v3526, 8
        %v3565 = vpop.permute.xlu0 %3564
        %v3566 = vsel %vm3018, %v3565, %v3526
        %3567 = vrot.lane.b32.xlu0 %v3527, 8
        %v3568 = vpop.permute.xlu0 %3567
        %v3569 = vsel %vm3018, %v3568, %v3527
        %3570 = vrot.lane.b32.xlu0 %v3528, 8
        %v3571 = vpop.permute.xlu0 %3570
        %v3572 = vsel %vm3018, %v3571, %v3528
        %3573 = vrot.lane.b32.xlu0 %v3529, 8
        %v3574 = vpop.permute.xlu0 %3573
        %v3575 = vsel %vm3018, %v3574, %v3529
        %3576 = vrot.lane.b32.xlu0 %v3530, 8
        %v3577 = vpop.permute.xlu0 %3576
        %v3578 = vsel %vm3018, %v3577, %v3530
        %3579 = vrot.lane.b32.xlu0 %v3533, 8
        %v3580 = vpop.permute.xlu0 %3579
        %3581 = vrot.lane.b32.xlu0 %v3536, 8
        %v3582 = vpop.permute.xlu0 %3581
        %3583 = vrot.lane.b32.xlu0 %v3539, 8
        %v3584 = vpop.permute.xlu0 %3583
        %3585 = vrot.lane.b32.xlu0 %v3542, 8
        %v3586 = vpop.permute.xlu0 %3585
        %3587 = vrot.lane.b32.xlu0 %v3545, 8
        %v3588 = vpop.permute.xlu0 %3587
        %3589 = vrot.lane.b32.xlu0 %v3548, 8
        %v3590 = vpop.permute.xlu0 %3589
        %3591 = vrot.lane.b32.xlu0 %v3551, 8
        %v3592 = vpop.permute.xlu0 %3591
        %3593 = vrot.lane.b32.xlu0 %v3554, 8
        %v3594 = vpop.permute.xlu0 %3593
        %3595 = vrot.lane.b32.xlu0 %v3557, 8
        %v3596 = vpop.permute.xlu0 %3595
        %3597 = vrot.lane.b32.xlu0 %v3560, 8
        %v3598 = vpop.permute.xlu0 %3597
        %3599 = vrot.lane.b32.xlu0 %v3563, 8
        %v3600 = vpop.permute.xlu0 %3599
        %3601 = vrot.lane.b32.xlu0 %v3566, 8
        %v3602 = vpop.permute.xlu0 %3601
        %3603 = vrot.lane.b32.xlu0 %v3569, 8
        %v3604 = vpop.permute.xlu0 %3603
        %3605 = vrot.lane.b32.xlu0 %v3572, 8
        %v3606 = vpop.permute.xlu0 %3605
        %3607 = vrot.lane.b32.xlu0 %v3575, 8
        %v3608 = vpop.permute.xlu0 %3607
        %3609 = vrot.lane.b32.xlu0 %v3578, 8
        %v3610 = vpop.permute.xlu0 %3609
        %v3611 = vsel %vm3018, %v3580, %v3515
        %v3612 = vsel %vm3018, %v3582, %v3516
        %v3613 = vsel %vm3018, %v3584, %v3517
        %v3614 = vsel %vm3018, %v3586, %v3518
        %v3615 = vsel %vm3018, %v3588, %v3519
        %v3616 = vsel %vm3018, %v3590, %v3520
        %v3617 = vsel %vm3018, %v3592, %v3521
        %v3618 = vsel %vm3018, %v3594, %v3522
        %v3619 = vsel %vm3018, %v3596, %v3523
        %v3620 = vsel %vm3018, %v3598, %v3524
        %v3621 = vsel %vm3018, %v3600, %v3525
        %v3622 = vsel %vm3018, %v3602, %v3526
        %v3623 = vsel %vm3018, %v3604, %v3527
        %v3624 = vsel %vm3018, %v3606, %v3528
        %v3625 = vsel %vm3018, %v3608, %v3529
        %v3626 = vsel %vm3018, %v3610, %v3530
        %3643 = vrot.lane.b32.xlu0 %v3611, 127
        %v3644 = vpop.permute.xlu0 %3643
        %3645 = vrot.lane.b32.xlu0 %v3612, 127
        %v3646 = vpop.permute.xlu0 %3645
        %3647 = vrot.lane.b32.xlu0 %v3613, 127
        %v3648 = vpop.permute.xlu0 %3647
        %3649 = vrot.lane.b32.xlu0 %v3614, 127
        %v3650 = vpop.permute.xlu0 %3649
        %3651 = vrot.lane.b32.xlu0 %v3615, 127
        %v3652 = vpop.permute.xlu0 %3651
        %3653 = vrot.lane.b32.xlu0 %v3616, 127
        %v3654 = vpop.permute.xlu0 %3653
        %3655 = vrot.lane.b32.xlu0 %v3617, 127
        %v3656 = vpop.permute.xlu0 %3655
        %3657 = vrot.lane.b32.xlu0 %v3618, 127
        %v3658 = vpop.permute.xlu0 %3657
        %3659 = vrot.lane.b32.xlu0 %v3619, 127
        %v3660 = vpop.permute.xlu0 %3659
        %3661 = vrot.lane.b32.xlu0 %v3620, 127
        %v3662 = vpop.permute.xlu0 %3661
        %3663 = vrot.lane.b32.xlu0 %v3621, 127
        %v3664 = vpop.permute.xlu0 %3663
        %3665 = vrot.lane.b32.xlu0 %v3622, 127
        %v3666 = vpop.permute.xlu0 %3665
        %3667 = vrot.lane.b32.xlu0 %v3623, 127
        %v3668 = vpop.permute.xlu0 %3667
        %3669 = vrot.lane.b32.xlu0 %v3624, 127
        %v3670 = vpop.permute.xlu0 %3669
        %3671 = vrot.lane.b32.xlu0 %v3625, 127
        %v3672 = vpop.permute.xlu0 %3671
        %3673 = vrot.lane.b32.xlu0 %v3626, 127
        %v3674 = vpop.permute.xlu0 %3673
        %v3691 = vmax.f32 %v3515, %v3644
        %v3692 = vmax.f32 %v3516, %v3646
        %v3693 = vmax.f32 %v3517, %v3648
        %v3694 = vmax.f32 %v3518, %v3650
        %v3695 = vmax.f32 %v3519, %v3652
        %v3696 = vmax.f32 %v3520, %v3654
        %v3697 = vmax.f32 %v3521, %v3656
        %v3698 = vmax.f32 %v3522, %v3658
        %v3699 = vmax.f32 %v3523, %v3660
        %v3700 = vmax.f32 %v3524, %v3662
        %v3701 = vmax.f32 %v3525, %v3664
        %v3702 = vmax.f32 %v3526, %v3666
        %v3703 = vmax.f32 %v3527, %v3668
        %v3704 = vmax.f32 %v3528, %v3670
        %v3705 = vmax.f32 %v3529, %v3672
        %v3706 = vmax.f32 %v3530, %v3674
        %v3707 = vld [vmem:[%s57] sm:$0xff]
        %vm3708 = vcmask 64512
        %v3710 = vsel %vm3708, %v3691, 0
        %v3713 = vsel %vm3708, %v3692, 0
        %v3716 = vsel %vm3708, %v3693, 0
        %v3719 = vsel %vm3708, %v3694, 0
        %v3722 = vsel %vm3708, %v3695, 0
        %v3725 = vsel %vm3708, %v3696, 0
        %v3728 = vsel %vm3708, %v3697, 0
        %v3731 = vsel %vm3708, %v3698, 0
        %v3734 = vsel %vm3708, %v3699, 0
        %v3737 = vsel %vm3708, %v3700, 0
        %v3740 = vsel %vm3708, %v3701, 0
        %v3743 = vsel %vm3708, %v3702, 0
        %v3746 = vsel %vm3708, %v3703, 0
        %v3749 = vsel %vm3708, %v3704, 0
        %v3752 = vsel %vm3708, %v3705, 0
        %v3755 = vsel %vm3708, %v3706, 0
        %3757 = vmatprep.subr.mxu0 0.0
        %3758 = vmatpush1.msra.mxu0 %v3707
        %3759 = vmatprep.subr.mxu0 0.0
        %3760 = vmatpush1.msra.mxu0 0.0
        %3761 = vmatprep.subr.mxu0 0.0
        %3762 = vmatpush1.msra.mxu0 0.0
        %3763 = vmatprep.subr.mxu0 0.0
        %3764 = vmatpush1.msra.mxu0 0.0
        %3765 = vmatprep.subr.mxu0 0.0
        %3766 = vmatpush1.msra.mxu0 0.0
        %3767 = vmatprep.subr.mxu0 0.0
        %3768 = vmatpush1.msra.mxu0 0.0
        %3769 = vmatprep.subr.mxu0 0.0
        %3770 = vmatpush1.msra.mxu0 0.0
        %3771 = vmatprep.subr.mxu0 0.0
        %3772 = vmatpush1.msra.mxu0 0.0
        %3773 = vmatprep.subr.mxu0 0.0
        %3774 = vmatpush1.msra.mxu0 0.0
        %3775 = vmatprep.subr.mxu0 0.0
        %3776 = vmatpush1.msra.mxu0 0.0
        %3777 = vmatprep.subr.mxu0 0.0
        %3778 = vmatpush1.msra.mxu0 0.0
        %3779 = vmatprep.subr.mxu0 0.0
        %3780 = vmatpush1.msra.mxu0 0.0
        %3781 = vmatprep.subr.mxu0 0.0
        %3782 = vmatpush1.msra.mxu0 0.0
        %3783 = vmatprep.subr.mxu0 0.0
        %3784 = vmatpush1.msra.mxu0 0.0
        %3785 = vmatprep.subr.mxu0 0.0
        %3786 = vmatpush1.msra.mxu0 0.0
        %3787 = vmatprep.subr.mxu0 0.0
        %3788 = vmatpush1.msra.mxu0 0.0
        %3789 = vmatprep.subr.mxu0 0.0
        %3790 = vmatpush1.msra.mxu0 0.0
        %3791 = vmatprep.subr.mxu0 0.0
        %3792 = vmatpush1.msra.mxu0 0.0
        %3793 = vmatprep.subr.mxu0 0.0
        %3794 = vmatpush1.msra.mxu0 0.0
        %3795 = vmatprep.subr.mxu0 0.0
        %3796 = vmatpush1.msra.mxu0 0.0
        %3797 = vmatprep.subr.mxu0 0.0
        %3798 = vmatpush1.msra.mxu0 0.0
        %3799 = vmatprep.subr.mxu0 0.0
        %3800 = vmatpush1.msra.mxu0 0.0
        %3801 = vmatprep.subr.mxu0 0.0
        %3802 = vmatpush1.msra.mxu0 0.0
        %3803 = vmatprep.subr.mxu0 0.0
        %3804 = vmatpush1.msra.mxu0 0.0
        %3805 = vmatprep.subr.mxu0 0.0
        %3806 = vmatpush1.msra.mxu0 0.0
        %3807 = vmatprep.subr.mxu0 0.0
        %3808 = vmatpush1.msra.mxu0 0.0
        %3809 = vmatprep.subr.mxu0 0.0
        %3810 = vmatpush1.msra.mxu0 0.0
        %3811 = vmatprep.subr.mxu0 0.0
        %3812 = vmatpush1.msra.mxu0 0.0
        %3813 = vmatprep.subr.mxu0 0.0
        %3814 = vmatpush1.msra.mxu0 0.0
        %3815 = vmatprep.subr.mxu0 0.0
        %3816 = vmatpush1.msra.mxu0 0.0
        %3817 = vmatprep.subr.mxu0 0.0
        %3818 = vmatpush1.msra.mxu0 0.0
        %3819 = vmatprep.subr.mxu0 0.0
        %3820 = vmatpush1.msra.mxu0 0.0
        %3821 = vmatprep.mubr.f32.mxu0 0.0
        %3822 = vmatmul.mubr.f32.gmra.mrb[0].mxu0 %v3710
        %v3823 = vpop.f32.mrb[0].mxu0
        %v3824 = vadd.f32 0.0, %v3823
        %v3825 = vpop.f32.mrb[0].mxu0
        %3826 = vmatprep.mubr.f32.mxu0 0.0
        %3827 = vmatmul.mubr.f32.gmra.mrb[0].mxu0 %v3713
        %v3828 = vpop.f32.mrb[0].mxu0
        %v3829 = vadd.f32 0.0, %v3828
        %v3830 = vpop.f32.mrb[0].mxu0
        %3831 = vmatprep.mubr.f32.mxu0 0.0
        %3832 = vmatmul.mubr.f32.gmra.mrb[0].mxu0 %v3716
        %v3833 = vpop.f32.mrb[0].mxu0
        %v3834 = vadd.f32 0.0, %v3833
        %v3835 = vpop.f32.mrb[0].mxu0
        %3836 = vmatprep.mubr.f32.mxu0 0.0
        %3837 = vmatmul.mubr.f32.gmra.mrb[0].mxu0 %v3719
        %v3838 = vpop.f32.mrb[0].mxu0
        %v3839 = vadd.f32 0.0, %v3838
        %v3840 = vpop.f32.mrb[0].mxu0
        %3841 = vmatprep.mubr.f32.mxu0 0.0
        %3842 = vmatmul.mubr.f32.gmra.mrb[0].mxu0 %v3722
        %v3843 = vpop.f32.mrb[0].mxu0
        %v3844 = vadd.f32 0.0, %v3843
        %v3845 = vpop.f32.mrb[0].mxu0
        %3846 = vmatprep.mubr.f32.mxu0 0.0
        %3847 = vmatmul.mubr.f32.gmra.mrb[0].mxu0 %v3725
        %v3848 = vpop.f32.mrb[0].mxu0
        %v3849 = vadd.f32 0.0, %v3848
        %v3850 = vpop.f32.mrb[0].mxu0
        %3851 = vmatprep.mubr.f32.mxu0 0.0
        %3852 = vmatmul.mubr.f32.gmra.mrb[0].mxu0 %v3728
        %v3853 = vpop.f32.mrb[0].mxu0
        %v3854 = vadd.f32 0.0, %v3853
        %v3855 = vpop.f32.mrb[0].mxu0
        %3856 = vmatprep.mubr.f32.mxu0 0.0
        %3857 = vmatmul.mubr.f32.gmra.mrb[0].mxu0 %v3731
        %v3858 = vpop.f32.mrb[0].mxu0
        %v3859 = vadd.f32 0.0, %v3858
        %v3860 = vpop.f32.mrb[0].mxu0
        %3861 = vmatprep.mubr.f32.mxu0 0.0
        %3862 = vmatmul.mubr.f32.gmra.mrb[0].mxu0 %v3734
        %v3863 = vpop.f32.mrb[0].mxu0
        %v3864 = vadd.f32 0.0, %v3863
        %v3865 = vpop.f32.mrb[0].mxu0
        %3866 = vmatprep.mubr.f32.mxu0 0.0
        %3867 = vmatmul.mubr.f32.gmra.mrb[0].mxu0 %v3737
        %v3868 = vpop.f32.mrb[0].mxu0
        %v3869 = vadd.f32 0.0, %v3868
        %v3870 = vpop.f32.mrb[0].mxu0
        %3871 = vmatprep.mubr.f32.mxu0 0.0
        %3872 = vmatmul.mubr.f32.gmra.mrb[0].mxu0 %v3740
        %v3873 = vpop.f32.mrb[0].mxu0
        %v3874 = vadd.f32 0.0, %v3873
        %v3875 = vpop.f32.mrb[0].mxu0
        %3876 = vmatprep.mubr.f32.mxu0 0.0
        %3877 = vmatmul.mubr.f32.gmra.mrb[0].mxu0 %v3743
        %v3878 = vpop.f32.mrb[0].mxu0
        %v3879 = vadd.f32 0.0, %v3878
        %v3880 = vpop.f32.mrb[0].mxu0
        %3881 = vmatprep.mubr.f32.mxu0 0.0
        %3882 = vmatmul.mubr.f32.gmra.mrb[0].mxu0 %v3746
        %v3883 = vpop.f32.mrb[0].mxu0
        %v3884 = vadd.f32 0.0, %v3883
        %v3885 = vpop.f32.mrb[0].mxu0
        %3886 = vmatprep.mubr.f32.mxu0 0.0
        %3887 = vmatmul.mubr.f32.gmra.mrb[0].mxu0 %v3749
        %v3888 = vpop.f32.mrb[0].mxu0
        %v3889 = vadd.f32 0.0, %v3888
        %v3890 = vpop.f32.mrb[0].mxu0
        %3891 = vmatprep.mubr.f32.mxu0 0.0
        %3892 = vmatmul.mubr.f32.gmra.mrb[0].mxu0 %v3752
        %v3893 = vpop.f32.mrb[0].mxu0
        %v3894 = vadd.f32 0.0, %v3893
        %v3895 = vpop.f32.mrb[0].mxu0
        %3896 = vmatprep.mubr.f32.mxu0 0.0
        %3897 = vmatmul.mubr.f32.gmra.mrb[0].mxu0 %v3755
        %v3898 = vpop.f32.mrb[0].mxu0
        %v3899 = vadd.f32 0.0, %v3898
        %v3900 = vpop.f32.mrb[0].mxu0
        %3901 = vdwg.mxu0
        %v3902 = vld [vmem:[%s59] sm:$0xff]
        %v3903 = vld [vmem:[%s59 + $0x8] sm:$0xff]
        %v3904 = vld [vmem:[%s59 + $0x10] sm:$0xff]
        %v3905 = vld [vmem:[%s59 + $0x18] sm:$0xff]
        %v3906 = vld [vmem:[%s59 + $0x20] sm:$0xff]
        %v3907 = vld [vmem:[%s59 + $0x28] sm:$0xff]
        %v3908 = vld [vmem:[%s59 + $0x30] sm:$0xff]
        %v3909 = vld [vmem:[%s59 + $0x38] sm:$0xff]
        %v3910 = vld [vmem:[%s59 + $0x40] sm:$0xff]
        %v3911 = vld [vmem:[%s59 + $0x48] sm:$0xff]
        %v3912 = vld [vmem:[%s59 + $0x50] sm:$0xff]
        %v3913 = vld [vmem:[%s59 + $0x58] sm:$0xff]
        %v3914 = vld [vmem:[%s59 + $0x60] sm:$0xff]
        %v3915 = vld [vmem:[%s59 + $0x68] sm:$0xff]
        %v3916 = vld [vmem:[%s59 + $0x70] sm:$0xff]
        %v3917 = vld [vmem:[%s59 + $0x78] sm:$0xff]
        %3919 = vset.pattern.permute.xlu0 0
        %3920 = vperm.xlu0 %3919, %v3824
        %v3921 = vpop.permute.xlu0 %3920
        %3924 = vset.pattern.permute.xlu0 0
        %3925 = vperm.xlu0 %3924, %v3829
        %v3926 = vpop.permute.xlu0 %3925
        %3929 = vset.pattern.permute.xlu0 0
        %3930 = vperm.xlu0 %3929, %v3834
        %v3931 = vpop.permute.xlu0 %3930
        %3934 = vset.pattern.permute.xlu0 0
        %3935 = vperm.xlu0 %3934, %v3839
        %v3936 = vpop.permute.xlu0 %3935
        %3939 = vset.pattern.permute.xlu0 0
        %3940 = vperm.xlu0 %3939, %v3844
        %v3941 = vpop.permute.xlu0 %3940
        %3944 = vset.pattern.permute.xlu0 0
        %3945 = vperm.xlu0 %3944, %v3849
        %v3946 = vpop.permute.xlu0 %3945
        %3949 = vset.pattern.permute.xlu0 0
        %3950 = vperm.xlu0 %3949, %v3854
        %v3951 = vpop.permute.xlu0 %3950
        %3954 = vset.pattern.permute.xlu0 0
        %3955 = vperm.xlu0 %3954, %v3859
        %v3956 = vpop.permute.xlu0 %3955
        %3959 = vset.pattern.permute.xlu0 0
        %3960 = vperm.xlu0 %3959, %v3864
        %v3961 = vpop.permute.xlu0 %3960
        %3964 = vset.pattern.permute.xlu0 0
        %3965 = vperm.xlu0 %3964, %v3869
        %v3966 = vpop.permute.xlu0 %3965
        %3969 = vset.pattern.permute.xlu0 0
        %3970 = vperm.xlu0 %3969, %v3874
        %v3971 = vpop.permute.xlu0 %3970
        %3974 = vset.pattern.permute.xlu0 0
        %3975 = vperm.xlu0 %3974, %v3879
        %v3976 = vpop.permute.xlu0 %3975
        %3979 = vset.pattern.permute.xlu0 0
        %3980 = vperm.xlu0 %3979, %v3884
        %v3981 = vpop.permute.xlu0 %3980
        %3984 = vset.pattern.permute.xlu0 0
        %3985 = vperm.xlu0 %3984, %v3889
        %v3986 = vpop.permute.xlu0 %3985
        %3989 = vset.pattern.permute.xlu0 0
        %3990 = vperm.xlu0 %3989, %v3894
        %v3991 = vpop.permute.xlu0 %3990
        %3994 = vset.pattern.permute.xlu0 0
        %3995 = vperm.xlu0 %3994, %v3899
        %v3996 = vpop.permute.xlu0 %3995
        %v3998 = vmul.f32 %v3921, %v3902
        %v3999 = vmul.f32 %v3926, %v3903
        %v4000 = vmul.f32 %v3931, %v3904
        %v4001 = vmul.f32 %v3936, %v3905
        %v4002 = vmul.f32 %v3941, %v3906
        %v4003 = vmul.f32 %v3946, %v3907
        %v4004 = vmul.f32 %v3951, %v3908
        %v4005 = vmul.f32 %v3956, %v3909
        %v4006 = vmul.f32 %v3961, %v3910
        %v4007 = vmul.f32 %v3966, %v3911
        %v4008 = vmul.f32 %v3971, %v3912
        %v4009 = vmul.f32 %v3976, %v3913
        %v4010 = vmul.f32 %v3981, %v3914
        %v4011 = vmul.f32 %v3986, %v3915
        %v4012 = vmul.f32 %v3991, %v3916
        %v4013 = vmul.f32 %v3996, %v3917
        %v4014 = vsel %vm2424, %v3998, 0.0
        %v4015 = vsel %vm2424, %v3999, 0.0
        %v4016 = vadd.f32 %v4014, %v4015
        %v4017 = vsel %vm2424, %v4000, 0.0
        %v4018 = vadd.f32 %v4016, %v4017
        %v4019 = vsel %vm2424, %v4001, 0.0
        %v4020 = vadd.f32 %v4018, %v4019
        %v4021 = vsel %vm2424, %v4002, 0.0
        %v4022 = vadd.f32 %v4020, %v4021
        %v4023 = vsel %vm2424, %v4003, 0.0
        %v4024 = vadd.f32 %v4022, %v4023
        %v4025 = vsel %vm2424, %v4004, 0.0
        %v4026 = vadd.f32 %v4024, %v4025
        %v4027 = vsel %vm2424, %v4005, 0.0
        %v4028 = vadd.f32 %v4026, %v4027
        %v4029 = vsel %vm2424, %v4006, 0.0
        %v4030 = vadd.f32 %v4028, %v4029
        %v4031 = vsel %vm2424, %v4007, 0.0
        %v4032 = vadd.f32 %v4030, %v4031
        %v4033 = vsel %vm2424, %v4008, 0.0
        %v4034 = vadd.f32 %v4032, %v4033
        %v4035 = vsel %vm2424, %v4009, 0.0
        %v4036 = vadd.f32 %v4034, %v4035
        %v4037 = vsel %vm2424, %v4010, 0.0
        %v4038 = vadd.f32 %v4036, %v4037
        %v4039 = vsel %vm2424, %v4011, 0.0
        %v4040 = vadd.f32 %v4038, %v4039
        %v4041 = vsel %vm2424, %v4012, 0.0
        %v4042 = vadd.f32 %v4040, %v4041
        %v4043 = vsel %vm2424, %v4013, 0.0
        %v4044 = vadd.f32 %v4042, %v4043
        %v4045 = vrot.slane %v4044, 4
        %v4046 = vadd.f32 %v4044, %v4045
        %v4047 = vrot.slane %v4046, 2
        %v4048 = vadd.f32 %v4046, %v4047
        %v4049 = vrot.slane %v4048, 1
        %v4050 = vadd.f32 %v4048, %v4049
        %s4051 = scalar_lea.vmem %s59, 128
        %v4052 = vld [vmem:[%s4051] sm:$0xff]
        %v4053 = vld [vmem:[%s4051 + $0x8] sm:$0xff]
        %v4054 = vld [vmem:[%s4051 + $0x10] sm:$0xff]
        %v4055 = vld [vmem:[%s4051 + $0x18] sm:$0xff]
        %v4056 = vld [vmem:[%s4051 + $0x20] sm:$0xff]
        %v4057 = vld [vmem:[%s4051 + $0x28] sm:$0xff]
        %v4058 = vld [vmem:[%s4051 + $0x30] sm:$0xff]
        %v4059 = vld [vmem:[%s4051 + $0x38] sm:$0xff]
        %v4060 = vld [vmem:[%s4051 + $0x40] sm:$0xff]
        %v4061 = vld [vmem:[%s4051 + $0x48] sm:$0xff]
        %v4062 = vld [vmem:[%s4051 + $0x50] sm:$0xff]
        %v4063 = vld [vmem:[%s4051 + $0x58] sm:$0xff]
        %v4064 = vld [vmem:[%s4051 + $0x60] sm:$0xff]
        %v4065 = vld [vmem:[%s4051 + $0x68] sm:$0xff]
        %v4066 = vld [vmem:[%s4051 + $0x70] sm:$0xff]
        %v4067 = vld [vmem:[%s4051 + $0x78] sm:$0xff]
        %4068 = vset.pattern.permute.xlu0 1
        %4069 = vperm.xlu0 %4068, %v3824
        %v4070 = vpop.permute.xlu0 %4069
        %4072 = vset.pattern.permute.xlu0 1
        %4073 = vperm.xlu0 %4072, %v3829
        %v4074 = vpop.permute.xlu0 %4073
        %4076 = vset.pattern.permute.xlu0 1
        %4077 = vperm.xlu0 %4076, %v3834
        %v4078 = vpop.permute.xlu0 %4077
        %4080 = vset.pattern.permute.xlu0 1
        %4081 = vperm.xlu0 %4080, %v3839
        %v4082 = vpop.permute.xlu0 %4081
        %4084 = vset.pattern.permute.xlu0 1
        %4085 = vperm.xlu0 %4084, %v3844
        %v4086 = vpop.permute.xlu0 %4085
        %4088 = vset.pattern.permute.xlu0 1
        %4089 = vperm.xlu0 %4088, %v3849
        %v4090 = vpop.permute.xlu0 %4089
        %4092 = vset.pattern.permute.xlu0 1
        %4093 = vperm.xlu0 %4092, %v3854
        %v4094 = vpop.permute.xlu0 %4093
        %4096 = vset.pattern.permute.xlu0 1
        %4097 = vperm.xlu0 %4096, %v3859
        %v4098 = vpop.permute.xlu0 %4097
        %4100 = vset.pattern.permute.xlu0 1
        %4101 = vperm.xlu0 %4100, %v3864
        %v4102 = vpop.permute.xlu0 %4101
        %4104 = vset.pattern.permute.xlu0 1
        %4105 = vperm.xlu0 %4104, %v3869
        %v4106 = vpop.permute.xlu0 %4105
        %4108 = vset.pattern.permute.xlu0 1
        %4109 = vperm.xlu0 %4108, %v3874
        %v4110 = vpop.permute.xlu0 %4109
        %4112 = vset.pattern.permute.xlu0 1
        %4113 = vperm.xlu0 %4112, %v3879
        %v4114 = vpop.permute.xlu0 %4113
        %4116 = vset.pattern.permute.xlu0 1
        %4117 = vperm.xlu0 %4116, %v3884
        %v4118 = vpop.permute.xlu0 %4117
        %4120 = vset.pattern.permute.xlu0 1
        %4121 = vperm.xlu0 %4120, %v3889
        %v4122 = vpop.permute.xlu0 %4121
        %4124 = vset.pattern.permute.xlu0 1
        %4125 = vperm.xlu0 %4124, %v3894
        %v4126 = vpop.permute.xlu0 %4125
        %4128 = vset.pattern.permute.xlu0 1
        %4129 = vperm.xlu0 %4128, %v3899
        %v4130 = vpop.permute.xlu0 %4129
        %v4132 = vmul.f32 %v4070, %v4052
        %v4133 = vmul.f32 %v4074, %v4053
        %v4134 = vmul.f32 %v4078, %v4054
        %v4135 = vmul.f32 %v4082, %v4055
        %v4136 = vmul.f32 %v4086, %v4056
        %v4137 = vmul.f32 %v4090, %v4057
        %v4138 = vmul.f32 %v4094, %v4058
        %v4139 = vmul.f32 %v4098, %v4059
        %v4140 = vmul.f32 %v4102, %v4060
        %v4141 = vmul.f32 %v4106, %v4061
        %v4142 = vmul.f32 %v4110, %v4062
        %v4143 = vmul.f32 %v4114, %v4063
        %v4144 = vmul.f32 %v4118, %v4064
        %v4145 = vmul.f32 %v4122, %v4065
        %v4146 = vmul.f32 %v4126, %v4066
        %v4147 = vmul.f32 %v4130, %v4067
        %v4148 = vsel %vm2424, %v4132, 0.0
        %v4149 = vsel %vm2424, %v4133, 0.0
        %v4150 = vadd.f32 %v4148, %v4149
        %v4151 = vsel %vm2424, %v4134, 0.0
        %v4152 = vadd.f32 %v4150, %v4151
        %v4153 = vsel %vm2424, %v4135, 0.0
        %v4154 = vadd.f32 %v4152, %v4153
        %v4155 = vsel %vm2424, %v4136, 0.0
        %v4156 = vadd.f32 %v4154, %v4155
        %v4157 = vsel %vm2424, %v4137, 0.0
        %v4158 = vadd.f32 %v4156, %v4157
        %v4159 = vsel %vm2424, %v4138, 0.0
        %v4160 = vadd.f32 %v4158, %v4159
        %v4161 = vsel %vm2424, %v4139, 0.0
        %v4162 = vadd.f32 %v4160, %v4161
        %v4163 = vsel %vm2424, %v4140, 0.0
        %v4164 = vadd.f32 %v4162, %v4163
        %v4165 = vsel %vm2424, %v4141, 0.0
        %v4166 = vadd.f32 %v4164, %v4165
        %v4167 = vsel %vm2424, %v4142, 0.0
        %v4168 = vadd.f32 %v4166, %v4167
        %v4169 = vsel %vm2424, %v4143, 0.0
        %v4170 = vadd.f32 %v4168, %v4169
        %v4171 = vsel %vm2424, %v4144, 0.0
        %v4172 = vadd.f32 %v4170, %v4171
        %v4173 = vsel %vm2424, %v4145, 0.0
        %v4174 = vadd.f32 %v4172, %v4173
        %v4175 = vsel %vm2424, %v4146, 0.0
        %v4176 = vadd.f32 %v4174, %v4175
        %v4177 = vsel %vm2424, %v4147, 0.0
        %v4178 = vadd.f32 %v4176, %v4177
        %v4179 = vrot.slane %v4178, 4
        %v4180 = vadd.f32 %v4178, %v4179
        %v4181 = vrot.slane %v4180, 2
        %v4182 = vadd.f32 %v4180, %v4181
        %v4183 = vrot.slane %v4182, 1
        %v4184 = vadd.f32 %v4182, %v4183
        %s4185 = scalar_lea.vmem %s59, 256
        %v4186 = vld [vmem:[%s4185] sm:$0xff]
        %v4187 = vld [vmem:[%s4185 + $0x8] sm:$0xff]
        %v4188 = vld [vmem:[%s4185 + $0x10] sm:$0xff]
        %v4189 = vld [vmem:[%s4185 + $0x18] sm:$0xff]
        %v4190 = vld [vmem:[%s4185 + $0x20] sm:$0xff]
        %v4191 = vld [vmem:[%s4185 + $0x28] sm:$0xff]
        %v4192 = vld [vmem:[%s4185 + $0x30] sm:$0xff]
        %v4193 = vld [vmem:[%s4185 + $0x38] sm:$0xff]
        %v4194 = vld [vmem:[%s4185 + $0x40] sm:$0xff]
        %v4195 = vld [vmem:[%s4185 + $0x48] sm:$0xff]
        %v4196 = vld [vmem:[%s4185 + $0x50] sm:$0xff]
        %v4197 = vld [vmem:[%s4185 + $0x58] sm:$0xff]
        %v4198 = vld [vmem:[%s4185 + $0x60] sm:$0xff]
        %v4199 = vld [vmem:[%s4185 + $0x68] sm:$0xff]
        %v4200 = vld [vmem:[%s4185 + $0x70] sm:$0xff]
        %v4201 = vld [vmem:[%s4185 + $0x78] sm:$0xff]
        %4202 = vset.pattern.permute.xlu0 2
        %4203 = vperm.xlu0 %4202, %v3824
        %v4204 = vpop.permute.xlu0 %4203
        %4206 = vset.pattern.permute.xlu0 2
        %4207 = vperm.xlu0 %4206, %v3829
        %v4208 = vpop.permute.xlu0 %4207
        %4210 = vset.pattern.permute.xlu0 2
        %4211 = vperm.xlu0 %4210, %v3834
        %v4212 = vpop.permute.xlu0 %4211
        %4214 = vset.pattern.permute.xlu0 2
        %4215 = vperm.xlu0 %4214, %v3839
        %v4216 = vpop.permute.xlu0 %4215
        %4218 = vset.pattern.permute.xlu0 2
        %4219 = vperm.xlu0 %4218, %v3844
        %v4220 = vpop.permute.xlu0 %4219
        %4222 = vset.pattern.permute.xlu0 2
        %4223 = vperm.xlu0 %4222, %v3849
        %v4224 = vpop.permute.xlu0 %4223
        %4226 = vset.pattern.permute.xlu0 2
        %4227 = vperm.xlu0 %4226, %v3854
        %v4228 = vpop.permute.xlu0 %4227
        %4230 = vset.pattern.permute.xlu0 2
        %4231 = vperm.xlu0 %4230, %v3859
        %v4232 = vpop.permute.xlu0 %4231
        %4234 = vset.pattern.permute.xlu0 2
        %4235 = vperm.xlu0 %4234, %v3864
        %v4236 = vpop.permute.xlu0 %4235
        %4238 = vset.pattern.permute.xlu0 2
        %4239 = vperm.xlu0 %4238, %v3869
        %v4240 = vpop.permute.xlu0 %4239
        %4242 = vset.pattern.permute.xlu0 2
        %4243 = vperm.xlu0 %4242, %v3874
        %v4244 = vpop.permute.xlu0 %4243
        %4246 = vset.pattern.permute.xlu0 2
        %4247 = vperm.xlu0 %4246, %v3879
        %v4248 = vpop.permute.xlu0 %4247
        %4250 = vset.pattern.permute.xlu0 2
        %4251 = vperm.xlu0 %4250, %v3884
        %v4252 = vpop.permute.xlu0 %4251
        %4254 = vset.pattern.permute.xlu0 2
        %4255 = vperm.xlu0 %4254, %v3889
        %v4256 = vpop.permute.xlu0 %4255
        %4258 = vset.pattern.permute.xlu0 2
        %4259 = vperm.xlu0 %4258, %v3894
        %v4260 = vpop.permute.xlu0 %4259
        %4262 = vset.pattern.permute.xlu0 2
        %4263 = vperm.xlu0 %4262, %v3899
        %v4264 = vpop.permute.xlu0 %4263
        %v4266 = vmul.f32 %v4204, %v4186
        %v4267 = vmul.f32 %v4208, %v4187
        %v4268 = vmul.f32 %v4212, %v4188
        %v4269 = vmul.f32 %v4216, %v4189
        %v4270 = vmul.f32 %v4220, %v4190
        %v4271 = vmul.f32 %v4224, %v4191
        %v4272 = vmul.f32 %v4228, %v4192
        %v4273 = vmul.f32 %v4232, %v4193
        %v4274 = vmul.f32 %v4236, %v4194
        %v4275 = vmul.f32 %v4240, %v4195
        %v4276 = vmul.f32 %v4244, %v4196
        %v4277 = vmul.f32 %v4248, %v4197
        %v4278 = vmul.f32 %v4252, %v4198
        %v4279 = vmul.f32 %v4256, %v4199
        %v4280 = vmul.f32 %v4260, %v4200
        %v4281 = vmul.f32 %v4264, %v4201
        %v4282 = vsel %vm2424, %v4266, 0.0
        %v4283 = vsel %vm2424, %v4267, 0.0
        %v4284 = vadd.f32 %v4282, %v4283
        %v4285 = vsel %vm2424, %v4268, 0.0
        %v4286 = vadd.f32 %v4284, %v4285
        %v4287 = vsel %vm2424, %v4269, 0.0
        %v4288 = vadd.f32 %v4286, %v4287
        %v4289 = vsel %vm2424, %v4270, 0.0
        %v4290 = vadd.f32 %v4288, %v4289
        %v4291 = vsel %vm2424, %v4271, 0.0
        %v4292 = vadd.f32 %v4290, %v4291
        %v4293 = vsel %vm2424, %v4272, 0.0
        %v4294 = vadd.f32 %v4292, %v4293
        %v4295 = vsel %vm2424, %v4273, 0.0
        %v4296 = vadd.f32 %v4294, %v4295
        %v4297 = vsel %vm2424, %v4274, 0.0
        %v4298 = vadd.f32 %v4296, %v4297
        %v4299 = vsel %vm2424, %v4275, 0.0
        %v4300 = vadd.f32 %v4298, %v4299
        %v4301 = vsel %vm2424, %v4276, 0.0
        %v4302 = vadd.f32 %v4300, %v4301
        %v4303 = vsel %vm2424, %v4277, 0.0
        %v4304 = vadd.f32 %v4302, %v4303
        %v4305 = vsel %vm2424, %v4278, 0.0
        %v4306 = vadd.f32 %v4304, %v4305
        %v4307 = vsel %vm2424, %v4279, 0.0
        %v4308 = vadd.f32 %v4306, %v4307
        %v4309 = vsel %vm2424, %v4280, 0.0
        %v4310 = vadd.f32 %v4308, %v4309
        %v4311 = vsel %vm2424, %v4281, 0.0
        %v4312 = vadd.f32 %v4310, %v4311
        %v4313 = vrot.slane %v4312, 4
        %v4314 = vadd.f32 %v4312, %v4313
        %v4315 = vrot.slane %v4314, 2
        %v4316 = vadd.f32 %v4314, %v4315
        %v4317 = vrot.slane %v4316, 1
        %v4318 = vadd.f32 %v4316, %v4317
        %s4319 = scalar_lea.vmem %s59, 384
        %v4320 = vld [vmem:[%s4319] sm:$0xff]
        %v4321 = vld [vmem:[%s4319 + $0x8] sm:$0xff]
        %v4322 = vld [vmem:[%s4319 + $0x10] sm:$0xff]
        %v4323 = vld [vmem:[%s4319 + $0x18] sm:$0xff]
        %v4324 = vld [vmem:[%s4319 + $0x20] sm:$0xff]
        %v4325 = vld [vmem:[%s4319 + $0x28] sm:$0xff]
        %v4326 = vld [vmem:[%s4319 + $0x30] sm:$0xff]
        %v4327 = vld [vmem:[%s4319 + $0x38] sm:$0xff]
        %v4328 = vld [vmem:[%s4319 + $0x40] sm:$0xff]
        %v4329 = vld [vmem:[%s4319 + $0x48] sm:$0xff]
        %v4330 = vld [vmem:[%s4319 + $0x50] sm:$0xff]
        %v4331 = vld [vmem:[%s4319 + $0x58] sm:$0xff]
        %v4332 = vld [vmem:[%s4319 + $0x60] sm:$0xff]
        %v4333 = vld [vmem:[%s4319 + $0x68] sm:$0xff]
        %v4334 = vld [vmem:[%s4319 + $0x70] sm:$0xff]
        %v4335 = vld [vmem:[%s4319 + $0x78] sm:$0xff]
        %4336 = vset.pattern.permute.xlu0 3
        %4337 = vperm.xlu0 %4336, %v3824
        %v4338 = vpop.permute.xlu0 %4337
        %4340 = vset.pattern.permute.xlu0 3
        %4341 = vperm.xlu0 %4340, %v3829
        %v4342 = vpop.permute.xlu0 %4341
        %4344 = vset.pattern.permute.xlu0 3
        %4345 = vperm.xlu0 %4344, %v3834
        %v4346 = vpop.permute.xlu0 %4345
        %4348 = vset.pattern.permute.xlu0 3
        %4349 = vperm.xlu0 %4348, %v3839
        %v4350 = vpop.permute.xlu0 %4349
        %4352 = vset.pattern.permute.xlu0 3
        %4353 = vperm.xlu0 %4352, %v3844
        %v4354 = vpop.permute.xlu0 %4353
        %4356 = vset.pattern.permute.xlu0 3
        %4357 = vperm.xlu0 %4356, %v3849
        %v4358 = vpop.permute.xlu0 %4357
        %4360 = vset.pattern.permute.xlu0 3
        %4361 = vperm.xlu0 %4360, %v3854
        %v4362 = vpop.permute.xlu0 %4361
        %4364 = vset.pattern.permute.xlu0 3
        %4365 = vperm.xlu0 %4364, %v3859
        %v4366 = vpop.permute.xlu0 %4365
        %4368 = vset.pattern.permute.xlu0 3
        %4369 = vperm.xlu0 %4368, %v3864
        %v4370 = vpop.permute.xlu0 %4369
        %4372 = vset.pattern.permute.xlu0 3
        %4373 = vperm.xlu0 %4372, %v3869
        %v4374 = vpop.permute.xlu0 %4373
        %4376 = vset.pattern.permute.xlu0 3
        %4377 = vperm.xlu0 %4376, %v3874
        %v4378 = vpop.permute.xlu0 %4377
        %4380 = vset.pattern.permute.xlu0 3
        %4381 = vperm.xlu0 %4380, %v3879
        %v4382 = vpop.permute.xlu0 %4381
        %4384 = vset.pattern.permute.xlu0 3
        %4385 = vperm.xlu0 %4384, %v3884
        %v4386 = vpop.permute.xlu0 %4385
        %4388 = vset.pattern.permute.xlu0 3
        %4389 = vperm.xlu0 %4388, %v3889
        %v4390 = vpop.permute.xlu0 %4389
        %4392 = vset.pattern.permute.xlu0 3
        %4393 = vperm.xlu0 %4392, %v3894
        %v4394 = vpop.permute.xlu0 %4393
        %4396 = vset.pattern.permute.xlu0 3
        %4397 = vperm.xlu0 %4396, %v3899
        %v4398 = vpop.permute.xlu0 %4397
        %v4400 = vmul.f32 %v4338, %v4320
        %v4401 = vmul.f32 %v4342, %v4321
        %v4402 = vmul.f32 %v4346, %v4322
        %v4403 = vmul.f32 %v4350, %v4323
        %v4404 = vmul.f32 %v4354, %v4324
        %v4405 = vmul.f32 %v4358, %v4325
        %v4406 = vmul.f32 %v4362, %v4326
        %v4407 = vmul.f32 %v4366, %v4327
        %v4408 = vmul.f32 %v4370, %v4328
        %v4409 = vmul.f32 %v4374, %v4329
        %v4410 = vmul.f32 %v4378, %v4330
        %v4411 = vmul.f32 %v4382, %v4331
        %v4412 = vmul.f32 %v4386, %v4332
        %v4413 = vmul.f32 %v4390, %v4333
        %v4414 = vmul.f32 %v4394, %v4334
        %v4415 = vmul.f32 %v4398, %v4335
        %v4416 = vsel %vm2424, %v4400, 0.0
        %v4417 = vsel %vm2424, %v4401, 0.0
        %v4418 = vadd.f32 %v4416, %v4417
        %v4419 = vsel %vm2424, %v4402, 0.0
        %v4420 = vadd.f32 %v4418, %v4419
        %v4421 = vsel %vm2424, %v4403, 0.0
        %v4422 = vadd.f32 %v4420, %v4421
        %v4423 = vsel %vm2424, %v4404, 0.0
        %v4424 = vadd.f32 %v4422, %v4423
        %v4425 = vsel %vm2424, %v4405, 0.0
        %v4426 = vadd.f32 %v4424, %v4425
        %v4427 = vsel %vm2424, %v4406, 0.0
        %v4428 = vadd.f32 %v4426, %v4427
        %v4429 = vsel %vm2424, %v4407, 0.0
        %v4430 = vadd.f32 %v4428, %v4429
        %v4431 = vsel %vm2424, %v4408, 0.0
        %v4432 = vadd.f32 %v4430, %v4431
        %v4433 = vsel %vm2424, %v4409, 0.0
        %v4434 = vadd.f32 %v4432, %v4433
        %v4435 = vsel %vm2424, %v4410, 0.0
        %v4436 = vadd.f32 %v4434, %v4435
        %v4437 = vsel %vm2424, %v4411, 0.0
        %v4438 = vadd.f32 %v4436, %v4437
        %v4439 = vsel %vm2424, %v4412, 0.0
        %v4440 = vadd.f32 %v4438, %v4439
        %v4441 = vsel %vm2424, %v4413, 0.0
        %v4442 = vadd.f32 %v4440, %v4441
        %v4443 = vsel %vm2424, %v4414, 0.0
        %v4444 = vadd.f32 %v4442, %v4443
        %v4445 = vsel %vm2424, %v4415, 0.0
        %v4446 = vadd.f32 %v4444, %v4445
        %v4447 = vrot.slane %v4446, 4
        %v4448 = vadd.f32 %v4446, %v4447
        %v4449 = vrot.slane %v4448, 2
        %v4450 = vadd.f32 %v4448, %v4449
        %v4451 = vrot.slane %v4450, 1
        %v4452 = vadd.f32 %v4450, %v4451
        %v4453 = vadd.f32 %v4050, %v4184
        %v4454 = vadd.f32 %v4318, %v4452
        %v4455 = vadd.f32 %v4453, %v4454
        %v4456 = vld [vmem:[%s61] sm:$0x1]
        %v4457 = vmul.f32 %v4455, %v4456
        %v4458 = vld [vmem:[%s63] sm:$0x1]
        %v4459 = vadd.f32 %v4457, %v4458
        %v4460 = vmax.f32 %v4459, 0.0
        %v4461 = vmin.f32 %v4460, 15.0
        %v4462 = vround.ne.pseudo %v4461
        %v4463 = vld [vmem:[%s65] sm:$0xff]
        %v4464 = vld [vmem:[%s65 + $0x8] sm:$0xff]
        %v4465 = vld [vmem:[%s65 + $0x10] sm:$0xff]
        %v4466 = vld [vmem:[%s65 + $0x18] sm:$0xff]
        %v4467 = vld [vmem:[%s65 + $0x20] sm:$0xff]
        %v4468 = vld [vmem:[%s65 + $0x28] sm:$0xff]
        %v4469 = vld [vmem:[%s65 + $0x30] sm:$0xff]
        %v4470 = vld [vmem:[%s65 + $0x38] sm:$0xff]
        %v4472 = vsel %vm2424, %v4462, 0
        %4474 = vmatprep.subr.mxu0 0.0
        %4475 = vmatpush1.msra.mxu0 %v4463
        %4476 = vmatprep.subr.mxu0 0.0
        %4477 = vmatpush1.msra.mxu0 %v4464
        %4478 = vmatprep.subr.mxu0 0.0
        %4479 = vmatpush1.msra.mxu0 %v4465
        %4480 = vmatprep.subr.mxu0 0.0
        %4481 = vmatpush1.msra.mxu0 %v4466
        %4482 = vmatprep.subr.mxu0 0.0
        %4483 = vmatpush1.msra.mxu0 %v4467
        %4484 = vmatprep.subr.mxu0 0.0
        %4485 = vmatpush1.msra.mxu0 %v4468
        %4486 = vmatprep.subr.mxu0 0.0
        %4487 = vmatpush1.msra.mxu0 %v4469
        %4488 = vmatprep.subr.mxu0 0.0
        %4489 = vmatpush1.msra.mxu0 %v4470
        %4490 = vmatprep.subr.mxu0 0.0
        %4491 = vmatpush1.msra.mxu0 0.0
        %4492 = vmatprep.subr.mxu0 0.0
        %4493 = vmatpush1.msra.mxu0 0.0
        %4494 = vmatprep.subr.mxu0 0.0
        %4495 = vmatpush1.msra.mxu0 0.0
        %4496 = vmatprep.subr.mxu0 0.0
        %4497 = vmatpush1.msra.mxu0 0.0
        %4498 = vmatprep.subr.mxu0 0.0
        %4499 = vmatpush1.msra.mxu0 0.0
        %4500 = vmatprep.subr.mxu0 0.0
        %4501 = vmatpush1.msra.mxu0 0.0
        %4502 = vmatprep.subr.mxu0 0.0
        %4503 = vmatpush1.msra.mxu0 0.0
        %4504 = vmatprep.subr.mxu0 0.0
        %4505 = vmatpush1.msra.mxu0 0.0
        %4506 = vmatprep.subr.mxu0 0.0
        %4507 = vmatpush1.msra.mxu0 0.0
        %4508 = vmatprep.subr.mxu0 0.0
        %4509 = vmatpush1.msra.mxu0 0.0
        %4510 = vmatprep.subr.mxu0 0.0
        %4511 = vmatpush1.msra.mxu0 0.0
        %4512 = vmatprep.subr.mxu0 0.0
        %4513 = vmatpush1.msra.mxu0 0.0
        %4514 = vmatprep.subr.mxu0 0.0
        %4515 = vmatpush1.msra.mxu0 0.0
        %4516 = vmatprep.subr.mxu0 0.0
        %4517 = vmatpush1.msra.mxu0 0.0
        %4518 = vmatprep.subr.mxu0 0.0
        %4519 = vmatpush1.msra.mxu0 0.0
        %4520 = vmatprep.subr.mxu0 0.0
        %4521 = vmatpush1.msra.mxu0 0.0
        %4522 = vmatprep.subr.mxu0 0.0
        %4523 = vmatpush1.msra.mxu0 0.0
        %4524 = vmatprep.subr.mxu0 0.0
        %4525 = vmatpush1.msra.mxu0 0.0
        %4526 = vmatprep.subr.mxu0 0.0
        %4527 = vmatpush1.msra.mxu0 0.0
        %4528 = vmatprep.subr.mxu0 0.0
        %4529 = vmatpush1.msra.mxu0 0.0
        %4530 = vmatprep.subr.mxu0 0.0
        %4531 = vmatpush1.msra.mxu0 0.0
        %4532 = vmatprep.subr.mxu0 0.0
        %4533 = vmatpush1.msra.mxu0 0.0
        %4534 = vmatprep.subr.mxu0 0.0
        %4535 = vmatpush1.msra.mxu0 0.0
        %4536 = vmatprep.subr.mxu0 0.0
        %4537 = vmatpush1.msra.mxu0 0.0
        %4538 = vmatprep.mubr.f32.mxu0 0.0
        %4539 = vmatmul.mubr.f32.gmra.mrb[0].mxu0 %v4472
        %v4540 = vpop.f32.mrb[0].mxu0
        %v4541 = vadd.f32 0.0, %v4540
        %v4542 = vpop.f32.mrb[0].mxu0
        %4543 = vdwg.mxu0
        %v4544 = vld [vmem:[%s67] sm:$0x1]
        %v4545 = vmul.f32 %v4541, %v4544
        %v4546 = vld [vmem:[%s69] sm:$0x1]
        %v4547 = vadd.f32 %v4545, %v4546
        %v4548 = vmax.f32 %v4547, 0.0
        %v4549 = vmin.f32 %v4548, 15.0
        %v4550 = vround.ne.pseudo %v4549
        %v4551 = vld [vmem:[%s71] sm:$0xff]
        %v4552 = vld [vmem:[%s71 + $0x8] sm:$0xff]
        %v4553 = vld [vmem:[%s71 + $0x10] sm:$0xff]
        %v4554 = vld [vmem:[%s71 + $0x18] sm:$0xff]
        %v4555 = vld [vmem:[%s73] sm:$0x1]
        %v4557 = vsel %vm2681, %v4550, 0
        %4559 = vmatprep.subr.mxu0 0.0
        %4560 = vmatpush1.msra.mxu0 %v4551
        %4561 = vmatprep.subr.mxu0 0.0
        %4562 = vmatpush1.msra.mxu0 %v4552
        %4563 = vmatprep.subr.mxu0 0.0
        %4564 = vmatpush1.msra.mxu0 %v4553
        %4565 = vmatprep.subr.mxu0 0.0
        %4566 = vmatpush1.msra.mxu0 %v4554
        %4567 = vmatprep.subr.mxu0 0.0
        %4568 = vmatpush1.msra.mxu0 0.0
        %4569 = vmatprep.subr.mxu0 0.0
        %4570 = vmatpush1.msra.mxu0 0.0
        %4571 = vmatprep.subr.mxu0 0.0
        %4572 = vmatpush1.msra.mxu0 0.0
        %4573 = vmatprep.subr.mxu0 0.0
        %4574 = vmatpush1.msra.mxu0 0.0
        %4575 = vmatprep.subr.mxu0 0.0
        %4576 = vmatpush1.msra.mxu0 0.0
        %4577 = vmatprep.subr.mxu0 0.0
        %4578 = vmatpush1.msra.mxu0 0.0
        %4579 = vmatprep.subr.mxu0 0.0
        %4580 = vmatpush1.msra.mxu0 0.0
        %4581 = vmatprep.subr.mxu0 0.0
        %4582 = vmatpush1.msra.mxu0 0.0
        %4583 = vmatprep.subr.mxu0 0.0
        %4584 = vmatpush1.msra.mxu0 0.0
        %4585 = vmatprep.subr.mxu0 0.0
        %4586 = vmatpush1.msra.mxu0 0.0
        %4587 = vmatprep.subr.mxu0 0.0
        %4588 = vmatpush1.msra.mxu0 0.0
        %4589 = vmatprep.subr.mxu0 0.0
        %4590 = vmatpush1.msra.mxu0 0.0
        %4591 = vmatprep.subr.mxu0 0.0
        %4592 = vmatpush1.msra.mxu0 0.0
        %4593 = vmatprep.subr.mxu0 0.0
        %4594 = vmatpush1.msra.mxu0 0.0
        %4595 = vmatprep.subr.mxu0 0.0
        %4596 = vmatpush1.msra.mxu0 0.0
        %4597 = vmatprep.subr.mxu0 0.0
        %4598 = vmatpush1.msra.mxu0 0.0
        %4599 = vmatprep.subr.mxu0 0.0
        %4600 = vmatpush1.msra.mxu0 0.0
        %4601 = vmatprep.subr.mxu0 0.0
        %4602 = vmatpush1.msra.mxu0 0.0
        %4603 = vmatprep.subr.mxu0 0.0
        %4604 = vmatpush1.msra.mxu0 0.0
        %4605 = vmatprep.subr.mxu0 0.0
        %4606 = vmatpush1.msra.mxu0 0.0
        %4607 = vmatprep.subr.mxu0 0.0
        %4608 = vmatpush1.msra.mxu0 0.0
        %4609 = vmatprep.subr.mxu0 0.0
        %4610 = vmatpush1.msra.mxu0 0.0
        %4611 = vmatprep.subr.mxu0 0.0
        %4612 = vmatpush1.msra.mxu0 0.0
        %4613 = vmatprep.subr.mxu0 0.0
        %4614 = vmatpush1.msra.mxu0 0.0
        %4615 = vmatprep.subr.mxu0 0.0
        %4616 = vmatpush1.msra.mxu0 0.0
        %4617 = vmatprep.subr.mxu0 0.0
        %4618 = vmatpush1.msra.mxu0 0.0
        %4619 = vmatprep.subr.mxu0 0.0
        %4620 = vmatpush1.msra.mxu0 0.0
        %4621 = vmatprep.subr.mxu0 0.0
        %4622 = vmatpush1.msra.mxu0 0.0
        %4623 = vmatprep.mubr.f32.mxu0 0.0
        %4624 = vmatmul.mubr.f32.gmra.mrb[0].mxu0 %v4557
        %v4625 = vpop.f32.mrb[0].mxu0
        %v4626 = vadd.f32 %v4555, %v4625
        %v4627 = vpop.f32.mrb[0].mxu0
        %4628 = vdwg.mxu0
        %v4629 = vmax.f32 %v4626, 0.0
        %v4630 = vmin.f32 %v4629, 15.0
        %v4631 = vround.ne.pseudo %v4630
        %v4632 = vmul.f32 %v4631, 0.13333334
        %v4633 = vadd.f32 %v4632, 0.33
        %vm4634 = vcmask 188416
        %4635 = vst.msk [vmem:[%s1118] sm:$0x1] %vm4634, %v4633
        %s4636 = sand.u32 %s879, 1
        %s4637 = scalar_lea.sflag [#allocation3], %s4636
        %s4638 = sand.u32 %s879, 1
        %s4639 = scalar_lea.vmem [#allocation2], %s4638
        // Predicated region
        $region169: #{tpu_custom_call.1} parent=167 // pred_check
          %p4640 = pneg %p889
        $region170: #{tpu_custom_call.1} parent=167 // pred_check_branch
          %4642 = sbr.rel (%p4640) target = $region172
        $region171: #{tpu_custom_call.1} parent=167 // pred_region
          %s4644 = ssub.s32 16, 16
          %4645 = vsyncadd %s4637, %s4644
          %s4646 = smul.addr %s89, 16
          %s4647 = scalar_lea.hbm %s75, %s4646
          %s4649 = sshll.u32 %s4639, 4
          %s4650 = int_to_ptr.vmem [resolvable:$true] %s4649
          %4652 = dma.vmem_to_hbm [thread:$0]  %s4650, 16, %s4647, %s4637
        $region172: #{tpu_custom_call.1} parent=167 // pred_fallthru
          _
      $region168: #{tpu_custom_call.1} parent=5 // pred_fallthru
        _
      %p4653 = scmp.le.s32.totalorder 2, %s84
      // Predicated region
      $region173: #{tpu_custom_call.1} parent=5 // pred_check
        %p4654 = pneg %p4653
      $region174: #{tpu_custom_call.1} parent=5 // pred_check_branch
        %4656 = sbr.rel (%p4654) target = $region176
      $region175: #{tpu_custom_call.1} parent=5 // pred_region
        %s4657 = ssub.s32 %s84, 2
        // Predicated region
        $region177: #{tpu_custom_call.1} parent=175 // pred_check
          %p4658 = pneg %p895
        $region178: #{tpu_custom_call.1} parent=175 // pred_check_branch
          %4660 = sbr.rel (%p4658) target = $region180
        $region179: #{tpu_custom_call.1} parent=175 // pred_region
          %s4661 = sand.u32 %s880, 1
          %s4662 = scalar_lea.sflag [#allocation3], %s4661
          %s4663 = sand.u32 %s880, 1
          %s4664 = scalar_lea.vmem [#allocation2], %s4663
          %4665 = dma.done %s4662, 16
        $region180: #{tpu_custom_call.1} parent=175 // pred_fallthru
          _
      $region176: #{tpu_custom_call.1} parent=5 // pred_fallthru
        _
    $region6: #{tpu_custom_call.1} parent=1 // loop_footer
      %s88 = sadd.s32 1, %s84
    $region7: #{tpu_custom_call.1} parent=1 // loop_footer_branch
      %83 = sbr.rel target = $region3
    $region8: #{tpu_custom_call.1} parent=1 // loop_exit
      _
    %4666 = vsyncpa [#allocation3], 1
    %s4667 = scalar_lea.sflag [#allocation3], 1
    %4668 = vsyncpa %s4667, 1

</llo_original>
